<compile_context>
chip_gen: v6e
topology: v6e:2x2x1
jax: 0.10.0
libtpu: 0.0.40
codegen_flags: <defaults>
</compile_context>

<pallas_src>
import jax
import jax.numpy as jnp
from jax.experimental import pallas as pl
from jax.experimental.pallas import tpu as pltpu

NUM_CHANNEL = 4          # len(AVE_CHANNELS_NAME)
SEQ_LEN = 256            # NEW_FREQUENCY * DURATION
BN_EPS = 1e-5
LF = (((SEQ_LEN - 2) // 4 - 2) // 4 - 2) // 4      # = 3
D_IN = 32 * LF                                     # = 96

# Row offsets inside the packed weight slab (all starts 8-aligned or 0).
_W1_R, _W2_R, _W3_R = 0, 16, 40
_WSLAB_ROWS = 88          # 40 + 48
_VSLAB_ROWS = 16          # 9 vec rows + LF wl rows + 1 bl row, padded to 16


# ---------------------------------------------------------------------------
# In-kernel building blocks (2-D per-batch-item arrays, NLC-style: (L, C))
# ---------------------------------------------------------------------------
def _conv1d_im2col(h, w_mat, b_row):
    # h: (L, Cin) f32; w_mat: (3*Cin, Cout); b_row: (1, Cout)
    l = h.shape[0]
    lout = l - 2
    cols = jnp.concatenate(
        [h[0:lout, :], h[1:1 + lout, :], h[2:2 + lout, :]], axis=1)   # (Lout, 3*Cin)
    y = jnp.dot(cols, w_mat, preferred_element_type=jnp.float32)      # (Lout, Cout)
    return y + b_row


def _bn_train(hs, gamma, beta):
    # One-pass training-mode batch stats over all items & rows; biased variance.
    c = hs[0].shape[1]
    count = sum(h.shape[0] for h in hs)            # N * Lout (static)
    inv = 1.0 / float(count)
    s = jnp.zeros((1, c), jnp.float32)
    sq = jnp.zeros((1, c), jnp.float32)
    for h in hs:
        s = s + jnp.sum(h, axis=0, keepdims=True)
        sq = sq + jnp.sum(h * h, axis=0, keepdims=True)
    mean = s * inv
    var = sq * inv - mean * mean
    scale = gamma * jax.lax.rsqrt(var + BN_EPS)
    shift = beta - mean * scale
    return [h * scale + shift for h in hs]


def _maxpool4(h):
    # MaxPool1d(kernel=4, stride=4) over the length (sublane) axis.
    l, c = h.shape
    lp = l // 4
    v = h[:lp * 4, :].reshape(lp, 4, c)            # minor dim preserved
    return jnp.max(v, axis=1)                      # (Lp, C)


# ---------------------------------------------------------------------------
# Pallas kernel: whole forward pass, single grid point (everything in VMEM)
# ---------------------------------------------------------------------------
def cnn_kernel(x_ref, wslab_ref, vslab_ref, o_ref):
    # Static slices out of the two packed parameter slabs.
    w1 = wslab_ref[_W1_R:_W1_R + 12, 0:8]          # (3*4, 8)
    w2 = wslab_ref[_W2_R:_W2_R + 24, 0:16]         # (3*8, 16)
    w3 = wslab_ref[_W3_R:_W3_R + 48, 0:32]         # (3*16, 32)
    b1, g1, be1 = vslab_ref[0:1, 0:8], vslab_ref[1:2, 0:8], vslab_ref[2:3, 0:8]
    b2, g2, be2 = vslab_ref[3:4, 0:16], vslab_ref[4:5, 0:16], vslab_ref[5:6, 0:16]
    b3, g3, be3 = vslab_ref[6:7, 0:32], vslab_ref[7:8, 0:32], vslab_ref[8:9, 0:32]
    wl = vslab_ref[9:9 + LF, 0:32]                 # (LF, 32) channel-major flatten folded in
    bl = vslab_ref[12:13, 0:1]                     # (1, 1)

    n = x_ref.shape[0]
    hs = [x_ref[i].astype(jnp.float32) for i in range(n)]      # list of (L, Cin)

    for w, b, g, be in ((w1, b1, g1, be1), (w2, b2, g2, be2), (w3, b3, g3, be3)):
        hs = [_conv1d_im2col(h, w, b) for h in hs]
        hs = _bn_train(hs, g, be)
        hs = [jnp.maximum(_maxpool4(h), 0.0) for h in hs]      # pool first, then ReLU

    # Linear layer: per item, elementwise product with the (LF, 32) weight
    # layout and a full reduction; no in-kernel flatten needed.
    for i, h in enumerate(hs):                     # h: (LF, 32)
        p = h * wl
        y = jnp.sum(jnp.sum(p, axis=1, keepdims=True), axis=0, keepdims=True)  # (1,1)
        o_ref[i:i + 1, :] = y + bl


# ---------------------------------------------------------------------------
# Parameter construction (deterministic, mirrors the PyTorch init scheme)
# ---------------------------------------------------------------------------
def _xavier_normal(key, shape, fan_in, fan_out, gain):
    std = gain * jnp.sqrt(2.0 / (fan_in + fan_out))
    return std * jax.random.normal(key, shape, dtype=jnp.float32)


def init_params(key):
    ks = jax.random.split(key, 8)
    relu_gain = jnp.sqrt(2.0)
    params = {}
    conv_dims = [(NUM_CHANNEL, 8), (8, 16), (16, 32)]
    for i, (cin, cout) in enumerate(conv_dims, start=1):
        w = _xavier_normal(ks[i - 1], (cout, cin, 3),
                           fan_in=cin * 3, fan_out=cout * 3, gain=relu_gain)
        params[f'w{i}'] = w                                 # (Cout, Cin, 3)
        params[f'b{i}'] = jnp.ones((cout,), jnp.float32)    # bias filled with 1 (spec)
        params[f'g{i}'] = jnp.ones((cout,), jnp.float32)    # BN gamma
        params[f'be{i}'] = jnp.zeros((cout,), jnp.float32)  # BN beta
    params['wl'] = _xavier_normal(ks[6], (1, D_IN), fan_in=D_IN, fan_out=1,
                                  gain=1.0)                 # sigmoid gain = 1
    bound = 1.0 / jnp.sqrt(jnp.float32(D_IN))
    params['bl'] = jax.random.uniform(ks[7], (1,), jnp.float32, -bound, bound)
    return params


# ---------------------------------------------------------------------------
# Wrapper: layout plumbing + slab packing (plain JAX, fused under jit)
# ---------------------------------------------------------------------------
def _im2col_weight(w):
    # PyTorch (Cout, Cin, K) -> im2col matrix (K*Cin, Cout), row = k*Cin + ci.
    cout = w.shape[0]
    return jnp.transpose(w, (2, 1, 0)).reshape(-1, cout)


def _pack_params(params):
    wslab = jnp.zeros((_WSLAB_ROWS, 32), jnp.float32)
    wslab = wslab.at[_W1_R:_W1_R + 12, 0:8].set(_im2col_weight(params['w1']))
    wslab = wslab.at[_W2_R:_W2_R + 24, 0:16].set(_im2col_weight(params['w2']))
    wslab = wslab.at[_W3_R:_W3_R + 48, 0:32].set(_im2col_weight(params['w3']))

    vslab = jnp.zeros((_VSLAB_ROWS, 32), jnp.float32)
    rows = (('b1', 8), ('g1', 8), ('be1', 8),
            ('b2', 16), ('g2', 16), ('be2', 16),
            ('b3', 32), ('g3', 32), ('be3', 32))
    for r, (name, c) in enumerate(rows):
        vslab = vslab.at[r, 0:c].set(params[name])
    # Linear weight (1, 32*LF); PyTorch flatten is channel-major (c*LF + l),
    # so lay it out as (LF, 32) to align with the kernel's (LF, C) tensor.
    wl_lc = jnp.transpose(params['wl'].reshape(32, LF), (1, 0))
    vslab = vslab.at[9:9 + LF, :].set(wl_lc)
    vslab = vslab.at[12, 0].set(params['bl'][0])
    return wslab, vslab


@jax.jit
def cnn_forward(x_ncl, params):
    n = x_ncl.shape[0]
    x_nlc = jnp.transpose(x_ncl, (0, 2, 1)).astype(jnp.float32)     # NCL -> NLC
    wslab, vslab = _pack_params(params)

    vmem = pl.BlockSpec(memory_space=pltpu.MemorySpace.VMEM)
    # TODO(synk): for large batches, grid over batch (dimension_semantics=
    # ("parallel",)) after switching BN to eval mode / two-phase stats.
    return pl.pallas_call(
        cnn_kernel,
        out_shape=jax.ShapeDtypeStruct((n, 1), jnp.float32),
        in_specs=[vmem, vmem, vmem],
        out_specs=vmem,
    )(x_nlc, wslab, vslab)


if __name__ == "__main__":
    key = jax.random.PRNGKey(0)
    k_param, k_x = jax.random.split(key)
    params = init_params(k_param)

    # input matches PyTorch Conv1d convention: (batch, channels, length)
    x = jax.random.normal(k_x, (2, NUM_CHANNEL, SEQ_LEN), dtype=jnp.float32)

    y = cnn_forward(x, params)
    jax.block_until_ready(y)
    assert y.shape == (2, 1), y.shape
    assert bool(jnp.all(jnp.isfinite(y)))
    print("KERNEL_OK")
</pallas_src>

<mosaic_0001>
module attributes {stable_mosaic.version = 11 : i64} {
  func.func @cnn_kernel(%arg0: memref<2x256x4xf32, #tpu.memory_space<vmem>>, %arg1: memref<88x32xf32, #tpu.memory_space<vmem>>, %arg2: memref<16x32xf32, #tpu.memory_space<vmem>>, %arg3: memref<2x1xf32, #tpu.memory_space<vmem>>) attributes {dimension_semantics = [], scalar_prefetch = 0 : i64, scratch_operands = 0 : i64, tpu.core_type = #tpu.core_type<tc>} {
    %c0 = arith.constant 0 : index
    %c0_0 = arith.constant 0 : index
    %0 = vector.load %arg1[%c0, %c0_0] : memref<88x32xf32, #tpu.memory_space<vmem>>, vector<12x8xf32>
    %c16 = arith.constant 16 : index
    %c0_1 = arith.constant 0 : index
    %1 = vector.load %arg1[%c16, %c0_1] : memref<88x32xf32, #tpu.memory_space<vmem>>, vector<24x16xf32>
    %c40 = arith.constant 40 : index
    %c0_2 = arith.constant 0 : index
    %2 = vector.load %arg1[%c40, %c0_2] : memref<88x32xf32, #tpu.memory_space<vmem>>, vector<48x32xf32>
    %c0_3 = arith.constant 0 : index
    %c0_4 = arith.constant 0 : index
    %3 = vector.load %arg2[%c0_3, %c0_4] : memref<16x32xf32, #tpu.memory_space<vmem>>, vector<1x8xf32>
    %c1 = arith.constant 1 : index
    %c0_5 = arith.constant 0 : index
    %4 = vector.load %arg2[%c1, %c0_5] : memref<16x32xf32, #tpu.memory_space<vmem>>, vector<1x8xf32>
    %c2 = arith.constant 2 : index
    %c0_6 = arith.constant 0 : index
    %5 = vector.load %arg2[%c2, %c0_6] : memref<16x32xf32, #tpu.memory_space<vmem>>, vector<1x8xf32>
    %c3 = arith.constant 3 : index
    %c0_7 = arith.constant 0 : index
    %6 = vector.load %arg2[%c3, %c0_7] : memref<16x32xf32, #tpu.memory_space<vmem>>, vector<1x16xf32>
    %c4 = arith.constant 4 : index
    %c0_8 = arith.constant 0 : index
    %7 = vector.load %arg2[%c4, %c0_8] : memref<16x32xf32, #tpu.memory_space<vmem>>, vector<1x16xf32>
    %c5 = arith.constant 5 : index
    %c0_9 = arith.constant 0 : index
    %8 = vector.load %arg2[%c5, %c0_9] : memref<16x32xf32, #tpu.memory_space<vmem>>, vector<1x16xf32>
    %c6 = arith.constant 6 : index
    %c0_10 = arith.constant 0 : index
    %9 = vector.load %arg2[%c6, %c0_10] : memref<16x32xf32, #tpu.memory_space<vmem>>, vector<1x32xf32>
    %c7 = arith.constant 7 : index
    %c0_11 = arith.constant 0 : index
    %10 = vector.load %arg2[%c7, %c0_11] : memref<16x32xf32, #tpu.memory_space<vmem>>, vector<1x32xf32>
    %c8 = arith.constant 8 : index
    %c0_12 = arith.constant 0 : index
    %11 = vector.load %arg2[%c8, %c0_12] : memref<16x32xf32, #tpu.memory_space<vmem>>, vector<1x32xf32>
    %c9 = arith.constant 9 : index
    %c0_13 = arith.constant 0 : index
    %12 = vector.load %arg2[%c9, %c0_13] : memref<16x32xf32, #tpu.memory_space<vmem>>, vector<3x32xf32>
    %c12 = arith.constant 12 : index
    %c0_14 = arith.constant 0 : index
    %13 = vector.load %arg2[%c12, %c0_14] : memref<16x32xf32, #tpu.memory_space<vmem>>, vector<1x1xf32>
    %c0_15 = arith.constant 0 : index
    %c0_16 = arith.constant 0 : index
    %c0_17 = arith.constant 0 : index
    %14 = vector.load %arg0[%c0_15, %c0_16, %c0_17] : memref<2x256x4xf32, #tpu.memory_space<vmem>>, vector<1x256x4xf32>
    %15 = vector.shape_cast %14 : vector<1x256x4xf32> to vector<256x4xf32>
    %c1_18 = arith.constant 1 : index
    %c0_19 = arith.constant 0 : index
    %c0_20 = arith.constant 0 : index
    %16 = vector.load %arg0[%c1_18, %c0_19, %c0_20] : memref<2x256x4xf32, #tpu.memory_space<vmem>>, vector<1x256x4xf32>
    %17 = vector.shape_cast %16 : vector<1x256x4xf32> to vector<256x4xf32>
    %18 = vector.extract_strided_slice %15 {offsets = [0, 0], sizes = [254, 4], strides = [1, 1]} : vector<256x4xf32> to vector<254x4xf32>
    %19 = vector.extract_strided_slice %15 {offsets = [1, 0], sizes = [254, 4], strides = [1, 1]} : vector<256x4xf32> to vector<254x4xf32>
    %20 = vector.extract_strided_slice %15 {offsets = [2, 0], sizes = [254, 4], strides = [1, 1]} : vector<256x4xf32> to vector<254x4xf32>
    %21 = tpu.concatenate %18, %19, %20 in 1 : vector<254x4xf32>, vector<254x4xf32>, vector<254x4xf32> -> vector<254x12xf32>
    %cst = arith.constant dense<0.000000e+00> : vector<254x8xf32>
    %22 = tpu.matmul %21, %0, %cst {dimension_numbers = #tpu.dot_dimension_numbers<[1], [0], [0], [1], [0, 0, 1, 1], [], []>} : vector<254x12xf32>, vector<12x8xf32>, vector<254x8xf32> -> vector<254x8xf32>
    %23 = vector.broadcast %3 : vector<1x8xf32> to vector<254x8xf32>
    %24 = arith.addf %22, %23 : vector<254x8xf32>
    %25 = vector.extract_strided_slice %17 {offsets = [0, 0], sizes = [254, 4], strides = [1, 1]} : vector<256x4xf32> to vector<254x4xf32>
    %26 = vector.extract_strided_slice %17 {offsets = [1, 0], sizes = [254, 4], strides = [1, 1]} : vector<256x4xf32> to vector<254x4xf32>
    %27 = vector.extract_strided_slice %17 {offsets = [2, 0], sizes = [254, 4], strides = [1, 1]} : vector<256x4xf32> to vector<254x4xf32>
    %28 = tpu.concatenate %25, %26, %27 in 1 : vector<254x4xf32>, vector<254x4xf32>, vector<254x4xf32> -> vector<254x12xf32>
    %cst_21 = arith.constant dense<0.000000e+00> : vector<254x8xf32>
    %29 = tpu.matmul %28, %0, %cst_21 {dimension_numbers = #tpu.dot_dimension_numbers<[1], [0], [0], [1], [0, 0, 1, 1], [], []>} : vector<254x12xf32>, vector<12x8xf32>, vector<254x8xf32> -> vector<254x8xf32>
    %30 = vector.broadcast %3 : vector<1x8xf32> to vector<254x8xf32>
    %31 = arith.addf %29, %30 : vector<254x8xf32>
    %cst_22 = arith.constant 0.000000e+00 : f32
    %32 = vector.broadcast %cst_22 : f32 to vector<1x8xf32>
    %cst_23 = arith.constant 0.000000e+00 : f32
    %33 = vector.broadcast %cst_23 : f32 to vector<1x8xf32>
    %cst_24 = arith.constant dense<0.000000e+00> : vector<8xf32>
    %34 = vector.multi_reduction <add>, %24, %cst_24 [0] : vector<254x8xf32> to vector<8xf32>
    %35 = vector.shape_cast %34 : vector<8xf32> to vector<1x8xf32>
    %36 = arith.addf %32, %35 : vector<1x8xf32>
    %37 = arith.mulf %24, %24 : vector<254x8xf32>
    %cst_25 = arith.constant dense<0.000000e+00> : vector<8xf32>
    %38 = vector.multi_reduction <add>, %37, %cst_25 [0] : vector<254x8xf32> to vector<8xf32>
    %39 = vector.shape_cast %38 : vector<8xf32> to vector<1x8xf32>
    %40 = arith.addf %33, %39 : vector<1x8xf32>
    %cst_26 = arith.constant dense<0.000000e+00> : vector<8xf32>
    %41 = vector.multi_reduction <add>, %31, %cst_26 [0] : vector<254x8xf32> to vector<8xf32>
    %42 = vector.shape_cast %41 : vector<8xf32> to vector<1x8xf32>
    %43 = arith.addf %36, %42 : vector<1x8xf32>
    %44 = arith.mulf %31, %31 : vector<254x8xf32>
    %cst_27 = arith.constant dense<0.000000e+00> : vector<8xf32>
    %45 = vector.multi_reduction <add>, %44, %cst_27 [0] : vector<254x8xf32> to vector<8xf32>
    %46 = vector.shape_cast %45 : vector<8xf32> to vector<1x8xf32>
    %47 = arith.addf %40, %46 : vector<1x8xf32>
    %cst_28 = arith.constant 0.00196850393 : f32
    %48 = vector.broadcast %cst_28 : f32 to vector<1x8xf32>
    %49 = arith.mulf %43, %48 : vector<1x8xf32>
    %cst_29 = arith.constant 0.00196850393 : f32
    %50 = vector.broadcast %cst_29 : f32 to vector<1x8xf32>
    %51 = arith.mulf %47, %50 : vector<1x8xf32>
    %52 = arith.mulf %49, %49 : vector<1x8xf32>
    %53 = arith.subf %51, %52 : vector<1x8xf32>
    %cst_30 = arith.constant 9.99999974E-6 : f32
    %54 = vector.broadcast %cst_30 : f32 to vector<1x8xf32>
    %55 = arith.addf %53, %54 : vector<1x8xf32>
    %56 = math.rsqrt %55 : vector<1x8xf32>
    %57 = arith.mulf %4, %56 : vector<1x8xf32>
    %58 = arith.mulf %49, %57 : vector<1x8xf32>
    %59 = arith.subf %5, %58 : vector<1x8xf32>
    %60 = vector.broadcast %57 : vector<1x8xf32> to vector<254x8xf32>
    %61 = arith.mulf %24, %60 : vector<254x8xf32>
    %62 = vector.broadcast %59 : vector<1x8xf32> to vector<254x8xf32>
    %63 = arith.addf %61, %62 : vector<254x8xf32>
    %64 = vector.broadcast %57 : vector<1x8xf32> to vector<254x8xf32>
    %65 = arith.mulf %31, %64 : vector<254x8xf32>
    %66 = vector.broadcast %59 : vector<1x8xf32> to vector<254x8xf32>
    %67 = arith.addf %65, %66 : vector<254x8xf32>
    %68 = vector.extract_strided_slice %63 {offsets = [0, 0], sizes = [252, 8], strides = [1, 1]} : vector<254x8xf32> to vector<252x8xf32>
    %69 = vector.shape_cast %68 : vector<252x8xf32> to vector<63x4x8xf32>
    %cst_31 = arith.constant dense<0xFF800000> : vector<63x8xf32>
    %70 = vector.multi_reduction <maximumf>, %69, %cst_31 [1] : vector<63x4x8xf32> to vector<63x8xf32>
    %cst_32 = arith.constant 0.000000e+00 : f32
    %71 = vector.broadcast %cst_32 : f32 to vector<63x8xf32>
    %72 = arith.maximumf %70, %71 : vector<63x8xf32>
    %73 = vector.extract_strided_slice %67 {offsets = [0, 0], sizes = [252, 8], strides = [1, 1]} : vector<254x8xf32> to vector<252x8xf32>
    %74 = vector.shape_cast %73 : vector<252x8xf32> to vector<63x4x8xf32>
    %cst_33 = arith.constant dense<0xFF800000> : vector<63x8xf32>
    %75 = vector.multi_reduction <maximumf>, %74, %cst_33 [1] : vector<63x4x8xf32> to vector<63x8xf32>
    %cst_34 = arith.constant 0.000000e+00 : f32
    %76 = vector.broadcast %cst_34 : f32 to vector<63x8xf32>
    %77 = arith.maximumf %75, %76 : vector<63x8xf32>
    %78 = vector.extract_strided_slice %72 {offsets = [0, 0], sizes = [61, 8], strides = [1, 1]} : vector<63x8xf32> to vector<61x8xf32>
    %79 = vector.extract_strided_slice %72 {offsets = [1, 0], sizes = [61, 8], strides = [1, 1]} : vector<63x8xf32> to vector<61x8xf32>
    %80 = vector.extract_strided_slice %72 {offsets = [2, 0], sizes = [61, 8], strides = [1, 1]} : vector<63x8xf32> to vector<61x8xf32>
    %81 = tpu.concatenate %78, %79, %80 in 1 : vector<61x8xf32>, vector<61x8xf32>, vector<61x8xf32> -> vector<61x24xf32>
    %cst_35 = arith.constant dense<0.000000e+00> : vector<61x16xf32>
    %82 = tpu.matmul %81, %1, %cst_35 {dimension_numbers = #tpu.dot_dimension_numbers<[1], [0], [0], [1], [0, 0, 1, 1], [], []>} : vector<61x24xf32>, vector<24x16xf32>, vector<61x16xf32> -> vector<61x16xf32>
    %83 = vector.broadcast %6 : vector<1x16xf32> to vector<61x16xf32>
    %84 = arith.addf %82, %83 : vector<61x16xf32>
    %85 = vector.extract_strided_slice %77 {offsets = [0, 0], sizes = [61, 8], strides = [1, 1]} : vector<63x8xf32> to vector<61x8xf32>
    %86 = vector.extract_strided_slice %77 {offsets = [1, 0], sizes = [61, 8], strides = [1, 1]} : vector<63x8xf32> to vector<61x8xf32>
    %87 = vector.extract_strided_slice %77 {offsets = [2, 0], sizes = [61, 8], strides = [1, 1]} : vector<63x8xf32> to vector<61x8xf32>
    %88 = tpu.concatenate %85, %86, %87 in 1 : vector<61x8xf32>, vector<61x8xf32>, vector<61x8xf32> -> vector<61x24xf32>
    %cst_36 = arith.constant dense<0.000000e+00> : vector<61x16xf32>
    %89 = tpu.matmul %88, %1, %cst_36 {dimension_numbers = #tpu.dot_dimension_numbers<[1], [0], [0], [1], [0, 0, 1, 1], [], []>} : vector<61x24xf32>, vector<24x16xf32>, vector<61x16xf32> -> vector<61x16xf32>
    %90 = vector.broadcast %6 : vector<1x16xf32> to vector<61x16xf32>
    %91 = arith.addf %89, %90 : vector<61x16xf32>
    %cst_37 = arith.constant 0.000000e+00 : f32
    %92 = vector.broadcast %cst_37 : f32 to vector<1x16xf32>
    %cst_38 = arith.constant 0.000000e+00 : f32
    %93 = vector.broadcast %cst_38 : f32 to vector<1x16xf32>
    %cst_39 = arith.constant dense<0.000000e+00> : vector<16xf32>
    %94 = vector.multi_reduction <add>, %84, %cst_39 [0] : vector<61x16xf32> to vector<16xf32>
    %95 = vector.shape_cast %94 : vector<16xf32> to vector<1x16xf32>
    %96 = arith.addf %92, %95 : vector<1x16xf32>
    %97 = arith.mulf %84, %84 : vector<61x16xf32>
    %cst_40 = arith.constant dense<0.000000e+00> : vector<16xf32>
    %98 = vector.multi_reduction <add>, %97, %cst_40 [0] : vector<61x16xf32> to vector<16xf32>
    %99 = vector.shape_cast %98 : vector<16xf32> to vector<1x16xf32>
    %100 = arith.addf %93, %99 : vector<1x16xf32>
    %cst_41 = arith.constant dense<0.000000e+00> : vector<16xf32>
    %101 = vector.multi_reduction <add>, %91, %cst_41 [0] : vector<61x16xf32> to vector<16xf32>
    %102 = vector.shape_cast %101 : vector<16xf32> to vector<1x16xf32>
    %103 = arith.addf %96, %102 : vector<1x16xf32>
    %104 = arith.mulf %91, %91 : vector<61x16xf32>
    %cst_42 = arith.constant dense<0.000000e+00> : vector<16xf32>
    %105 = vector.multi_reduction <add>, %104, %cst_42 [0] : vector<61x16xf32> to vector<16xf32>
    %106 = vector.shape_cast %105 : vector<16xf32> to vector<1x16xf32>
    %107 = arith.addf %100, %106 : vector<1x16xf32>
    %cst_43 = arith.constant 0.00819672085 : f32
    %108 = vector.broadcast %cst_43 : f32 to vector<1x16xf32>
    %109 = arith.mulf %103, %108 : vector<1x16xf32>
    %cst_44 = arith.constant 0.00819672085 : f32
    %110 = vector.broadcast %cst_44 : f32 to vector<1x16xf32>
    %111 = arith.mulf %107, %110 : vector<1x16xf32>
    %112 = arith.mulf %109, %109 : vector<1x16xf32>
    %113 = arith.subf %111, %112 : vector<1x16xf32>
    %cst_45 = arith.constant 9.99999974E-6 : f32
    %114 = vector.broadcast %cst_45 : f32 to vector<1x16xf32>
    %115 = arith.addf %113, %114 : vector<1x16xf32>
    %116 = math.rsqrt %115 : vector<1x16xf32>
    %117 = arith.mulf %7, %116 : vector<1x16xf32>
    %118 = arith.mulf %109, %117 : vector<1x16xf32>
    %119 = arith.subf %8, %118 : vector<1x16xf32>
    %120 = vector.broadcast %117 : vector<1x16xf32> to vector<61x16xf32>
    %121 = arith.mulf %84, %120 : vector<61x16xf32>
    %122 = vector.broadcast %119 : vector<1x16xf32> to vector<61x16xf32>
    %123 = arith.addf %121, %122 : vector<61x16xf32>
    %124 = vector.broadcast %117 : vector<1x16xf32> to vector<61x16xf32>
    %125 = arith.mulf %91, %124 : vector<61x16xf32>
    %126 = vector.broadcast %119 : vector<1x16xf32> to vector<61x16xf32>
    %127 = arith.addf %125, %126 : vector<61x16xf32>
    %128 = vector.extract_strided_slice %123 {offsets = [0, 0], sizes = [60, 16], strides = [1, 1]} : vector<61x16xf32> to vector<60x16xf32>
    %129 = vector.shape_cast %128 : vector<60x16xf32> to vector<15x4x16xf32>
    %cst_46 = arith.constant dense<0xFF800000> : vector<15x16xf32>
    %130 = vector.multi_reduction <maximumf>, %129, %cst_46 [1] : vector<15x4x16xf32> to vector<15x16xf32>
    %cst_47 = arith.constant 0.000000e+00 : f32
    %131 = vector.broadcast %cst_47 : f32 to vector<15x16xf32>
    %132 = arith.maximumf %130, %131 : vector<15x16xf32>
    %133 = vector.extract_strided_slice %127 {offsets = [0, 0], sizes = [60, 16], strides = [1, 1]} : vector<61x16xf32> to vector<60x16xf32>
    %134 = vector.shape_cast %133 : vector<60x16xf32> to vector<15x4x16xf32>
    %cst_48 = arith.constant dense<0xFF800000> : vector<15x16xf32>
    %135 = vector.multi_reduction <maximumf>, %134, %cst_48 [1] : vector<15x4x16xf32> to vector<15x16xf32>
    %cst_49 = arith.constant 0.000000e+00 : f32
    %136 = vector.broadcast %cst_49 : f32 to vector<15x16xf32>
    %137 = arith.maximumf %135, %136 : vector<15x16xf32>
    %138 = vector.extract_strided_slice %132 {offsets = [0, 0], sizes = [13, 16], strides = [1, 1]} : vector<15x16xf32> to vector<13x16xf32>
    %139 = vector.extract_strided_slice %132 {offsets = [1, 0], sizes = [13, 16], strides = [1, 1]} : vector<15x16xf32> to vector<13x16xf32>
    %140 = vector.extract_strided_slice %132 {offsets = [2, 0], sizes = [13, 16], strides = [1, 1]} : vector<15x16xf32> to vector<13x16xf32>
    %141 = tpu.concatenate %138, %139, %140 in 1 : vector<13x16xf32>, vector<13x16xf32>, vector<13x16xf32> -> vector<13x48xf32>
    %cst_50 = arith.constant dense<0.000000e+00> : vector<13x32xf32>
    %142 = tpu.matmul %141, %2, %cst_50 {dimension_numbers = #tpu.dot_dimension_numbers<[1], [0], [0], [1], [0, 0, 1, 1], [], []>} : vector<13x48xf32>, vector<48x32xf32>, vector<13x32xf32> -> vector<13x32xf32>
    %143 = vector.broadcast %9 : vector<1x32xf32> to vector<13x32xf32>
    %144 = arith.addf %142, %143 : vector<13x32xf32>
    %145 = vector.extract_strided_slice %137 {offsets = [0, 0], sizes = [13, 16], strides = [1, 1]} : vector<15x16xf32> to vector<13x16xf32>
    %146 = vector.extract_strided_slice %137 {offsets = [1, 0], sizes = [13, 16], strides = [1, 1]} : vector<15x16xf32> to vector<13x16xf32>
    %147 = vector.extract_strided_slice %137 {offsets = [2, 0], sizes = [13, 16], strides = [1, 1]} : vector<15x16xf32> to vector<13x16xf32>
    %148 = tpu.concatenate %145, %146, %147 in 1 : vector<13x16xf32>, vector<13x16xf32>, vector<13x16xf32> -> vector<13x48xf32>
    %cst_51 = arith.constant dense<0.000000e+00> : vector<13x32xf32>
    %149 = tpu.matmul %148, %2, %cst_51 {dimension_numbers = #tpu.dot_dimension_numbers<[1], [0], [0], [1], [0, 0, 1, 1], [], []>} : vector<13x48xf32>, vector<48x32xf32>, vector<13x32xf32> -> vector<13x32xf32>
    %150 = vector.broadcast %9 : vector<1x32xf32> to vector<13x32xf32>
    %151 = arith.addf %149, %150 : vector<13x32xf32>
    %cst_52 = arith.constant 0.000000e+00 : f32
    %152 = vector.broadcast %cst_52 : f32 to vector<1x32xf32>
    %cst_53 = arith.constant 0.000000e+00 : f32
    %153 = vector.broadcast %cst_53 : f32 to vector<1x32xf32>
    %cst_54 = arith.constant dense<0.000000e+00> : vector<32xf32>
    %154 = vector.multi_reduction <add>, %144, %cst_54 [0] : vector<13x32xf32> to vector<32xf32>
    %155 = vector.shape_cast %154 : vector<32xf32> to vector<1x32xf32>
    %156 = arith.addf %152, %155 : vector<1x32xf32>
    %157 = arith.mulf %144, %144 : vector<13x32xf32>
    %cst_55 = arith.constant dense<0.000000e+00> : vector<32xf32>
    %158 = vector.multi_reduction <add>, %157, %cst_55 [0] : vector<13x32xf32> to vector<32xf32>
    %159 = vector.shape_cast %158 : vector<32xf32> to vector<1x32xf32>
    %160 = arith.addf %153, %159 : vector<1x32xf32>
    %cst_56 = arith.constant dense<0.000000e+00> : vector<32xf32>
    %161 = vector.multi_reduction <add>, %151, %cst_56 [0] : vector<13x32xf32> to vector<32xf32>
    %162 = vector.shape_cast %161 : vector<32xf32> to vector<1x32xf32>
    %163 = arith.addf %156, %162 : vector<1x32xf32>
    %164 = arith.mulf %151, %151 : vector<13x32xf32>
    %cst_57 = arith.constant dense<0.000000e+00> : vector<32xf32>
    %165 = vector.multi_reduction <add>, %164, %cst_57 [0] : vector<13x32xf32> to vector<32xf32>
    %166 = vector.shape_cast %165 : vector<32xf32> to vector<1x32xf32>
    %167 = arith.addf %160, %166 : vector<1x32xf32>
    %cst_58 = arith.constant 0.0384615399 : f32
    %168 = vector.broadcast %cst_58 : f32 to vector<1x32xf32>
    %169 = arith.mulf %163, %168 : vector<1x32xf32>
    %cst_59 = arith.constant 0.0384615399 : f32
    %170 = vector.broadcast %cst_59 : f32 to vector<1x32xf32>
    %171 = arith.mulf %167, %170 : vector<1x32xf32>
    %172 = arith.mulf %169, %169 : vector<1x32xf32>
    %173 = arith.subf %171, %172 : vector<1x32xf32>
    %cst_60 = arith.constant 9.99999974E-6 : f32
    %174 = vector.broadcast %cst_60 : f32 to vector<1x32xf32>
    %175 = arith.addf %173, %174 : vector<1x32xf32>
    %176 = math.rsqrt %175 : vector<1x32xf32>
    %177 = arith.mulf %10, %176 : vector<1x32xf32>
    %178 = arith.mulf %169, %177 : vector<1x32xf32>
    %179 = arith.subf %11, %178 : vector<1x32xf32>
    %180 = vector.broadcast %177 : vector<1x32xf32> to vector<13x32xf32>
    %181 = arith.mulf %144, %180 : vector<13x32xf32>
    %182 = vector.broadcast %179 : vector<1x32xf32> to vector<13x32xf32>
    %183 = arith.addf %181, %182 : vector<13x32xf32>
    %184 = vector.broadcast %177 : vector<1x32xf32> to vector<13x32xf32>
    %185 = arith.mulf %151, %184 : vector<13x32xf32>
    %186 = vector.broadcast %179 : vector<1x32xf32> to vector<13x32xf32>
    %187 = arith.addf %185, %186 : vector<13x32xf32>
    %188 = vector.extract_strided_slice %183 {offsets = [0, 0], sizes = [12, 32], strides = [1, 1]} : vector<13x32xf32> to vector<12x32xf32>
    %189 = vector.shape_cast %188 : vector<12x32xf32> to vector<3x4x32xf32>
    %cst_61 = arith.constant dense<0xFF800000> : vector<3x32xf32>
    %190 = vector.multi_reduction <maximumf>, %189, %cst_61 [1] : vector<3x4x32xf32> to vector<3x32xf32>
    %cst_62 = arith.constant 0.000000e+00 : f32
    %191 = vector.broadcast %cst_62 : f32 to vector<3x32xf32>
    %192 = arith.maximumf %190, %191 : vector<3x32xf32>
    %193 = vector.extract_strided_slice %187 {offsets = [0, 0], sizes = [12, 32], strides = [1, 1]} : vector<13x32xf32> to vector<12x32xf32>
    %194 = vector.shape_cast %193 : vector<12x32xf32> to vector<3x4x32xf32>
    %cst_63 = arith.constant dense<0xFF800000> : vector<3x32xf32>
    %195 = vector.multi_reduction <maximumf>, %194, %cst_63 [1] : vector<3x4x32xf32> to vector<3x32xf32>
    %cst_64 = arith.constant 0.000000e+00 : f32
    %196 = vector.broadcast %cst_64 : f32 to vector<3x32xf32>
    %197 = arith.maximumf %195, %196 : vector<3x32xf32>
    %198 = arith.mulf %192, %12 : vector<3x32xf32>
    %cst_65 = arith.constant dense<0.000000e+00> : vector<3xf32>
    %199 = vector.multi_reduction <add>, %198, %cst_65 [1] : vector<3x32xf32> to vector<3xf32>
    %200 = vector.shape_cast %199 : vector<3xf32> to vector<3x1xf32>
    %cst_66 = arith.constant dense<0.000000e+00> : vector<1xf32>
    %201 = vector.multi_reduction <add>, %200, %cst_66 [0] : vector<3x1xf32> to vector<1xf32>
    %202 = vector.shape_cast %201 : vector<1xf32> to vector<1x1xf32>
    %203 = arith.addf %202, %13 : vector<1x1xf32>
    %c0_67 = arith.constant 0 : index
    %c0_68 = arith.constant 0 : index
    %204 = vector.load %arg3[%c0_67, %c0_68] : memref<2x1xf32, #tpu.memory_space<vmem>>, vector<1x1xf32>
    tpu.vector_store %arg3[%c0_67, %c0_68], %203 {strides = array<i32>} : memref<2x1xf32, #tpu.memory_space<vmem>>, vector<1x1xf32>,
    %205 = arith.mulf %197, %12 : vector<3x32xf32>
    %cst_69 = arith.constant dense<0.000000e+00> : vector<3xf32>
    %206 = vector.multi_reduction <add>, %205, %cst_69 [1] : vector<3x32xf32> to vector<3xf32>
    %207 = vector.shape_cast %206 : vector<3xf32> to vector<3x1xf32>
    %cst_70 = arith.constant dense<0.000000e+00> : vector<1xf32>
    %208 = vector.multi_reduction <add>, %207, %cst_70 [0] : vector<3x1xf32> to vector<1xf32>
    %209 = vector.shape_cast %208 : vector<1xf32> to vector<1x1xf32>
    %210 = arith.addf %209, %13 : vector<1x1xf32>
    %c1_71 = arith.constant 1 : index
    %c0_72 = arith.constant 0 : index
    %211 = vector.load %arg3[%c1_71, %c0_72] : memref<2x1xf32, #tpu.memory_space<vmem>>, vector<1x1xf32>
    tpu.vector_store %arg3[%c1_71, %c0_72], %210 {strides = array<i32>} : memref<2x1xf32, #tpu.memory_space<vmem>>, vector<1x1xf32>,
    return
  }
}

</mosaic_0001>

<llo_original>
// kernel: cnn_forward.1
$region0: #{cnn_forward.1}
  #allocation0 [shape = 'u32[]', space=smem, size = 0x4, offset = 0x4, fixed_abs, tag = 'smem constant byte address 0x4 - core index']
  #allocation1 [shape = 'u32[144,128]{1,0:T(1,128)}', space=vmem, size = 0x12000, scoped, tag = 'internal scratch']
  %s0 = inlined_call_operand.vmem [shape: f32[2,256,4], index: 0, kind: input, shape index: {}]
  %s1 = inlined_call_operand.vmem [shape: f32[88,32], index: 1, kind: input, shape index: {}]
  %s2 = inlined_call_operand.vmem [shape: f32[16,32], index: 2, kind: input, shape index: {}]
  %s3 = inlined_call_operand.vmem [shape: f32[2,1], index: 3, kind: output, shape index: {}]
  %s4 = sld [smem:[#allocation0]]
  $region22: #{cnn_forward.1} parent=0
    _
  %s6 = ssub.s32 1, %s4
  %s7 = scalar_select 0, %s6, %s4
  // Predicated region
  $region2: #{cnn_forward.1} parent=0 // pred_check
    _
  $region3: #{cnn_forward.1} parent=0 // pred_check_branch
    %9 = sbr.rel (0) target = $region5
  $region4: #{cnn_forward.1} parent=0 // pred_region
    _
  $region5: #{cnn_forward.1} parent=0 // pred_fallthru
    _
  // Predicated region
  $region6: #{cnn_forward.1} parent=0 // pred_check
    _
  $region7: #{cnn_forward.1} parent=0 // pred_check_branch
    %11 = sbr.rel (0) target = $region9
  $region8: #{cnn_forward.1} parent=0 // pred_region
    _
  $region9: #{cnn_forward.1} parent=0 // pred_fallthru
    _
  // Predicated region
  $region10: #{cnn_forward.1} parent=0 // pred_check
    _
  $region11: #{cnn_forward.1} parent=0 // pred_check_branch
    %13 = sbr.rel (0) target = $region13
  $region12: #{cnn_forward.1} parent=0 // pred_region
    _
  $region13: #{cnn_forward.1} parent=0 // pred_fallthru
    _
  %v14 = vld [vmem:[%s1] sm:$0xff]
  %v15 = vld [vmem:[%s1 + $0x8] sm:$0xf]
  %v16 = vld [vmem:[%s1 + $0x10] sm:$0xff]
  %v17 = vld [vmem:[%s1 + $0x18] sm:$0xff]
  %v18 = vld [vmem:[%s1 + $0x20] sm:$0xff]
  %v19 = vld [vmem:[%s1 + $0x28] sm:$0xff]
  %v20 = vld [vmem:[%s1 + $0x30] sm:$0xff]
  %v21 = vld [vmem:[%s1 + $0x38] sm:$0xff]
  %v22 = vld [vmem:[%s1 + $0x40] sm:$0xff]
  %v23 = vld [vmem:[%s1 + $0x48] sm:$0xff]
  %v24 = vld [vmem:[%s1 + $0x50] sm:$0xff]
  %v25 = vld [vmem:[%s2] sm:$0x1]
  %v26 = vld [vmem:[%s2 + $0x1] sm:$0x1]
  %v27 = vld [vmem:[%s2 + $0x2] sm:$0x1]
  %v28 = vld [vmem:[%s2 + $0x3] sm:$0x1]
  %v29 = vld [vmem:[%s2 + $0x4] sm:$0x1]
  %v30 = vld [vmem:[%s2 + $0x5] sm:$0x1]
  %v31 = vld [vmem:[%s2 + $0x6] sm:$0x1]
  %v32 = vld [vmem:[%s2 + $0x7] sm:$0x1]
  %v33 = vld [vmem:[%s2 + $0x8] sm:$0x1]
  %v34 = vld [vmem:[%s2 + $0x9] sm:$0x7]
  %v35 = vld [vmem:[%s2 + $0xc] sm:$0x1]
  %v36 = vld [vmem:[%s0] sm:$0xff]
  %v37 = vld [vmem:[%s0 + $0x8] sm:$0xff]
  %v38 = vld [vmem:[%s0 + $0x10] sm:$0xff]
  %v39 = vld [vmem:[%s0 + $0x18] sm:$0xff]
  %v40 = vld [vmem:[%s0 + $0x20] sm:$0xff]
  %v41 = vld [vmem:[%s0 + $0x28] sm:$0xff]
  %v42 = vld [vmem:[%s0 + $0x30] sm:$0xff]
  %v43 = vld [vmem:[%s0 + $0x38] sm:$0xff]
  %v44 = vld [vmem:[%s0 + $0x40] sm:$0xff]
  %v45 = vld [vmem:[%s0 + $0x48] sm:$0xff]
  %v46 = vld [vmem:[%s0 + $0x50] sm:$0xff]
  %v47 = vld [vmem:[%s0 + $0x58] sm:$0xff]
  %v48 = vld [vmem:[%s0 + $0x60] sm:$0xff]
  %v49 = vld [vmem:[%s0 + $0x68] sm:$0xff]
  %v50 = vld [vmem:[%s0 + $0x70] sm:$0xff]
  %v51 = vld [vmem:[%s0 + $0x78] sm:$0xff]
  %v52 = vld [vmem:[%s0 + $0x80] sm:$0xff]
  %v53 = vld [vmem:[%s0 + $0x88] sm:$0xff]
  %v54 = vld [vmem:[%s0 + $0x90] sm:$0xff]
  %v55 = vld [vmem:[%s0 + $0x98] sm:$0xff]
  %v56 = vld [vmem:[%s0 + $0xa0] sm:$0xff]
  %v57 = vld [vmem:[%s0 + $0xa8] sm:$0xff]
  %v58 = vld [vmem:[%s0 + $0xb0] sm:$0xff]
  %v59 = vld [vmem:[%s0 + $0xb8] sm:$0xff]
  %v60 = vld [vmem:[%s0 + $0xc0] sm:$0xff]
  %v61 = vld [vmem:[%s0 + $0xc8] sm:$0xff]
  %v62 = vld [vmem:[%s0 + $0xd0] sm:$0xff]
  %v63 = vld [vmem:[%s0 + $0xd8] sm:$0xff]
  %v64 = vld [vmem:[%s0 + $0xe0] sm:$0xff]
  %v65 = vld [vmem:[%s0 + $0xe8] sm:$0xff]
  %v66 = vld [vmem:[%s0 + $0xf0] sm:$0xff]
  %v67 = vld [vmem:[%s0 + $0xf8] sm:$0xff]
  %s68 = scalar_lea.vmem %s0, 256
  %v69 = vld [vmem:[%s68] sm:$0xff]
  %v70 = vld [vmem:[%s68 + $0x8] sm:$0xff]
  %v71 = vld [vmem:[%s68 + $0x10] sm:$0xff]
  %v72 = vld [vmem:[%s68 + $0x18] sm:$0xff]
  %v73 = vld [vmem:[%s68 + $0x20] sm:$0xff]
  %v74 = vld [vmem:[%s68 + $0x28] sm:$0xff]
  %v75 = vld [vmem:[%s68 + $0x30] sm:$0xff]
  %v76 = vld [vmem:[%s68 + $0x38] sm:$0xff]
  %v77 = vld [vmem:[%s68 + $0x40] sm:$0xff]
  %v78 = vld [vmem:[%s68 + $0x48] sm:$0xff]
  %v79 = vld [vmem:[%s68 + $0x50] sm:$0xff]
  %v80 = vld [vmem:[%s68 + $0x58] sm:$0xff]
  %v81 = vld [vmem:[%s68 + $0x60] sm:$0xff]
  %v82 = vld [vmem:[%s68 + $0x68] sm:$0xff]
  %v83 = vld [vmem:[%s68 + $0x70] sm:$0xff]
  %v84 = vld [vmem:[%s68 + $0x78] sm:$0xff]
  %v85 = vld [vmem:[%s68 + $0x80] sm:$0xff]
  %v86 = vld [vmem:[%s68 + $0x88] sm:$0xff]
  %v87 = vld [vmem:[%s68 + $0x90] sm:$0xff]
  %v88 = vld [vmem:[%s68 + $0x98] sm:$0xff]
  %v89 = vld [vmem:[%s68 + $0xa0] sm:$0xff]
  %v90 = vld [vmem:[%s68 + $0xa8] sm:$0xff]
  %v91 = vld [vmem:[%s68 + $0xb0] sm:$0xff]
  %v92 = vld [vmem:[%s68 + $0xb8] sm:$0xff]
  %v93 = vld [vmem:[%s68 + $0xc0] sm:$0xff]
  %v94 = vld [vmem:[%s68 + $0xc8] sm:$0xff]
  %v95 = vld [vmem:[%s68 + $0xd0] sm:$0xff]
  %v96 = vld [vmem:[%s68 + $0xd8] sm:$0xff]
  %v97 = vld [vmem:[%s68 + $0xe0] sm:$0xff]
  %v98 = vld [vmem:[%s68 + $0xe8] sm:$0xff]
  %v99 = vld [vmem:[%s68 + $0xf0] sm:$0xff]
  %v100 = vld [vmem:[%s68 + $0xf8] sm:$0xff]
  %vm133 = vcmask 1046528
  %v134 = vrot.slane %v36, 1
  %v135 = vrot.slane %v37, 1
  %v136 = vsel %vm133, %v134, %v135
  %v137 = vrot.slane %v38, 1
  %v138 = vsel %vm133, %v135, %v137
  %v139 = vrot.slane %v39, 1
  %v140 = vsel %vm133, %v137, %v139
  %v141 = vrot.slane %v40, 1
  %v142 = vsel %vm133, %v139, %v141
  %v143 = vrot.slane %v41, 1
  %v144 = vsel %vm133, %v141, %v143
  %v145 = vrot.slane %v42, 1
  %v146 = vsel %vm133, %v143, %v145
  %v147 = vrot.slane %v43, 1
  %v148 = vsel %vm133, %v145, %v147
  %v149 = vrot.slane %v44, 1
  %v150 = vsel %vm133, %v147, %v149
  %v151 = vrot.slane %v45, 1
  %v152 = vsel %vm133, %v149, %v151
  %v153 = vrot.slane %v46, 1
  %v154 = vsel %vm133, %v151, %v153
  %v155 = vrot.slane %v47, 1
  %v156 = vsel %vm133, %v153, %v155
  %v157 = vrot.slane %v48, 1
  %v158 = vsel %vm133, %v155, %v157
  %v159 = vrot.slane %v49, 1
  %v160 = vsel %vm133, %v157, %v159
  %v161 = vrot.slane %v50, 1
  %v162 = vsel %vm133, %v159, %v161
  %v163 = vrot.slane %v51, 1
  %v164 = vsel %vm133, %v161, %v163
  %v165 = vrot.slane %v52, 1
  %v166 = vsel %vm133, %v163, %v165
  %v167 = vrot.slane %v53, 1
  %v168 = vsel %vm133, %v165, %v167
  %v169 = vrot.slane %v54, 1
  %v170 = vsel %vm133, %v167, %v169
  %v171 = vrot.slane %v55, 1
  %v172 = vsel %vm133, %v169, %v171
  %v173 = vrot.slane %v56, 1
  %v174 = vsel %vm133, %v171, %v173
  %v175 = vrot.slane %v57, 1
  %v176 = vsel %vm133, %v173, %v175
  %v177 = vrot.slane %v58, 1
  %v178 = vsel %vm133, %v175, %v177
  %v179 = vrot.slane %v59, 1
  %v180 = vsel %vm133, %v177, %v179
  %v181 = vrot.slane %v60, 1
  %v182 = vsel %vm133, %v179, %v181
  %v183 = vrot.slane %v61, 1
  %v184 = vsel %vm133, %v181, %v183
  %v185 = vrot.slane %v62, 1
  %v186 = vsel %vm133, %v183, %v185
  %v187 = vrot.slane %v63, 1
  %v188 = vsel %vm133, %v185, %v187
  %v189 = vrot.slane %v64, 1
  %v190 = vsel %vm133, %v187, %v189
  %v191 = vrot.slane %v65, 1
  %v192 = vsel %vm133, %v189, %v191
  %v193 = vrot.slane %v66, 1
  %v194 = vsel %vm133, %v191, %v193
  %v195 = vrot.slane %v67, 1
  %v196 = vsel %vm133, %v193, %v195
  %197 = vrot.lane.b32.xlu0 %v136, 4
  %v198 = vpop.permute.xlu0 %197
  %199 = vrot.lane.b32.xlu0 %v138, 4
  %v200 = vpop.permute.xlu0 %199
  %201 = vrot.lane.b32.xlu0 %v140, 4
  %v202 = vpop.permute.xlu0 %201
  %203 = vrot.lane.b32.xlu0 %v142, 4
  %v204 = vpop.permute.xlu0 %203
  %205 = vrot.lane.b32.xlu0 %v144, 4
  %v206 = vpop.permute.xlu0 %205
  %207 = vrot.lane.b32.xlu0 %v146, 4
  %v208 = vpop.permute.xlu0 %207
  %209 = vrot.lane.b32.xlu0 %v148, 4
  %v210 = vpop.permute.xlu0 %209
  %211 = vrot.lane.b32.xlu0 %v150, 4
  %v212 = vpop.permute.xlu0 %211
  %213 = vrot.lane.b32.xlu0 %v152, 4
  %v214 = vpop.permute.xlu0 %213
  %215 = vrot.lane.b32.xlu0 %v154, 4
  %v216 = vpop.permute.xlu0 %215
  %217 = vrot.lane.b32.xlu0 %v156, 4
  %v218 = vpop.permute.xlu0 %217
  %219 = vrot.lane.b32.xlu0 %v158, 4
  %v220 = vpop.permute.xlu0 %219
  %221 = vrot.lane.b32.xlu0 %v160, 4
  %v222 = vpop.permute.xlu0 %221
  %223 = vrot.lane.b32.xlu0 %v162, 4
  %v224 = vpop.permute.xlu0 %223
  %225 = vrot.lane.b32.xlu0 %v164, 4
  %v226 = vpop.permute.xlu0 %225
  %227 = vrot.lane.b32.xlu0 %v166, 4
  %v228 = vpop.permute.xlu0 %227
  %229 = vrot.lane.b32.xlu0 %v168, 4
  %v230 = vpop.permute.xlu0 %229
  %231 = vrot.lane.b32.xlu0 %v170, 4
  %v232 = vpop.permute.xlu0 %231
  %233 = vrot.lane.b32.xlu0 %v172, 4
  %v234 = vpop.permute.xlu0 %233
  %235 = vrot.lane.b32.xlu0 %v174, 4
  %v236 = vpop.permute.xlu0 %235
  %237 = vrot.lane.b32.xlu0 %v176, 4
  %v238 = vpop.permute.xlu0 %237
  %239 = vrot.lane.b32.xlu0 %v178, 4
  %v240 = vpop.permute.xlu0 %239
  %241 = vrot.lane.b32.xlu0 %v180, 4
  %v242 = vpop.permute.xlu0 %241
  %243 = vrot.lane.b32.xlu0 %v182, 4
  %v244 = vpop.permute.xlu0 %243
  %245 = vrot.lane.b32.xlu0 %v184, 4
  %v246 = vpop.permute.xlu0 %245
  %247 = vrot.lane.b32.xlu0 %v186, 4
  %v248 = vpop.permute.xlu0 %247
  %249 = vrot.lane.b32.xlu0 %v188, 4
  %v250 = vpop.permute.xlu0 %249
  %251 = vrot.lane.b32.xlu0 %v190, 4
  %v252 = vpop.permute.xlu0 %251
  %253 = vrot.lane.b32.xlu0 %v192, 4
  %v254 = vpop.permute.xlu0 %253
  %255 = vrot.lane.b32.xlu0 %v194, 4
  %v256 = vpop.permute.xlu0 %255
  %257 = vrot.lane.b32.xlu0 %v196, 4
  %v258 = vpop.permute.xlu0 %257
  %259 = vrot.lane.b32.xlu0 %v195, 4
  %v260 = vpop.permute.xlu0 %259
  %vm293 = vcmask 1045504
  %v294 = vrot.slane %v36, 2
  %v295 = vrot.slane %v37, 2
  %v296 = vsel %vm293, %v294, %v295
  %v297 = vrot.slane %v38, 2
  %v298 = vsel %vm293, %v295, %v297
  %v299 = vrot.slane %v39, 2
  %v300 = vsel %vm293, %v297, %v299
  %v301 = vrot.slane %v40, 2
  %v302 = vsel %vm293, %v299, %v301
  %v303 = vrot.slane %v41, 2
  %v304 = vsel %vm293, %v301, %v303
  %v305 = vrot.slane %v42, 2
  %v306 = vsel %vm293, %v303, %v305
  %v307 = vrot.slane %v43, 2
  %v308 = vsel %vm293, %v305, %v307
  %v309 = vrot.slane %v44, 2
  %v310 = vsel %vm293, %v307, %v309
  %v311 = vrot.slane %v45, 2
  %v312 = vsel %vm293, %v309, %v311
  %v313 = vrot.slane %v46, 2
  %v314 = vsel %vm293, %v311, %v313
  %v315 = vrot.slane %v47, 2
  %v316 = vsel %vm293, %v313, %v315
  %v317 = vrot.slane %v48, 2
  %v318 = vsel %vm293, %v315, %v317
  %v319 = vrot.slane %v49, 2
  %v320 = vsel %vm293, %v317, %v319
  %v321 = vrot.slane %v50, 2
  %v322 = vsel %vm293, %v319, %v321
  %v323 = vrot.slane %v51, 2
  %v324 = vsel %vm293, %v321, %v323
  %v325 = vrot.slane %v52, 2
  %v326 = vsel %vm293, %v323, %v325
  %v327 = vrot.slane %v53, 2
  %v328 = vsel %vm293, %v325, %v327
  %v329 = vrot.slane %v54, 2
  %v330 = vsel %vm293, %v327, %v329
  %v331 = vrot.slane %v55, 2
  %v332 = vsel %vm293, %v329, %v331
  %v333 = vrot.slane %v56, 2
  %v334 = vsel %vm293, %v331, %v333
  %v335 = vrot.slane %v57, 2
  %v336 = vsel %vm293, %v333, %v335
  %v337 = vrot.slane %v58, 2
  %v338 = vsel %vm293, %v335, %v337
  %v339 = vrot.slane %v59, 2
  %v340 = vsel %vm293, %v337, %v339
  %v341 = vrot.slane %v60, 2
  %v342 = vsel %vm293, %v339, %v341
  %v343 = vrot.slane %v61, 2
  %v344 = vsel %vm293, %v341, %v343
  %v345 = vrot.slane %v62, 2
  %v346 = vsel %vm293, %v343, %v345
  %v347 = vrot.slane %v63, 2
  %v348 = vsel %vm293, %v345, %v347
  %v349 = vrot.slane %v64, 2
  %v350 = vsel %vm293, %v347, %v349
  %v351 = vrot.slane %v65, 2
  %v352 = vsel %vm293, %v349, %v351
  %v353 = vrot.slane %v66, 2
  %v354 = vsel %vm293, %v351, %v353
  %v355 = vrot.slane %v67, 2
  %v356 = vsel %vm293, %v353, %v355
  %357 = vrot.lane.b32.xlu0 %v296, 8
  %v358 = vpop.permute.xlu0 %357
  %359 = vrot.lane.b32.xlu0 %v298, 8
  %v360 = vpop.permute.xlu0 %359
  %361 = vrot.lane.b32.xlu0 %v300, 8
  %v362 = vpop.permute.xlu0 %361
  %363 = vrot.lane.b32.xlu0 %v302, 8
  %v364 = vpop.permute.xlu0 %363
  %365 = vrot.lane.b32.xlu0 %v304, 8
  %v366 = vpop.permute.xlu0 %365
  %367 = vrot.lane.b32.xlu0 %v306, 8
  %v368 = vpop.permute.xlu0 %367
  %369 = vrot.lane.b32.xlu0 %v308, 8
  %v370 = vpop.permute.xlu0 %369
  %371 = vrot.lane.b32.xlu0 %v310, 8
  %v372 = vpop.permute.xlu0 %371
  %373 = vrot.lane.b32.xlu0 %v312, 8
  %v374 = vpop.permute.xlu0 %373
  %375 = vrot.lane.b32.xlu0 %v314, 8
  %v376 = vpop.permute.xlu0 %375
  %377 = vrot.lane.b32.xlu0 %v316, 8
  %v378 = vpop.permute.xlu0 %377
  %379 = vrot.lane.b32.xlu0 %v318, 8
  %v380 = vpop.permute.xlu0 %379
  %381 = vrot.lane.b32.xlu0 %v320, 8
  %v382 = vpop.permute.xlu0 %381
  %383 = vrot.lane.b32.xlu0 %v322, 8
  %v384 = vpop.permute.xlu0 %383
  %385 = vrot.lane.b32.xlu0 %v324, 8
  %v386 = vpop.permute.xlu0 %385
  %387 = vrot.lane.b32.xlu0 %v326, 8
  %v388 = vpop.permute.xlu0 %387
  %389 = vrot.lane.b32.xlu0 %v328, 8
  %v390 = vpop.permute.xlu0 %389
  %391 = vrot.lane.b32.xlu0 %v330, 8
  %v392 = vpop.permute.xlu0 %391
  %393 = vrot.lane.b32.xlu0 %v332, 8
  %v394 = vpop.permute.xlu0 %393
  %395 = vrot.lane.b32.xlu0 %v334, 8
  %v396 = vpop.permute.xlu0 %395
  %397 = vrot.lane.b32.xlu0 %v336, 8
  %v398 = vpop.permute.xlu0 %397
  %399 = vrot.lane.b32.xlu0 %v338, 8
  %v400 = vpop.permute.xlu0 %399
  %401 = vrot.lane.b32.xlu0 %v340, 8
  %v402 = vpop.permute.xlu0 %401
  %403 = vrot.lane.b32.xlu0 %v342, 8
  %v404 = vpop.permute.xlu0 %403
  %405 = vrot.lane.b32.xlu0 %v344, 8
  %v406 = vpop.permute.xlu0 %405
  %407 = vrot.lane.b32.xlu0 %v346, 8
  %v408 = vpop.permute.xlu0 %407
  %409 = vrot.lane.b32.xlu0 %v348, 8
  %v410 = vpop.permute.xlu0 %409
  %411 = vrot.lane.b32.xlu0 %v350, 8
  %v412 = vpop.permute.xlu0 %411
  %413 = vrot.lane.b32.xlu0 %v352, 8
  %v414 = vpop.permute.xlu0 %413
  %415 = vrot.lane.b32.xlu0 %v354, 8
  %v416 = vpop.permute.xlu0 %415
  %417 = vrot.lane.b32.xlu0 %v356, 8
  %v418 = vpop.permute.xlu0 %417
  %419 = vrot.lane.b32.xlu0 %v355, 8
  %v420 = vpop.permute.xlu0 %419
  %vm453 = vcmask 31744
  %v454 = vsel %vm453, %v36, %v198
  %v455 = vsel %vm453, %v37, %v200
  %v456 = vsel %vm453, %v38, %v202
  %v457 = vsel %vm453, %v39, %v204
  %v458 = vsel %vm453, %v40, %v206
  %v459 = vsel %vm453, %v41, %v208
  %v460 = vsel %vm453, %v42, %v210
  %v461 = vsel %vm453, %v43, %v212
  %v462 = vsel %vm453, %v44, %v214
  %v463 = vsel %vm453, %v45, %v216
  %v464 = vsel %vm453, %v46, %v218
  %v465 = vsel %vm453, %v47, %v220
  %v466 = vsel %vm453, %v48, %v222
  %v467 = vsel %vm453, %v49, %v224
  %v468 = vsel %vm453, %v50, %v226
  %v469 = vsel %vm453, %v51, %v228
  %v470 = vsel %vm453, %v52, %v230
  %v471 = vsel %vm453, %v53, %v232
  %v472 = vsel %vm453, %v54, %v234
  %v473 = vsel %vm453, %v55, %v236
  %v474 = vsel %vm453, %v56, %v238
  %v475 = vsel %vm453, %v57, %v240
  %v476 = vsel %vm453, %v58, %v242
  %v477 = vsel %vm453, %v59, %v244
  %v478 = vsel %vm453, %v60, %v246
  %v479 = vsel %vm453, %v61, %v248
  %v480 = vsel %vm453, %v62, %v250
  %v481 = vsel %vm453, %v63, %v252
  %v482 = vsel %vm453, %v64, %v254
  %v483 = vsel %vm453, %v65, %v256
  %v484 = vsel %vm453, %v66, %v258
  %v485 = vsel %vm453, %v67, %v260
  %vm486 = vcmask 64512
  %v487 = vsel %vm486, %v454, %v358
  %v488 = vsel %vm486, %v455, %v360
  %v489 = vsel %vm486, %v456, %v362
  %v490 = vsel %vm486, %v457, %v364
  %v491 = vsel %vm486, %v458, %v366
  %v492 = vsel %vm486, %v459, %v368
  %v493 = vsel %vm486, %v460, %v370
  %v494 = vsel %vm486, %v461, %v372
  %v495 = vsel %vm486, %v462, %v374
  %v496 = vsel %vm486, %v463, %v376
  %v497 = vsel %vm486, %v464, %v378
  %v498 = vsel %vm486, %v465, %v380
  %v499 = vsel %vm486, %v466, %v382
  %v500 = vsel %vm486, %v467, %v384
  %v501 = vsel %vm486, %v468, %v386
  %v502 = vsel %vm486, %v469, %v388
  %v503 = vsel %vm486, %v470, %v390
  %v504 = vsel %vm486, %v471, %v392
  %v505 = vsel %vm486, %v472, %v394
  %v506 = vsel %vm486, %v473, %v396
  %v507 = vsel %vm486, %v474, %v398
  %v508 = vsel %vm486, %v475, %v400
  %v509 = vsel %vm486, %v476, %v402
  %v510 = vsel %vm486, %v477, %v404
  %v511 = vsel %vm486, %v478, %v406
  %v512 = vsel %vm486, %v479, %v408
  %v513 = vsel %vm486, %v480, %v410
  %v514 = vsel %vm486, %v481, %v412
  %v515 = vsel %vm486, %v482, %v414
  %v516 = vsel %vm486, %v483, %v416
  %v517 = vsel %vm486, %v484, %v418
  %v518 = vsel %vm486, %v485, %v420
  %v519 = vlaneseq
  %v520 = vshrl.u32 %v519, 7
  %v521 = vsub.s32 0, %v520
  %v522 = vrot.slane %v25, %v521
  %vm523 = vcmask 97280
  %v525 = vsel %vm523, %v487, 0
  %v528 = vsel %vm523, %v488, 0
  %v531 = vsel %vm523, %v489, 0
  %v534 = vsel %vm523, %v490, 0
  %v537 = vsel %vm523, %v491, 0
  %v540 = vsel %vm523, %v492, 0
  %v543 = vsel %vm523, %v493, 0
  %v546 = vsel %vm523, %v494, 0
  %v549 = vsel %vm523, %v495, 0
  %v552 = vsel %vm523, %v496, 0
  %v555 = vsel %vm523, %v497, 0
  %v558 = vsel %vm523, %v498, 0
  %v561 = vsel %vm523, %v499, 0
  %v564 = vsel %vm523, %v500, 0
  %v567 = vsel %vm523, %v501, 0
  %v570 = vsel %vm523, %v502, 0
  %v573 = vsel %vm523, %v503, 0
  %v576 = vsel %vm523, %v504, 0
  %v579 = vsel %vm523, %v505, 0
  %v582 = vsel %vm523, %v506, 0
  %v585 = vsel %vm523, %v507, 0
  %v588 = vsel %vm523, %v508, 0
  %v591 = vsel %vm523, %v509, 0
  %v594 = vsel %vm523, %v510, 0
  %v597 = vsel %vm523, %v511, 0
  %v600 = vsel %vm523, %v512, 0
  %v603 = vsel %vm523, %v513, 0
  %v606 = vsel %vm523, %v514, 0
  %v609 = vsel %vm523, %v515, 0
  %v612 = vsel %vm523, %v516, 0
  %v615 = vsel %vm523, %v517, 0
  %v618 = vsel %vm523, %v518, 0
  %vm620 = vcmask 1043456
  %v622 = vsel %vm620, %v15, 0
  %624 = vmatprep.subr.mxu0 0.0
  %625 = vmatpush1.msra.mxu0 0.0
  %626 = vmatprep.subr.mxu0 0.0
  %627 = vmatpush1.msra.mxu0 0.0
  %628 = vmatprep.subr.mxu0 0.0
  %629 = vmatpush1.msra.mxu0 0.0
  %630 = vmatprep.subr.mxu0 0.0
  %631 = vmatpush1.msra.mxu0 0.0
  %632 = vmatprep.subr.mxu0 0.0
  %633 = vmatpush1.msra.mxu0 0.0
  %634 = vmatprep.subr.mxu0 0.0
  %635 = vmatpush1.msra.mxu0 0.0
  %636 = vmatprep.subr.mxu0 0.0
  %637 = vmatpush1.msra.mxu0 0.0
  %638 = vmatprep.subr.mxu0 0.0
  %639 = vmatpush1.msra.mxu0 0.0
  %640 = vmatprep.subr.mxu0 0.0
  %641 = vmatpush1.msra.mxu0 0.0
  %642 = vmatprep.subr.mxu0 0.0
  %643 = vmatpush1.msra.mxu0 0.0
  %644 = vmatprep.subr.mxu0 0.0
  %645 = vmatpush1.msra.mxu0 0.0
  %646 = vmatprep.subr.mxu0 0.0
  %647 = vmatpush1.msra.mxu0 0.0
  %648 = vmatprep.subr.mxu0 0.0
  %649 = vmatpush1.msra.mxu0 0.0
  %650 = vmatprep.subr.mxu0 0.0
  %651 = vmatpush1.msra.mxu0 0.0
  %652 = vmatprep.subr.mxu0 0.0
  %653 = vmatpush1.msra.mxu0 %v622
  %654 = vmatprep.subr.mxu0 0.0
  %655 = vmatpush1.msra.mxu0 %v14
  %656 = vmatprep.subr.mxu0 0.0
  %657 = vmatpush2.msra.mxu0 0.0
  %658 = vmatprep.subr.mxu0 0.0
  %659 = vmatpush2.msra.mxu0 0.0
  %660 = vmatprep.subr.mxu0 0.0
  %661 = vmatpush2.msra.mxu0 0.0
  %662 = vmatprep.subr.mxu0 0.0
  %663 = vmatpush2.msra.mxu0 0.0
  %664 = vmatprep.subr.mxu0 0.0
  %665 = vmatpush2.msra.mxu0 0.0
  %666 = vmatprep.subr.mxu0 0.0
  %667 = vmatpush2.msra.mxu0 0.0
  %668 = vmatprep.subr.mxu0 0.0
  %669 = vmatpush2.msra.mxu0 0.0
  %670 = vmatprep.subr.mxu0 0.0
  %671 = vmatpush2.msra.mxu0 0.0
  %672 = vmatprep.subr.mxu0 0.0
  %673 = vmatpush2.msra.mxu0 0.0
  %674 = vmatprep.subr.mxu0 0.0
  %675 = vmatpush2.msra.mxu0 0.0
  %676 = vmatprep.subr.mxu0 0.0
  %677 = vmatpush2.msra.mxu0 0.0
  %678 = vmatprep.subr.mxu0 0.0
  %679 = vmatpush2.msra.mxu0 0.0
  %680 = vmatprep.subr.mxu0 0.0
  %681 = vmatpush2.msra.mxu0 0.0
  %682 = vmatprep.subr.mxu0 0.0
  %683 = vmatpush2.msra.mxu0 0.0
  %684 = vmatprep.subr.mxu0 0.0
  %685 = vmatpush2.msra.mxu0 0.0
  %686 = vmatprep.subr.mxu0 0.0
  %687 = vmatpush2.msra.mxu0 0.0
  %688 = vmatprep.mubr.f32.mxu0 0.0
  %689 = vmatmul.mubr.f32.gmra.mxu0 %v525
  %v690 = vpop.f32.mrf.mxu0
  %v691 = vadd.f32 %v522, %v690
  %v692 = vpop.f32.mrf.mxu0
  %693 = vmatprep.mubr.f32.mxu0 0.0
  %694 = vmatmul.mubr.f32.gmra.mxu0 %v528
  %v695 = vpop.f32.mrf.mxu0
  %v696 = vadd.f32 %v522, %v695
  %v697 = vpop.f32.mrf.mxu0
  %698 = vmatprep.mubr.f32.mxu0 0.0
  %699 = vmatmul.mubr.f32.gmra.mxu0 %v531
  %v700 = vpop.f32.mrf.mxu0
  %v701 = vadd.f32 %v522, %v700
  %v702 = vpop.f32.mrf.mxu0
  %703 = vmatprep.mubr.f32.mxu0 0.0
  %704 = vmatmul.mubr.f32.gmra.mxu0 %v534
  %v705 = vpop.f32.mrf.mxu0
  %v706 = vadd.f32 %v522, %v705
  %v707 = vpop.f32.mrf.mxu0
  %708 = vmatprep.mubr.f32.mxu0 0.0
  %709 = vmatmul.mubr.f32.gmra.mxu0 %v537
  %v710 = vpop.f32.mrf.mxu0
  %v711 = vadd.f32 %v522, %v710
  %v712 = vpop.f32.mrf.mxu0
  %713 = vmatprep.mubr.f32.mxu0 0.0
  %714 = vmatmul.mubr.f32.gmra.mxu0 %v540
  %v715 = vpop.f32.mrf.mxu0
  %v716 = vadd.f32 %v522, %v715
  %v717 = vpop.f32.mrf.mxu0
  %718 = vmatprep.mubr.f32.mxu0 0.0
  %719 = vmatmul.mubr.f32.gmra.mxu0 %v543
  %v720 = vpop.f32.mrf.mxu0
  %v721 = vadd.f32 %v522, %v720
  %v722 = vpop.f32.mrf.mxu0
  %723 = vmatprep.mubr.f32.mxu0 0.0
  %724 = vmatmul.mubr.f32.gmra.mxu0 %v546
  %v725 = vpop.f32.mrf.mxu0
  %v726 = vadd.f32 %v522, %v725
  %v727 = vpop.f32.mrf.mxu0
  %728 = vmatprep.mubr.f32.mxu0 0.0
  %729 = vmatmul.mubr.f32.gmra.mxu0 %v549
  %v730 = vpop.f32.mrf.mxu0
  %v731 = vadd.f32 %v522, %v730
  %v732 = vpop.f32.mrf.mxu0
  %733 = vmatprep.mubr.f32.mxu0 0.0
  %734 = vmatmul.mubr.f32.gmra.mxu0 %v552
  %v735 = vpop.f32.mrf.mxu0
  %v736 = vadd.f32 %v522, %v735
  %v737 = vpop.f32.mrf.mxu0
  %738 = vmatprep.mubr.f32.mxu0 0.0
  %739 = vmatmul.mubr.f32.gmra.mxu0 %v555
  %v740 = vpop.f32.mrf.mxu0
  %v741 = vadd.f32 %v522, %v740
  %v742 = vpop.f32.mrf.mxu0
  %743 = vmatprep.mubr.f32.mxu0 0.0
  %744 = vmatmul.mubr.f32.gmra.mxu0 %v558
  %v745 = vpop.f32.mrf.mxu0
  %v746 = vadd.f32 %v522, %v745
  %v747 = vpop.f32.mrf.mxu0
  %748 = vmatprep.mubr.f32.mxu0 0.0
  %749 = vmatmul.mubr.f32.gmra.mxu0 %v561
  %v750 = vpop.f32.mrf.mxu0
  %v751 = vadd.f32 %v522, %v750
  %v752 = vpop.f32.mrf.mxu0
  %753 = vmatprep.mubr.f32.mxu0 0.0
  %754 = vmatmul.mubr.f32.gmra.mxu0 %v564
  %v755 = vpop.f32.mrf.mxu0
  %v756 = vadd.f32 %v522, %v755
  %v757 = vpop.f32.mrf.mxu0
  %758 = vmatprep.mubr.f32.mxu0 0.0
  %759 = vmatmul.mubr.f32.gmra.mxu0 %v567
  %v760 = vpop.f32.mrf.mxu0
  %v761 = vadd.f32 %v522, %v760
  %v762 = vpop.f32.mrf.mxu0
  %763 = vmatprep.mubr.f32.mxu0 0.0
  %764 = vmatmul.mubr.f32.gmra.mxu0 %v570
  %v765 = vpop.f32.mrf.mxu0
  %v766 = vadd.f32 %v522, %v765
  %v767 = vpop.f32.mrf.mxu0
  %768 = vmatprep.mubr.f32.mxu0 0.0
  %769 = vmatmul.mubr.f32.gmra.mxu0 %v573
  %v770 = vpop.f32.mrf.mxu0
  %v771 = vadd.f32 %v522, %v770
  %v772 = vpop.f32.mrf.mxu0
  %773 = vmatprep.mubr.f32.mxu0 0.0
  %774 = vmatmul.mubr.f32.gmra.mxu0 %v576
  %v775 = vpop.f32.mrf.mxu0
  %v776 = vadd.f32 %v522, %v775
  %v777 = vpop.f32.mrf.mxu0
  %778 = vmatprep.mubr.f32.mxu0 0.0
  %779 = vmatmul.mubr.f32.gmra.mxu0 %v579
  %v780 = vpop.f32.mrf.mxu0
  %v781 = vadd.f32 %v522, %v780
  %v782 = vpop.f32.mrf.mxu0
  %783 = vmatprep.mubr.f32.mxu0 0.0
  %784 = vmatmul.mubr.f32.gmra.mxu0 %v582
  %v785 = vpop.f32.mrf.mxu0
  %v786 = vadd.f32 %v522, %v785
  %v787 = vpop.f32.mrf.mxu0
  %788 = vmatprep.mubr.f32.mxu0 0.0
  %789 = vmatmul.mubr.f32.gmra.mxu0 %v585
  %v790 = vpop.f32.mrf.mxu0
  %v791 = vadd.f32 %v522, %v790
  %v792 = vpop.f32.mrf.mxu0
  %793 = vmatprep.mubr.f32.mxu0 0.0
  %794 = vmatmul.mubr.f32.gmra.mxu0 %v588
  %v795 = vpop.f32.mrf.mxu0
  %v796 = vadd.f32 %v522, %v795
  %v797 = vpop.f32.mrf.mxu0
  %798 = vmatprep.mubr.f32.mxu0 0.0
  %799 = vmatmul.mubr.f32.gmra.mxu0 %v591
  %v800 = vpop.f32.mrf.mxu0
  %v801 = vadd.f32 %v522, %v800
  %v802 = vpop.f32.mrf.mxu0
  %803 = vmatprep.mubr.f32.mxu0 0.0
  %804 = vmatmul.mubr.f32.gmra.mxu0 %v594
  %v805 = vpop.f32.mrf.mxu0
  %v806 = vadd.f32 %v522, %v805
  %v807 = vpop.f32.mrf.mxu0
  %808 = vmatprep.mubr.f32.mxu0 0.0
  %809 = vmatmul.mubr.f32.gmra.mxu0 %v597
  %v810 = vpop.f32.mrf.mxu0
  %v811 = vadd.f32 %v522, %v810
  %v812 = vpop.f32.mrf.mxu0
  %813 = vmatprep.mubr.f32.mxu0 0.0
  %814 = vmatmul.mubr.f32.gmra.mxu0 %v600
  %v815 = vpop.f32.mrf.mxu0
  %v816 = vadd.f32 %v522, %v815
  %v817 = vpop.f32.mrf.mxu0
  %818 = vmatprep.mubr.f32.mxu0 0.0
  %819 = vmatmul.mubr.f32.gmra.mxu0 %v603
  %v820 = vpop.f32.mrf.mxu0
  %v821 = vadd.f32 %v522, %v820
  %v822 = vpop.f32.mrf.mxu0
  %823 = vmatprep.mubr.f32.mxu0 0.0
  %824 = vmatmul.mubr.f32.gmra.mxu0 %v606
  %v825 = vpop.f32.mrf.mxu0
  %v826 = vadd.f32 %v522, %v825
  %v827 = vpop.f32.mrf.mxu0
  %828 = vmatprep.mubr.f32.mxu0 0.0
  %829 = vmatmul.mubr.f32.gmra.mxu0 %v609
  %v830 = vpop.f32.mrf.mxu0
  %v831 = vadd.f32 %v522, %v830
  %v832 = vpop.f32.mrf.mxu0
  %833 = vmatprep.mubr.f32.mxu0 0.0
  %834 = vmatmul.mubr.f32.gmra.mxu0 %v612
  %v835 = vpop.f32.mrf.mxu0
  %v836 = vadd.f32 %v522, %v835
  %v837 = vpop.f32.mrf.mxu0
  %838 = vmatprep.mubr.f32.mxu0 0.0
  %839 = vmatmul.mubr.f32.gmra.mxu0 %v615
  %v840 = vpop.f32.mrf.mxu0
  %v841 = vadd.f32 %v522, %v840
  %v842 = vpop.f32.mrf.mxu0
  %843 = vmatprep.mubr.f32.mxu0 0.0
  %844 = vmatmul.mubr.f32.gmra.mxu0 %v618
  %v845 = vpop.f32.mrf.mxu0
  %v846 = vadd.f32 %v522, %v845
  %v847 = vpop.f32.mrf.mxu0
  %848 = vdwg.mxu0
  %v881 = vrot.slane %v69, 1
  %v882 = vrot.slane %v70, 1
  %v883 = vsel %vm133, %v881, %v882
  %v884 = vrot.slane %v71, 1
  %v885 = vsel %vm133, %v882, %v884
  %v886 = vrot.slane %v72, 1
  %v887 = vsel %vm133, %v884, %v886
  %v888 = vrot.slane %v73, 1
  %v889 = vsel %vm133, %v886, %v888
  %v890 = vrot.slane %v74, 1
  %v891 = vsel %vm133, %v888, %v890
  %v892 = vrot.slane %v75, 1
  %v893 = vsel %vm133, %v890, %v892
  %v894 = vrot.slane %v76, 1
  %v895 = vsel %vm133, %v892, %v894
  %v896 = vrot.slane %v77, 1
  %v897 = vsel %vm133, %v894, %v896
  %v898 = vrot.slane %v78, 1
  %v899 = vsel %vm133, %v896, %v898
  %v900 = vrot.slane %v79, 1
  %v901 = vsel %vm133, %v898, %v900
  %v902 = vrot.slane %v80, 1
  %v903 = vsel %vm133, %v900, %v902
  %v904 = vrot.slane %v81, 1
  %v905 = vsel %vm133, %v902, %v904
  %v906 = vrot.slane %v82, 1
  %v907 = vsel %vm133, %v904, %v906
  %v908 = vrot.slane %v83, 1
  %v909 = vsel %vm133, %v906, %v908
  %v910 = vrot.slane %v84, 1
  %v911 = vsel %vm133, %v908, %v910
  %v912 = vrot.slane %v85, 1
  %v913 = vsel %vm133, %v910, %v912
  %v914 = vrot.slane %v86, 1
  %v915 = vsel %vm133, %v912, %v914
  %v916 = vrot.slane %v87, 1
  %v917 = vsel %vm133, %v914, %v916
  %v918 = vrot.slane %v88, 1
  %v919 = vsel %vm133, %v916, %v918
  %v920 = vrot.slane %v89, 1
  %v921 = vsel %vm133, %v918, %v920
  %v922 = vrot.slane %v90, 1
  %v923 = vsel %vm133, %v920, %v922
  %v924 = vrot.slane %v91, 1
  %v925 = vsel %vm133, %v922, %v924
  %v926 = vrot.slane %v92, 1
  %v927 = vsel %vm133, %v924, %v926
  %v928 = vrot.slane %v93, 1
  %v929 = vsel %vm133, %v926, %v928
  %v930 = vrot.slane %v94, 1
  %v931 = vsel %vm133, %v928, %v930
  %v932 = vrot.slane %v95, 1
  %v933 = vsel %vm133, %v930, %v932
  %v934 = vrot.slane %v96, 1
  %v935 = vsel %vm133, %v932, %v934
  %v936 = vrot.slane %v97, 1
  %v937 = vsel %vm133, %v934, %v936
  %v938 = vrot.slane %v98, 1
  %v939 = vsel %vm133, %v936, %v938
  %v940 = vrot.slane %v99, 1
  %v941 = vsel %vm133, %v938, %v940
  %v942 = vrot.slane %v100, 1
  %v943 = vsel %vm133, %v940, %v942
  %944 = vrot.lane.b32.xlu0 %v883, 4
  %v945 = vpop.permute.xlu0 %944
  %946 = vrot.lane.b32.xlu0 %v885, 4
  %v947 = vpop.permute.xlu0 %946
  %948 = vrot.lane.b32.xlu0 %v887, 4
  %v949 = vpop.permute.xlu0 %948
  %950 = vrot.lane.b32.xlu0 %v889, 4
  %v951 = vpop.permute.xlu0 %950
  %952 = vrot.lane.b32.xlu0 %v891, 4
  %v953 = vpop.permute.xlu0 %952
  %954 = vrot.lane.b32.xlu0 %v893, 4
  %v955 = vpop.permute.xlu0 %954
  %956 = vrot.lane.b32.xlu0 %v895, 4
  %v957 = vpop.permute.xlu0 %956
  %958 = vrot.lane.b32.xlu0 %v897, 4
  %v959 = vpop.permute.xlu0 %958
  %960 = vrot.lane.b32.xlu0 %v899, 4
  %v961 = vpop.permute.xlu0 %960
  %962 = vrot.lane.b32.xlu0 %v901, 4
  %v963 = vpop.permute.xlu0 %962
  %964 = vrot.lane.b32.xlu0 %v903, 4
  %v965 = vpop.permute.xlu0 %964
  %966 = vrot.lane.b32.xlu0 %v905, 4
  %v967 = vpop.permute.xlu0 %966
  %968 = vrot.lane.b32.xlu0 %v907, 4
  %v969 = vpop.permute.xlu0 %968
  %970 = vrot.lane.b32.xlu0 %v909, 4
  %v971 = vpop.permute.xlu0 %970
  %972 = vrot.lane.b32.xlu0 %v911, 4
  %v973 = vpop.permute.xlu0 %972
  %974 = vrot.lane.b32.xlu0 %v913, 4
  %v975 = vpop.permute.xlu0 %974
  %976 = vrot.lane.b32.xlu0 %v915, 4
  %v977 = vpop.permute.xlu0 %976
  %978 = vrot.lane.b32.xlu0 %v917, 4
  %v979 = vpop.permute.xlu0 %978
  %980 = vrot.lane.b32.xlu0 %v919, 4
  %v981 = vpop.permute.xlu0 %980
  %982 = vrot.lane.b32.xlu0 %v921, 4
  %v983 = vpop.permute.xlu0 %982
  %984 = vrot.lane.b32.xlu0 %v923, 4
  %v985 = vpop.permute.xlu0 %984
  %986 = vrot.lane.b32.xlu0 %v925, 4
  %v987 = vpop.permute.xlu0 %986
  %988 = vrot.lane.b32.xlu0 %v927, 4
  %v989 = vpop.permute.xlu0 %988
  %990 = vrot.lane.b32.xlu0 %v929, 4
  %v991 = vpop.permute.xlu0 %990
  %992 = vrot.lane.b32.xlu0 %v931, 4
  %v993 = vpop.permute.xlu0 %992
  %994 = vrot.lane.b32.xlu0 %v933, 4
  %v995 = vpop.permute.xlu0 %994
  %996 = vrot.lane.b32.xlu0 %v935, 4
  %v997 = vpop.permute.xlu0 %996
  %998 = vrot.lane.b32.xlu0 %v937, 4
  %v999 = vpop.permute.xlu0 %998
  %1000 = vrot.lane.b32.xlu0 %v939, 4
  %v1001 = vpop.permute.xlu0 %1000
  %1002 = vrot.lane.b32.xlu0 %v941, 4
  %v1003 = vpop.permute.xlu0 %1002
  %1004 = vrot.lane.b32.xlu0 %v943, 4
  %v1005 = vpop.permute.xlu0 %1004
  %1006 = vrot.lane.b32.xlu0 %v942, 4
  %v1007 = vpop.permute.xlu0 %1006
  %v1040 = vrot.slane %v69, 2
  %v1041 = vrot.slane %v70, 2
  %v1042 = vsel %vm293, %v1040, %v1041
  %v1043 = vrot.slane %v71, 2
  %v1044 = vsel %vm293, %v1041, %v1043
  %v1045 = vrot.slane %v72, 2
  %v1046 = vsel %vm293, %v1043, %v1045
  %v1047 = vrot.slane %v73, 2
  %v1048 = vsel %vm293, %v1045, %v1047
  %v1049 = vrot.slane %v74, 2
  %v1050 = vsel %vm293, %v1047, %v1049
  %v1051 = vrot.slane %v75, 2
  %v1052 = vsel %vm293, %v1049, %v1051
  %v1053 = vrot.slane %v76, 2
  %v1054 = vsel %vm293, %v1051, %v1053
  %v1055 = vrot.slane %v77, 2
  %v1056 = vsel %vm293, %v1053, %v1055
  %v1057 = vrot.slane %v78, 2
  %v1058 = vsel %vm293, %v1055, %v1057
  %v1059 = vrot.slane %v79, 2
  %v1060 = vsel %vm293, %v1057, %v1059
  %v1061 = vrot.slane %v80, 2
  %v1062 = vsel %vm293, %v1059, %v1061
  %v1063 = vrot.slane %v81, 2
  %v1064 = vsel %vm293, %v1061, %v1063
  %v1065 = vrot.slane %v82, 2
  %v1066 = vsel %vm293, %v1063, %v1065
  %v1067 = vrot.slane %v83, 2
  %v1068 = vsel %vm293, %v1065, %v1067
  %v1069 = vrot.slane %v84, 2
  %v1070 = vsel %vm293, %v1067, %v1069
  %v1071 = vrot.slane %v85, 2
  %v1072 = vsel %vm293, %v1069, %v1071
  %v1073 = vrot.slane %v86, 2
  %v1074 = vsel %vm293, %v1071, %v1073
  %v1075 = vrot.slane %v87, 2
  %v1076 = vsel %vm293, %v1073, %v1075
  %v1077 = vrot.slane %v88, 2
  %v1078 = vsel %vm293, %v1075, %v1077
  %v1079 = vrot.slane %v89, 2
  %v1080 = vsel %vm293, %v1077, %v1079
  %v1081 = vrot.slane %v90, 2
  %v1082 = vsel %vm293, %v1079, %v1081
  %v1083 = vrot.slane %v91, 2
  %v1084 = vsel %vm293, %v1081, %v1083
  %v1085 = vrot.slane %v92, 2
  %v1086 = vsel %vm293, %v1083, %v1085
  %v1087 = vrot.slane %v93, 2
  %v1088 = vsel %vm293, %v1085, %v1087
  %v1089 = vrot.slane %v94, 2
  %v1090 = vsel %vm293, %v1087, %v1089
  %v1091 = vrot.slane %v95, 2
  %v1092 = vsel %vm293, %v1089, %v1091
  %v1093 = vrot.slane %v96, 2
  %v1094 = vsel %vm293, %v1091, %v1093
  %v1095 = vrot.slane %v97, 2
  %v1096 = vsel %vm293, %v1093, %v1095
  %v1097 = vrot.slane %v98, 2
  %v1098 = vsel %vm293, %v1095, %v1097
  %v1099 = vrot.slane %v99, 2
  %v1100 = vsel %vm293, %v1097, %v1099
  %v1101 = vrot.slane %v100, 2
  %v1102 = vsel %vm293, %v1099, %v1101
  %1103 = vrot.lane.b32.xlu0 %v1042, 8
  %v1104 = vpop.permute.xlu0 %1103
  %1105 = vrot.lane.b32.xlu0 %v1044, 8
  %v1106 = vpop.permute.xlu0 %1105
  %1107 = vrot.lane.b32.xlu0 %v1046, 8
  %v1108 = vpop.permute.xlu0 %1107
  %1109 = vrot.lane.b32.xlu0 %v1048, 8
  %v1110 = vpop.permute.xlu0 %1109
  %1111 = vrot.lane.b32.xlu0 %v1050, 8
  %v1112 = vpop.permute.xlu0 %1111
  %1113 = vrot.lane.b32.xlu0 %v1052, 8
  %v1114 = vpop.permute.xlu0 %1113
  %1115 = vrot.lane.b32.xlu0 %v1054, 8
  %v1116 = vpop.permute.xlu0 %1115
  %1117 = vrot.lane.b32.xlu0 %v1056, 8
  %v1118 = vpop.permute.xlu0 %1117
  %1119 = vrot.lane.b32.xlu0 %v1058, 8
  %v1120 = vpop.permute.xlu0 %1119
  %1121 = vrot.lane.b32.xlu0 %v1060, 8
  %v1122 = vpop.permute.xlu0 %1121
  %1123 = vrot.lane.b32.xlu0 %v1062, 8
  %v1124 = vpop.permute.xlu0 %1123
  %1125 = vrot.lane.b32.xlu0 %v1064, 8
  %v1126 = vpop.permute.xlu0 %1125
  %1127 = vrot.lane.b32.xlu0 %v1066, 8
  %v1128 = vpop.permute.xlu0 %1127
  %1129 = vrot.lane.b32.xlu0 %v1068, 8
  %v1130 = vpop.permute.xlu0 %1129
  %1131 = vrot.lane.b32.xlu0 %v1070, 8
  %v1132 = vpop.permute.xlu0 %1131
  %1133 = vrot.lane.b32.xlu0 %v1072, 8
  %v1134 = vpop.permute.xlu0 %1133
  %1135 = vrot.lane.b32.xlu0 %v1074, 8
  %v1136 = vpop.permute.xlu0 %1135
  %1137 = vrot.lane.b32.xlu0 %v1076, 8
  %v1138 = vpop.permute.xlu0 %1137
  %1139 = vrot.lane.b32.xlu0 %v1078, 8
  %v1140 = vpop.permute.xlu0 %1139
  %1141 = vrot.lane.b32.xlu0 %v1080, 8
  %v1142 = vpop.permute.xlu0 %1141
  %1143 = vrot.lane.b32.xlu0 %v1082, 8
  %v1144 = vpop.permute.xlu0 %1143
  %1145 = vrot.lane.b32.xlu0 %v1084, 8
  %v1146 = vpop.permute.xlu0 %1145
  %1147 = vrot.lane.b32.xlu0 %v1086, 8
  %v1148 = vpop.permute.xlu0 %1147
  %1149 = vrot.lane.b32.xlu0 %v1088, 8
  %v1150 = vpop.permute.xlu0 %1149
  %1151 = vrot.lane.b32.xlu0 %v1090, 8
  %v1152 = vpop.permute.xlu0 %1151
  %1153 = vrot.lane.b32.xlu0 %v1092, 8
  %v1154 = vpop.permute.xlu0 %1153
  %1155 = vrot.lane.b32.xlu0 %v1094, 8
  %v1156 = vpop.permute.xlu0 %1155
  %1157 = vrot.lane.b32.xlu0 %v1096, 8
  %v1158 = vpop.permute.xlu0 %1157
  %1159 = vrot.lane.b32.xlu0 %v1098, 8
  %v1160 = vpop.permute.xlu0 %1159
  %1161 = vrot.lane.b32.xlu0 %v1100, 8
  %v1162 = vpop.permute.xlu0 %1161
  %1163 = vrot.lane.b32.xlu0 %v1102, 8
  %v1164 = vpop.permute.xlu0 %1163
  %1165 = vrot.lane.b32.xlu0 %v1101, 8
  %v1166 = vpop.permute.xlu0 %1165
  %v1199 = vsel %vm453, %v69, %v945
  %v1200 = vsel %vm453, %v70, %v947
  %v1201 = vsel %vm453, %v71, %v949
  %v1202 = vsel %vm453, %v72, %v951
  %v1203 = vsel %vm453, %v73, %v953
  %v1204 = vsel %vm453, %v74, %v955
  %v1205 = vsel %vm453, %v75, %v957
  %v1206 = vsel %vm453, %v76, %v959
  %v1207 = vsel %vm453, %v77, %v961
  %v1208 = vsel %vm453, %v78, %v963
  %v1209 = vsel %vm453, %v79, %v965
  %v1210 = vsel %vm453, %v80, %v967
  %v1211 = vsel %vm453, %v81, %v969
  %v1212 = vsel %vm453, %v82, %v971
  %v1213 = vsel %vm453, %v83, %v973
  %v1214 = vsel %vm453, %v84, %v975
  %v1215 = vsel %vm453, %v85, %v977
  %v1216 = vsel %vm453, %v86, %v979
  %v1217 = vsel %vm453, %v87, %v981
  %v1218 = vsel %vm453, %v88, %v983
  %v1219 = vsel %vm453, %v89, %v985
  %v1220 = vsel %vm453, %v90, %v987
  %v1221 = vsel %vm453, %v91, %v989
  %v1222 = vsel %vm453, %v92, %v991
  %v1223 = vsel %vm453, %v93, %v993
  %v1224 = vsel %vm453, %v94, %v995
  %v1225 = vsel %vm453, %v95, %v997
  %v1226 = vsel %vm453, %v96, %v999
  %v1227 = vsel %vm453, %v97, %v1001
  %v1228 = vsel %vm453, %v98, %v1003
  %v1229 = vsel %vm453, %v99, %v1005
  %v1230 = vsel %vm453, %v100, %v1007
  %v1231 = vsel %vm486, %v1199, %v1104
  %v1232 = vsel %vm486, %v1200, %v1106
  %v1233 = vsel %vm486, %v1201, %v1108
  %v1234 = vsel %vm486, %v1202, %v1110
  %v1235 = vsel %vm486, %v1203, %v1112
  %v1236 = vsel %vm486, %v1204, %v1114
  %v1237 = vsel %vm486, %v1205, %v1116
  %v1238 = vsel %vm486, %v1206, %v1118
  %v1239 = vsel %vm486, %v1207, %v1120
  %v1240 = vsel %vm486, %v1208, %v1122
  %v1241 = vsel %vm486, %v1209, %v1124
  %v1242 = vsel %vm486, %v1210, %v1126
  %v1243 = vsel %vm486, %v1211, %v1128
  %v1244 = vsel %vm486, %v1212, %v1130
  %v1245 = vsel %vm486, %v1213, %v1132
  %v1246 = vsel %vm486, %v1214, %v1134
  %v1247 = vsel %vm486, %v1215, %v1136
  %v1248 = vsel %vm486, %v1216, %v1138
  %v1249 = vsel %vm486, %v1217, %v1140
  %v1250 = vsel %vm486, %v1218, %v1142
  %v1251 = vsel %vm486, %v1219, %v1144
  %v1252 = vsel %vm486, %v1220, %v1146
  %v1253 = vsel %vm486, %v1221, %v1148
  %v1254 = vsel %vm486, %v1222, %v1150
  %v1255 = vsel %vm486, %v1223, %v1152
  %v1256 = vsel %vm486, %v1224, %v1154
  %v1257 = vsel %vm486, %v1225, %v1156
  %v1258 = vsel %vm486, %v1226, %v1158
  %v1259 = vsel %vm486, %v1227, %v1160
  %v1260 = vsel %vm486, %v1228, %v1162
  %v1261 = vsel %vm486, %v1229, %v1164
  %v1262 = vsel %vm486, %v1230, %v1166
  %v1264 = vsel %vm523, %v1231, 0
  %v1267 = vsel %vm523, %v1232, 0
  %v1270 = vsel %vm523, %v1233, 0
  %v1273 = vsel %vm523, %v1234, 0
  %v1276 = vsel %vm523, %v1235, 0
  %v1279 = vsel %vm523, %v1236, 0
  %v1282 = vsel %vm523, %v1237, 0
  %v1285 = vsel %vm523, %v1238, 0
  %v1288 = vsel %vm523, %v1239, 0
  %v1291 = vsel %vm523, %v1240, 0
  %v1294 = vsel %vm523, %v1241, 0
  %v1297 = vsel %vm523, %v1242, 0
  %v1300 = vsel %vm523, %v1243, 0
  %v1303 = vsel %vm523, %v1244, 0
  %v1306 = vsel %vm523, %v1245, 0
  %v1309 = vsel %vm523, %v1246, 0
  %v1312 = vsel %vm523, %v1247, 0
  %v1315 = vsel %vm523, %v1248, 0
  %v1318 = vsel %vm523, %v1249, 0
  %v1321 = vsel %vm523, %v1250, 0
  %v1324 = vsel %vm523, %v1251, 0
  %v1327 = vsel %vm523, %v1252, 0
  %v1330 = vsel %vm523, %v1253, 0
  %v1333 = vsel %vm523, %v1254, 0
  %v1336 = vsel %vm523, %v1255, 0
  %v1339 = vsel %vm523, %v1256, 0
  %v1342 = vsel %vm523, %v1257, 0
  %v1345 = vsel %vm523, %v1258, 0
  %v1348 = vsel %vm523, %v1259, 0
  %v1351 = vsel %vm523, %v1260, 0
  %v1354 = vsel %vm523, %v1261, 0
  %v1357 = vsel %vm523, %v1262, 0
  %1359 = vmatprep.subr.mxu0 0.0
  %1360 = vmatpush1.msra.mxu0 0.0
  %1361 = vmatprep.subr.mxu0 0.0
  %1362 = vmatpush1.msra.mxu0 0.0
  %1363 = vmatprep.subr.mxu0 0.0
  %1364 = vmatpush1.msra.mxu0 0.0
  %1365 = vmatprep.subr.mxu0 0.0
  %1366 = vmatpush1.msra.mxu0 0.0
  %1367 = vmatprep.subr.mxu0 0.0
  %1368 = vmatpush1.msra.mxu0 0.0
  %1369 = vmatprep.subr.mxu0 0.0
  %1370 = vmatpush1.msra.mxu0 0.0
  %1371 = vmatprep.subr.mxu0 0.0
  %1372 = vmatpush1.msra.mxu0 0.0
  %1373 = vmatprep.subr.mxu0 0.0
  %1374 = vmatpush1.msra.mxu0 0.0
  %1375 = vmatprep.subr.mxu0 0.0
  %1376 = vmatpush1.msra.mxu0 0.0
  %1377 = vmatprep.subr.mxu0 0.0
  %1378 = vmatpush1.msra.mxu0 0.0
  %1379 = vmatprep.subr.mxu0 0.0
  %1380 = vmatpush1.msra.mxu0 0.0
  %1381 = vmatprep.subr.mxu0 0.0
  %1382 = vmatpush1.msra.mxu0 0.0
  %1383 = vmatprep.subr.mxu0 0.0
  %1384 = vmatpush1.msra.mxu0 0.0
  %1385 = vmatprep.subr.mxu0 0.0
  %1386 = vmatpush1.msra.mxu0 0.0
  %1387 = vmatprep.subr.mxu0 0.0
  %1388 = vmatpush1.msra.mxu0 %v622
  %1389 = vmatprep.subr.mxu0 0.0
  %1390 = vmatpush1.msra.mxu0 %v14
  %1391 = vmatprep.subr.mxu0 0.0
  %1392 = vmatpush2.msra.mxu0 0.0
  %1393 = vmatprep.subr.mxu0 0.0
  %1394 = vmatpush2.msra.mxu0 0.0
  %1395 = vmatprep.subr.mxu0 0.0
  %1396 = vmatpush2.msra.mxu0 0.0
  %1397 = vmatprep.subr.mxu0 0.0
  %1398 = vmatpush2.msra.mxu0 0.0
  %1399 = vmatprep.subr.mxu0 0.0
  %1400 = vmatpush2.msra.mxu0 0.0
  %1401 = vmatprep.subr.mxu0 0.0
  %1402 = vmatpush2.msra.mxu0 0.0
  %1403 = vmatprep.subr.mxu0 0.0
  %1404 = vmatpush2.msra.mxu0 0.0
  %1405 = vmatprep.subr.mxu0 0.0
  %1406 = vmatpush2.msra.mxu0 0.0
  %1407 = vmatprep.subr.mxu0 0.0
  %1408 = vmatpush2.msra.mxu0 0.0
  %1409 = vmatprep.subr.mxu0 0.0
  %1410 = vmatpush2.msra.mxu0 0.0
  %1411 = vmatprep.subr.mxu0 0.0
  %1412 = vmatpush2.msra.mxu0 0.0
  %1413 = vmatprep.subr.mxu0 0.0
  %1414 = vmatpush2.msra.mxu0 0.0
  %1415 = vmatprep.subr.mxu0 0.0
  %1416 = vmatpush2.msra.mxu0 0.0
  %1417 = vmatprep.subr.mxu0 0.0
  %1418 = vmatpush2.msra.mxu0 0.0
  %1419 = vmatprep.subr.mxu0 0.0
  %1420 = vmatpush2.msra.mxu0 0.0
  %1421 = vmatprep.subr.mxu0 0.0
  %1422 = vmatpush2.msra.mxu0 0.0
  %1423 = vmatprep.mubr.f32.mxu0 0.0
  %1424 = vmatmul.mubr.f32.gmra.mxu0 %v1264
  %v1425 = vpop.f32.mrf.mxu0
  %v1426 = vadd.f32 %v522, %v1425
  %v1427 = vpop.f32.mrf.mxu0
  %1428 = vmatprep.mubr.f32.mxu0 0.0
  %1429 = vmatmul.mubr.f32.gmra.mxu0 %v1267
  %v1430 = vpop.f32.mrf.mxu0
  %v1431 = vadd.f32 %v522, %v1430
  %v1432 = vpop.f32.mrf.mxu0
  %1433 = vmatprep.mubr.f32.mxu0 0.0
  %1434 = vmatmul.mubr.f32.gmra.mxu0 %v1270
  %v1435 = vpop.f32.mrf.mxu0
  %v1436 = vadd.f32 %v522, %v1435
  %v1437 = vpop.f32.mrf.mxu0
  %1438 = vmatprep.mubr.f32.mxu0 0.0
  %1439 = vmatmul.mubr.f32.gmra.mxu0 %v1273
  %v1440 = vpop.f32.mrf.mxu0
  %v1441 = vadd.f32 %v522, %v1440
  %v1442 = vpop.f32.mrf.mxu0
  %1443 = vmatprep.mubr.f32.mxu0 0.0
  %1444 = vmatmul.mubr.f32.gmra.mxu0 %v1276
  %v1445 = vpop.f32.mrf.mxu0
  %v1446 = vadd.f32 %v522, %v1445
  %v1447 = vpop.f32.mrf.mxu0
  %1448 = vmatprep.mubr.f32.mxu0 0.0
  %1449 = vmatmul.mubr.f32.gmra.mxu0 %v1279
  %v1450 = vpop.f32.mrf.mxu0
  %v1451 = vadd.f32 %v522, %v1450
  %v1452 = vpop.f32.mrf.mxu0
  %1453 = vmatprep.mubr.f32.mxu0 0.0
  %1454 = vmatmul.mubr.f32.gmra.mxu0 %v1282
  %v1455 = vpop.f32.mrf.mxu0
  %v1456 = vadd.f32 %v522, %v1455
  %v1457 = vpop.f32.mrf.mxu0
  %1458 = vmatprep.mubr.f32.mxu0 0.0
  %1459 = vmatmul.mubr.f32.gmra.mxu0 %v1285
  %v1460 = vpop.f32.mrf.mxu0
  %v1461 = vadd.f32 %v522, %v1460
  %v1462 = vpop.f32.mrf.mxu0
  %1463 = vmatprep.mubr.f32.mxu0 0.0
  %1464 = vmatmul.mubr.f32.gmra.mxu0 %v1288
  %v1465 = vpop.f32.mrf.mxu0
  %v1466 = vadd.f32 %v522, %v1465
  %v1467 = vpop.f32.mrf.mxu0
  %1468 = vmatprep.mubr.f32.mxu0 0.0
  %1469 = vmatmul.mubr.f32.gmra.mxu0 %v1291
  %v1470 = vpop.f32.mrf.mxu0
  %v1471 = vadd.f32 %v522, %v1470
  %v1472 = vpop.f32.mrf.mxu0
  %1473 = vmatprep.mubr.f32.mxu0 0.0
  %1474 = vmatmul.mubr.f32.gmra.mxu0 %v1294
  %v1475 = vpop.f32.mrf.mxu0
  %v1476 = vadd.f32 %v522, %v1475
  %v1477 = vpop.f32.mrf.mxu0
  %1478 = vmatprep.mubr.f32.mxu0 0.0
  %1479 = vmatmul.mubr.f32.gmra.mxu0 %v1297
  %v1480 = vpop.f32.mrf.mxu0
  %v1481 = vadd.f32 %v522, %v1480
  %v1482 = vpop.f32.mrf.mxu0
  %1483 = vmatprep.mubr.f32.mxu0 0.0
  %1484 = vmatmul.mubr.f32.gmra.mxu0 %v1300
  %v1485 = vpop.f32.mrf.mxu0
  %v1486 = vadd.f32 %v522, %v1485
  %v1487 = vpop.f32.mrf.mxu0
  %1488 = vmatprep.mubr.f32.mxu0 0.0
  %1489 = vmatmul.mubr.f32.gmra.mxu0 %v1303
  %v1490 = vpop.f32.mrf.mxu0
  %v1491 = vadd.f32 %v522, %v1490
  %v1492 = vpop.f32.mrf.mxu0
  %1493 = vmatprep.mubr.f32.mxu0 0.0
  %1494 = vmatmul.mubr.f32.gmra.mxu0 %v1306
  %v1495 = vpop.f32.mrf.mxu0
  %v1496 = vadd.f32 %v522, %v1495
  %v1497 = vpop.f32.mrf.mxu0
  %1498 = vmatprep.mubr.f32.mxu0 0.0
  %1499 = vmatmul.mubr.f32.gmra.mxu0 %v1309
  %v1500 = vpop.f32.mrf.mxu0
  %v1501 = vadd.f32 %v522, %v1500
  %v1502 = vpop.f32.mrf.mxu0
  %1503 = vmatprep.mubr.f32.mxu0 0.0
  %1504 = vmatmul.mubr.f32.gmra.mxu0 %v1312
  %v1505 = vpop.f32.mrf.mxu0
  %v1506 = vadd.f32 %v522, %v1505
  %v1507 = vpop.f32.mrf.mxu0
  %1508 = vmatprep.mubr.f32.mxu0 0.0
  %1509 = vmatmul.mubr.f32.gmra.mxu0 %v1315
  %v1510 = vpop.f32.mrf.mxu0
  %v1511 = vadd.f32 %v522, %v1510
  %v1512 = vpop.f32.mrf.mxu0
  %1513 = vmatprep.mubr.f32.mxu0 0.0
  %1514 = vmatmul.mubr.f32.gmra.mxu0 %v1318
  %v1515 = vpop.f32.mrf.mxu0
  %v1516 = vadd.f32 %v522, %v1515
  %v1517 = vpop.f32.mrf.mxu0
  %1518 = vmatprep.mubr.f32.mxu0 0.0
  %1519 = vmatmul.mubr.f32.gmra.mxu0 %v1321
  %v1520 = vpop.f32.mrf.mxu0
  %v1521 = vadd.f32 %v522, %v1520
  %v1522 = vpop.f32.mrf.mxu0
  %1523 = vmatprep.mubr.f32.mxu0 0.0
  %1524 = vmatmul.mubr.f32.gmra.mxu0 %v1324
  %v1525 = vpop.f32.mrf.mxu0
  %v1526 = vadd.f32 %v522, %v1525
  %v1527 = vpop.f32.mrf.mxu0
  %1528 = vmatprep.mubr.f32.mxu0 0.0
  %1529 = vmatmul.mubr.f32.gmra.mxu0 %v1327
  %v1530 = vpop.f32.mrf.mxu0
  %v1531 = vadd.f32 %v522, %v1530
  %v1532 = vpop.f32.mrf.mxu0
  %1533 = vmatprep.mubr.f32.mxu0 0.0
  %1534 = vmatmul.mubr.f32.gmra.mxu0 %v1330
  %v1535 = vpop.f32.mrf.mxu0
  %v1536 = vadd.f32 %v522, %v1535
  %v1537 = vpop.f32.mrf.mxu0
  %1538 = vmatprep.mubr.f32.mxu0 0.0
  %1539 = vmatmul.mubr.f32.gmra.mxu0 %v1333
  %v1540 = vpop.f32.mrf.mxu0
  %v1541 = vadd.f32 %v522, %v1540
  %v1542 = vpop.f32.mrf.mxu0
  %1543 = vmatprep.mubr.f32.mxu0 0.0
  %1544 = vmatmul.mubr.f32.gmra.mxu0 %v1336
  %v1545 = vpop.f32.mrf.mxu0
  %v1546 = vadd.f32 %v522, %v1545
  %v1547 = vpop.f32.mrf.mxu0
  %1548 = vmatprep.mubr.f32.mxu0 0.0
  %1549 = vmatmul.mubr.f32.gmra.mxu0 %v1339
  %v1550 = vpop.f32.mrf.mxu0
  %v1551 = vadd.f32 %v522, %v1550
  %v1552 = vpop.f32.mrf.mxu0
  %1553 = vmatprep.mubr.f32.mxu0 0.0
  %1554 = vmatmul.mubr.f32.gmra.mxu0 %v1342
  %v1555 = vpop.f32.mrf.mxu0
  %v1556 = vadd.f32 %v522, %v1555
  %v1557 = vpop.f32.mrf.mxu0
  %1558 = vmatprep.mubr.f32.mxu0 0.0
  %1559 = vmatmul.mubr.f32.gmra.mxu0 %v1345
  %v1560 = vpop.f32.mrf.mxu0
  %v1561 = vadd.f32 %v522, %v1560
  %v1562 = vpop.f32.mrf.mxu0
  %1563 = vmatprep.mubr.f32.mxu0 0.0
  %1564 = vmatmul.mubr.f32.gmra.mxu0 %v1348
  %v1565 = vpop.f32.mrf.mxu0
  %v1566 = vadd.f32 %v522, %v1565
  %v1567 = vpop.f32.mrf.mxu0
  %1568 = vmatprep.mubr.f32.mxu0 0.0
  %1569 = vmatmul.mubr.f32.gmra.mxu0 %v1351
  %v1570 = vpop.f32.mrf.mxu0
  %v1571 = vadd.f32 %v522, %v1570
  %v1572 = vpop.f32.mrf.mxu0
  %1573 = vmatprep.mubr.f32.mxu0 0.0
  %1574 = vmatmul.mubr.f32.gmra.mxu0 %v1354
  %v1575 = vpop.f32.mrf.mxu0
  %v1576 = vadd.f32 %v522, %v1575
  %v1577 = vpop.f32.mrf.mxu0
  %1578 = vmatprep.mubr.f32.mxu0 0.0
  %1579 = vmatmul.mubr.f32.gmra.mxu0 %v1357
  %v1580 = vpop.f32.mrf.mxu0
  %v1581 = vadd.f32 %v522, %v1580
  %v1582 = vpop.f32.mrf.mxu0
  %1583 = vdwg.mxu0
  %v1584 = vsel %vm486, %v691, 0.0
  %v1585 = vsel %vm486, %v696, 0.0
  %v1586 = vadd.f32 %v1584, %v1585
  %v1587 = vsel %vm486, %v701, 0.0
  %v1588 = vadd.f32 %v1586, %v1587
  %v1589 = vsel %vm486, %v706, 0.0
  %v1590 = vadd.f32 %v1588, %v1589
  %v1591 = vsel %vm486, %v711, 0.0
  %v1592 = vadd.f32 %v1590, %v1591
  %v1593 = vsel %vm486, %v716, 0.0
  %v1594 = vadd.f32 %v1592, %v1593
  %v1595 = vsel %vm486, %v721, 0.0
  %v1596 = vadd.f32 %v1594, %v1595
  %v1597 = vsel %vm486, %v726, 0.0
  %v1598 = vadd.f32 %v1596, %v1597
  %v1599 = vsel %vm486, %v731, 0.0
  %v1600 = vadd.f32 %v1598, %v1599
  %v1601 = vsel %vm486, %v736, 0.0
  %v1602 = vadd.f32 %v1600, %v1601
  %v1603 = vsel %vm486, %v741, 0.0
  %v1604 = vadd.f32 %v1602, %v1603
  %v1605 = vsel %vm486, %v746, 0.0
  %v1606 = vadd.f32 %v1604, %v1605
  %v1607 = vsel %vm486, %v751, 0.0
  %v1608 = vadd.f32 %v1606, %v1607
  %v1609 = vsel %vm486, %v756, 0.0
  %v1610 = vadd.f32 %v1608, %v1609
  %v1611 = vsel %vm486, %v761, 0.0
  %v1612 = vadd.f32 %v1610, %v1611
  %v1613 = vsel %vm486, %v766, 0.0
  %v1614 = vadd.f32 %v1612, %v1613
  %v1615 = vsel %vm486, %v771, 0.0
  %v1616 = vadd.f32 %v1614, %v1615
  %v1617 = vsel %vm486, %v776, 0.0
  %v1618 = vadd.f32 %v1616, %v1617
  %v1619 = vsel %vm486, %v781, 0.0
  %v1620 = vadd.f32 %v1618, %v1619
  %v1621 = vsel %vm486, %v786, 0.0
  %v1622 = vadd.f32 %v1620, %v1621
  %v1623 = vsel %vm486, %v791, 0.0
  %v1624 = vadd.f32 %v1622, %v1623
  %v1625 = vsel %vm486, %v796, 0.0
  %v1626 = vadd.f32 %v1624, %v1625
  %v1627 = vsel %vm486, %v801, 0.0
  %v1628 = vadd.f32 %v1626, %v1627
  %v1629 = vsel %vm486, %v806, 0.0
  %v1630 = vadd.f32 %v1628, %v1629
  %v1631 = vsel %vm486, %v811, 0.0
  %v1632 = vadd.f32 %v1630, %v1631
  %v1633 = vsel %vm486, %v816, 0.0
  %v1634 = vadd.f32 %v1632, %v1633
  %v1635 = vsel %vm486, %v821, 0.0
  %v1636 = vadd.f32 %v1634, %v1635
  %v1637 = vsel %vm486, %v826, 0.0
  %v1638 = vadd.f32 %v1636, %v1637
  %v1639 = vsel %vm486, %v831, 0.0
  %v1640 = vadd.f32 %v1638, %v1639
  %v1641 = vsel %vm486, %v836, 0.0
  %v1642 = vadd.f32 %v1640, %v1641
  %v1643 = vsel %vm486, %v841, 0.0
  %v1644 = vadd.f32 %v1642, %v1643
  %vm1645 = vcmask 62464
  %v1646 = vsel %vm1645, %v846, 0.0
  %v1647 = vadd.f32 %v1644, %v1646
  %v1648 = vrot.slane %v1647, 4
  %v1649 = vadd.f32 %v1647, %v1648
  %v1650 = vrot.slane %v1649, 2
  %v1651 = vadd.f32 %v1649, %v1650
  %v1652 = vrot.slane %v1651, 1
  %v1653 = vadd.f32 %v1651, %v1652
  %v1654 = vadd.f32 %v1653, 0.0
  %v1655 = vmul.f32 %v691, %v691
  %v1656 = vmul.f32 %v696, %v696
  %v1657 = vmul.f32 %v701, %v701
  %v1658 = vmul.f32 %v706, %v706
  %v1659 = vmul.f32 %v711, %v711
  %v1660 = vmul.f32 %v716, %v716
  %v1661 = vmul.f32 %v721, %v721
  %v1662 = vmul.f32 %v726, %v726
  %v1663 = vmul.f32 %v731, %v731
  %v1664 = vmul.f32 %v736, %v736
  %v1665 = vmul.f32 %v741, %v741
  %v1666 = vmul.f32 %v746, %v746
  %v1667 = vmul.f32 %v751, %v751
  %v1668 = vmul.f32 %v756, %v756
  %v1669 = vmul.f32 %v761, %v761
  %v1670 = vmul.f32 %v766, %v766
  %v1671 = vmul.f32 %v771, %v771
  %v1672 = vmul.f32 %v776, %v776
  %v1673 = vmul.f32 %v781, %v781
  %v1674 = vmul.f32 %v786, %v786
  %v1675 = vmul.f32 %v791, %v791
  %v1676 = vmul.f32 %v796, %v796
  %v1677 = vmul.f32 %v801, %v801
  %v1678 = vmul.f32 %v806, %v806
  %v1679 = vmul.f32 %v811, %v811
  %v1680 = vmul.f32 %v816, %v816
  %v1681 = vmul.f32 %v821, %v821
  %v1682 = vmul.f32 %v826, %v826
  %v1683 = vmul.f32 %v831, %v831
  %v1684 = vmul.f32 %v836, %v836
  %v1685 = vmul.f32 %v841, %v841
  %v1686 = vmul.f32 %v846, %v846
  %v1687 = vsel %vm486, %v1655, 0.0
  %v1688 = vsel %vm486, %v1656, 0.0
  %v1689 = vadd.f32 %v1687, %v1688
  %v1690 = vsel %vm486, %v1657, 0.0
  %v1691 = vadd.f32 %v1689, %v1690
  %v1692 = vsel %vm486, %v1658, 0.0
  %v1693 = vadd.f32 %v1691, %v1692
  %v1694 = vsel %vm486, %v1659, 0.0
  %v1695 = vadd.f32 %v1693, %v1694
  %v1696 = vsel %vm486, %v1660, 0.0
  %v1697 = vadd.f32 %v1695, %v1696
  %v1698 = vsel %vm486, %v1661, 0.0
  %v1699 = vadd.f32 %v1697, %v1698
  %v1700 = vsel %vm486, %v1662, 0.0
  %v1701 = vadd.f32 %v1699, %v1700
  %v1702 = vsel %vm486, %v1663, 0.0
  %v1703 = vadd.f32 %v1701, %v1702
  %v1704 = vsel %vm486, %v1664, 0.0
  %v1705 = vadd.f32 %v1703, %v1704
  %v1706 = vsel %vm486, %v1665, 0.0
  %v1707 = vadd.f32 %v1705, %v1706
  %v1708 = vsel %vm486, %v1666, 0.0
  %v1709 = vadd.f32 %v1707, %v1708
  %v1710 = vsel %vm486, %v1667, 0.0
  %v1711 = vadd.f32 %v1709, %v1710
  %v1712 = vsel %vm486, %v1668, 0.0
  %v1713 = vadd.f32 %v1711, %v1712
  %v1714 = vsel %vm486, %v1669, 0.0
  %v1715 = vadd.f32 %v1713, %v1714
  %v1716 = vsel %vm486, %v1670, 0.0
  %v1717 = vadd.f32 %v1715, %v1716
  %v1718 = vsel %vm486, %v1671, 0.0
  %v1719 = vadd.f32 %v1717, %v1718
  %v1720 = vsel %vm486, %v1672, 0.0
  %v1721 = vadd.f32 %v1719, %v1720
  %v1722 = vsel %vm486, %v1673, 0.0
  %v1723 = vadd.f32 %v1721, %v1722
  %v1724 = vsel %vm486, %v1674, 0.0
  %v1725 = vadd.f32 %v1723, %v1724
  %v1726 = vsel %vm486, %v1675, 0.0
  %v1727 = vadd.f32 %v1725, %v1726
  %v1728 = vsel %vm486, %v1676, 0.0
  %v1729 = vadd.f32 %v1727, %v1728
  %v1730 = vsel %vm486, %v1677, 0.0
  %v1731 = vadd.f32 %v1729, %v1730
  %v1732 = vsel %vm486, %v1678, 0.0
  %v1733 = vadd.f32 %v1731, %v1732
  %v1734 = vsel %vm486, %v1679, 0.0
  %v1735 = vadd.f32 %v1733, %v1734
  %v1736 = vsel %vm486, %v1680, 0.0
  %v1737 = vadd.f32 %v1735, %v1736
  %v1738 = vsel %vm486, %v1681, 0.0
  %v1739 = vadd.f32 %v1737, %v1738
  %v1740 = vsel %vm486, %v1682, 0.0
  %v1741 = vadd.f32 %v1739, %v1740
  %v1742 = vsel %vm486, %v1683, 0.0
  %v1743 = vadd.f32 %v1741, %v1742
  %v1744 = vsel %vm486, %v1684, 0.0
  %v1745 = vadd.f32 %v1743, %v1744
  %v1746 = vsel %vm486, %v1685, 0.0
  %v1747 = vadd.f32 %v1745, %v1746
  %v1748 = vsel %vm1645, %v1686, 0.0
  %v1749 = vadd.f32 %v1747, %v1748
  %v1750 = vrot.slane %v1749, 4
  %v1751 = vadd.f32 %v1749, %v1750
  %v1752 = vrot.slane %v1751, 2
  %v1753 = vadd.f32 %v1751, %v1752
  %v1754 = vrot.slane %v1753, 1
  %v1755 = vadd.f32 %v1753, %v1754
  %v1756 = vadd.f32 %v1755, 0.0
  %v1757 = vsel %vm486, %v1426, 0.0
  %v1758 = vsel %vm486, %v1431, 0.0
  %v1759 = vadd.f32 %v1757, %v1758
  %v1760 = vsel %vm486, %v1436, 0.0
  %v1761 = vadd.f32 %v1759, %v1760
  %v1762 = vsel %vm486, %v1441, 0.0
  %v1763 = vadd.f32 %v1761, %v1762
  %v1764 = vsel %vm486, %v1446, 0.0
  %v1765 = vadd.f32 %v1763, %v1764
  %v1766 = vsel %vm486, %v1451, 0.0
  %v1767 = vadd.f32 %v1765, %v1766
  %v1768 = vsel %vm486, %v1456, 0.0
  %v1769 = vadd.f32 %v1767, %v1768
  %v1770 = vsel %vm486, %v1461, 0.0
  %v1771 = vadd.f32 %v1769, %v1770
  %v1772 = vsel %vm486, %v1466, 0.0
  %v1773 = vadd.f32 %v1771, %v1772
  %v1774 = vsel %vm486, %v1471, 0.0
  %v1775 = vadd.f32 %v1773, %v1774
  %v1776 = vsel %vm486, %v1476, 0.0
  %v1777 = vadd.f32 %v1775, %v1776
  %v1778 = vsel %vm486, %v1481, 0.0
  %v1779 = vadd.f32 %v1777, %v1778
  %v1780 = vsel %vm486, %v1486, 0.0
  %v1781 = vadd.f32 %v1779, %v1780
  %v1782 = vsel %vm486, %v1491, 0.0
  %v1783 = vadd.f32 %v1781, %v1782
  %v1784 = vsel %vm486, %v1496, 0.0
  %v1785 = vadd.f32 %v1783, %v1784
  %v1786 = vsel %vm486, %v1501, 0.0
  %v1787 = vadd.f32 %v1785, %v1786
  %v1788 = vsel %vm486, %v1506, 0.0
  %v1789 = vadd.f32 %v1787, %v1788
  %v1790 = vsel %vm486, %v1511, 0.0
  %v1791 = vadd.f32 %v1789, %v1790
  %v1792 = vsel %vm486, %v1516, 0.0
  %v1793 = vadd.f32 %v1791, %v1792
  %v1794 = vsel %vm486, %v1521, 0.0
  %v1795 = vadd.f32 %v1793, %v1794
  %v1796 = vsel %vm486, %v1526, 0.0
  %v1797 = vadd.f32 %v1795, %v1796
  %v1798 = vsel %vm486, %v1531, 0.0
  %v1799 = vadd.f32 %v1797, %v1798
  %v1800 = vsel %vm486, %v1536, 0.0
  %v1801 = vadd.f32 %v1799, %v1800
  %v1802 = vsel %vm486, %v1541, 0.0
  %v1803 = vadd.f32 %v1801, %v1802
  %v1804 = vsel %vm486, %v1546, 0.0
  %v1805 = vadd.f32 %v1803, %v1804
  %v1806 = vsel %vm486, %v1551, 0.0
  %v1807 = vadd.f32 %v1805, %v1806
  %v1808 = vsel %vm486, %v1556, 0.0
  %v1809 = vadd.f32 %v1807, %v1808
  %v1810 = vsel %vm486, %v1561, 0.0
  %v1811 = vadd.f32 %v1809, %v1810
  %v1812 = vsel %vm486, %v1566, 0.0
  %v1813 = vadd.f32 %v1811, %v1812
  %v1814 = vsel %vm486, %v1571, 0.0
  %v1815 = vadd.f32 %v1813, %v1814
  %v1816 = vsel %vm486, %v1576, 0.0
  %v1817 = vadd.f32 %v1815, %v1816
  %v1818 = vsel %vm1645, %v1581, 0.0
  %v1819 = vadd.f32 %v1817, %v1818
  %v1820 = vrot.slane %v1819, 4
  %v1821 = vadd.f32 %v1819, %v1820
  %v1822 = vrot.slane %v1821, 2
  %v1823 = vadd.f32 %v1821, %v1822
  %v1824 = vrot.slane %v1823, 1
  %v1825 = vadd.f32 %v1823, %v1824
  %v1826 = vadd.f32 %v1654, %v1825
  %v1827 = vmul.f32 %v1426, %v1426
  %v1828 = vmul.f32 %v1431, %v1431
  %v1829 = vmul.f32 %v1436, %v1436
  %v1830 = vmul.f32 %v1441, %v1441
  %v1831 = vmul.f32 %v1446, %v1446
  %v1832 = vmul.f32 %v1451, %v1451
  %v1833 = vmul.f32 %v1456, %v1456
  %v1834 = vmul.f32 %v1461, %v1461
  %v1835 = vmul.f32 %v1466, %v1466
  %v1836 = vmul.f32 %v1471, %v1471
  %v1837 = vmul.f32 %v1476, %v1476
  %v1838 = vmul.f32 %v1481, %v1481
  %v1839 = vmul.f32 %v1486, %v1486
  %v1840 = vmul.f32 %v1491, %v1491
  %v1841 = vmul.f32 %v1496, %v1496
  %v1842 = vmul.f32 %v1501, %v1501
  %v1843 = vmul.f32 %v1506, %v1506
  %v1844 = vmul.f32 %v1511, %v1511
  %v1845 = vmul.f32 %v1516, %v1516
  %v1846 = vmul.f32 %v1521, %v1521
  %v1847 = vmul.f32 %v1526, %v1526
  %v1848 = vmul.f32 %v1531, %v1531
  %v1849 = vmul.f32 %v1536, %v1536
  %v1850 = vmul.f32 %v1541, %v1541
  %v1851 = vmul.f32 %v1546, %v1546
  %v1852 = vmul.f32 %v1551, %v1551
  %v1853 = vmul.f32 %v1556, %v1556
  %v1854 = vmul.f32 %v1561, %v1561
  %v1855 = vmul.f32 %v1566, %v1566
  %v1856 = vmul.f32 %v1571, %v1571
  %v1857 = vmul.f32 %v1576, %v1576
  %v1858 = vmul.f32 %v1581, %v1581
  %v1859 = vsel %vm486, %v1827, 0.0
  %v1860 = vsel %vm486, %v1828, 0.0
  %v1861 = vadd.f32 %v1859, %v1860
  %v1862 = vsel %vm486, %v1829, 0.0
  %v1863 = vadd.f32 %v1861, %v1862
  %v1864 = vsel %vm486, %v1830, 0.0
  %v1865 = vadd.f32 %v1863, %v1864
  %v1866 = vsel %vm486, %v1831, 0.0
  %v1867 = vadd.f32 %v1865, %v1866
  %v1868 = vsel %vm486, %v1832, 0.0
  %v1869 = vadd.f32 %v1867, %v1868
  %v1870 = vsel %vm486, %v1833, 0.0
  %v1871 = vadd.f32 %v1869, %v1870
  %v1872 = vsel %vm486, %v1834, 0.0
  %v1873 = vadd.f32 %v1871, %v1872
  %v1874 = vsel %vm486, %v1835, 0.0
  %v1875 = vadd.f32 %v1873, %v1874
  %v1876 = vsel %vm486, %v1836, 0.0
  %v1877 = vadd.f32 %v1875, %v1876
  %v1878 = vsel %vm486, %v1837, 0.0
  %v1879 = vadd.f32 %v1877, %v1878
  %v1880 = vsel %vm486, %v1838, 0.0
  %v1881 = vadd.f32 %v1879, %v1880
  %v1882 = vsel %vm486, %v1839, 0.0
  %v1883 = vadd.f32 %v1881, %v1882
  %v1884 = vsel %vm486, %v1840, 0.0
  %v1885 = vadd.f32 %v1883, %v1884
  %v1886 = vsel %vm486, %v1841, 0.0
  %v1887 = vadd.f32 %v1885, %v1886
  %v1888 = vsel %vm486, %v1842, 0.0
  %v1889 = vadd.f32 %v1887, %v1888
  %v1890 = vsel %vm486, %v1843, 0.0
  %v1891 = vadd.f32 %v1889, %v1890
  %v1892 = vsel %vm486, %v1844, 0.0
  %v1893 = vadd.f32 %v1891, %v1892
  %v1894 = vsel %vm486, %v1845, 0.0
  %v1895 = vadd.f32 %v1893, %v1894
  %v1896 = vsel %vm486, %v1846, 0.0
  %v1897 = vadd.f32 %v1895, %v1896
  %v1898 = vsel %vm486, %v1847, 0.0
  %v1899 = vadd.f32 %v1897, %v1898
  %v1900 = vsel %vm486, %v1848, 0.0
  %v1901 = vadd.f32 %v1899, %v1900
  %v1902 = vsel %vm486, %v1849, 0.0
  %v1903 = vadd.f32 %v1901, %v1902
  %v1904 = vsel %vm486, %v1850, 0.0
  %v1905 = vadd.f32 %v1903, %v1904
  %v1906 = vsel %vm486, %v1851, 0.0
  %v1907 = vadd.f32 %v1905, %v1906
  %v1908 = vsel %vm486, %v1852, 0.0
  %v1909 = vadd.f32 %v1907, %v1908
  %v1910 = vsel %vm486, %v1853, 0.0
  %v1911 = vadd.f32 %v1909, %v1910
  %v1912 = vsel %vm486, %v1854, 0.0
  %v1913 = vadd.f32 %v1911, %v1912
  %v1914 = vsel %vm486, %v1855, 0.0
  %v1915 = vadd.f32 %v1913, %v1914
  %v1916 = vsel %vm486, %v1856, 0.0
  %v1917 = vadd.f32 %v1915, %v1916
  %v1918 = vsel %vm486, %v1857, 0.0
  %v1919 = vadd.f32 %v1917, %v1918
  %v1920 = vsel %vm1645, %v1858, 0.0
  %v1921 = vadd.f32 %v1919, %v1920
  %v1922 = vrot.slane %v1921, 4
  %v1923 = vadd.f32 %v1921, %v1922
  %v1924 = vrot.slane %v1923, 2
  %v1925 = vadd.f32 %v1923, %v1924
  %v1926 = vrot.slane %v1925, 1
  %v1927 = vadd.f32 %v1925, %v1926
  %v1928 = vadd.f32 %v1756, %v1927
  %v1929 = vmul.f32 %v1826, 0.001968504
  %v1930 = vmul.f32 %v1928, 0.001968504
  %v1931 = vmul.f32 %v1929, %v1929
  %v1932 = vsub.f32 %v1930, %v1931
  %v1933 = vadd.f32 %v1932, 1e-05
  %v1934 = vrsqrt.pop %v1933
  %v1935 = vmul.f32 %v26, %v1934
  %v1936 = vmul.f32 %v1929, %v1935
  %v1937 = vsub.f32 %v27, %v1936
  %v1938 = vlaneseq
  %v1939 = vshrl.u32 %v1938, 7
  %v1940 = vsub.s32 0, %v1939
  %v1941 = vrot.slane %v1935, %v1940
  %v1942 = vmul.f32 %v691, %v1941
  %v1943 = vmul.f32 %v696, %v1941
  %v1944 = vmul.f32 %v701, %v1941
  %v1945 = vmul.f32 %v706, %v1941
  %v1946 = vmul.f32 %v711, %v1941
  %v1947 = vmul.f32 %v716, %v1941
  %v1948 = vmul.f32 %v721, %v1941
  %v1949 = vmul.f32 %v726, %v1941
  %v1950 = vmul.f32 %v731, %v1941
  %v1951 = vmul.f32 %v736, %v1941
  %v1952 = vmul.f32 %v741, %v1941
  %v1953 = vmul.f32 %v746, %v1941
  %v1954 = vmul.f32 %v751, %v1941
  %v1955 = vmul.f32 %v756, %v1941
  %v1956 = vmul.f32 %v761, %v1941
  %v1957 = vmul.f32 %v766, %v1941
  %v1958 = vmul.f32 %v771, %v1941
  %v1959 = vmul.f32 %v776, %v1941
  %v1960 = vmul.f32 %v781, %v1941
  %v1961 = vmul.f32 %v786, %v1941
  %v1962 = vmul.f32 %v791, %v1941
  %v1963 = vmul.f32 %v796, %v1941
  %v1964 = vmul.f32 %v801, %v1941
  %v1965 = vmul.f32 %v806, %v1941
  %v1966 = vmul.f32 %v811, %v1941
  %v1967 = vmul.f32 %v816, %v1941
  %v1968 = vmul.f32 %v821, %v1941
  %v1969 = vmul.f32 %v826, %v1941
  %v1970 = vmul.f32 %v831, %v1941
  %v1971 = vmul.f32 %v836, %v1941
  %v1972 = vmul.f32 %v841, %v1941
  %v1973 = vmul.f32 %v846, %v1941
  %v1974 = vlaneseq
  %v1975 = vshrl.u32 %v1974, 7
  %v1976 = vsub.s32 0, %v1975
  %v1977 = vrot.slane %v1937, %v1976
  %v1978 = vadd.f32 %v1942, %v1977
  %v1979 = vadd.f32 %v1943, %v1977
  %v1980 = vadd.f32 %v1944, %v1977
  %v1981 = vadd.f32 %v1945, %v1977
  %v1982 = vadd.f32 %v1946, %v1977
  %v1983 = vadd.f32 %v1947, %v1977
  %v1984 = vadd.f32 %v1948, %v1977
  %v1985 = vadd.f32 %v1949, %v1977
  %v1986 = vadd.f32 %v1950, %v1977
  %v1987 = vadd.f32 %v1951, %v1977
  %v1988 = vadd.f32 %v1952, %v1977
  %v1989 = vadd.f32 %v1953, %v1977
  %v1990 = vadd.f32 %v1954, %v1977
  %v1991 = vadd.f32 %v1955, %v1977
  %v1992 = vadd.f32 %v1956, %v1977
  %v1993 = vadd.f32 %v1957, %v1977
  %v1994 = vadd.f32 %v1958, %v1977
  %v1995 = vadd.f32 %v1959, %v1977
  %v1996 = vadd.f32 %v1960, %v1977
  %v1997 = vadd.f32 %v1961, %v1977
  %v1998 = vadd.f32 %v1962, %v1977
  %v1999 = vadd.f32 %v1963, %v1977
  %v2000 = vadd.f32 %v1964, %v1977
  %v2001 = vadd.f32 %v1965, %v1977
  %v2002 = vadd.f32 %v1966, %v1977
  %v2003 = vadd.f32 %v1967, %v1977
  %v2004 = vadd.f32 %v1968, %v1977
  %v2005 = vadd.f32 %v1969, %v1977
  %v2006 = vadd.f32 %v1970, %v1977
  %v2007 = vadd.f32 %v1971, %v1977
  %v2008 = vadd.f32 %v1972, %v1977
  %v2009 = vadd.f32 %v1973, %v1977
  %v2010 = vmul.f32 %v1426, %v1941
  %v2011 = vmul.f32 %v1431, %v1941
  %v2012 = vmul.f32 %v1436, %v1941
  %v2013 = vmul.f32 %v1441, %v1941
  %v2014 = vmul.f32 %v1446, %v1941
  %v2015 = vmul.f32 %v1451, %v1941
  %v2016 = vmul.f32 %v1456, %v1941
  %v2017 = vmul.f32 %v1461, %v1941
  %v2018 = vmul.f32 %v1466, %v1941
  %v2019 = vmul.f32 %v1471, %v1941
  %v2020 = vmul.f32 %v1476, %v1941
  %v2021 = vmul.f32 %v1481, %v1941
  %v2022 = vmul.f32 %v1486, %v1941
  %v2023 = vmul.f32 %v1491, %v1941
  %v2024 = vmul.f32 %v1496, %v1941
  %v2025 = vmul.f32 %v1501, %v1941
  %v2026 = vmul.f32 %v1506, %v1941
  %v2027 = vmul.f32 %v1511, %v1941
  %v2028 = vmul.f32 %v1516, %v1941
  %v2029 = vmul.f32 %v1521, %v1941
  %v2030 = vmul.f32 %v1526, %v1941
  %v2031 = vmul.f32 %v1531, %v1941
  %v2032 = vmul.f32 %v1536, %v1941
  %v2033 = vmul.f32 %v1541, %v1941
  %v2034 = vmul.f32 %v1546, %v1941
  %v2035 = vmul.f32 %v1551, %v1941
  %v2036 = vmul.f32 %v1556, %v1941
  %v2037 = vmul.f32 %v1561, %v1941
  %v2038 = vmul.f32 %v1566, %v1941
  %v2039 = vmul.f32 %v1571, %v1941
  %v2040 = vmul.f32 %v1576, %v1941
  %v2041 = vmul.f32 %v1581, %v1941
  %v2042 = vadd.f32 %v2010, %v1977
  %v2043 = vadd.f32 %v2011, %v1977
  %v2044 = vadd.f32 %v2012, %v1977
  %v2045 = vadd.f32 %v2013, %v1977
  %v2046 = vadd.f32 %v2014, %v1977
  %v2047 = vadd.f32 %v2015, %v1977
  %v2048 = vadd.f32 %v2016, %v1977
  %v2049 = vadd.f32 %v2017, %v1977
  %v2050 = vadd.f32 %v2018, %v1977
  %v2051 = vadd.f32 %v2019, %v1977
  %v2052 = vadd.f32 %v2020, %v1977
  %v2053 = vadd.f32 %v2021, %v1977
  %v2054 = vadd.f32 %v2022, %v1977
  %v2055 = vadd.f32 %v2023, %v1977
  %v2056 = vadd.f32 %v2024, %v1977
  %v2057 = vadd.f32 %v2025, %v1977
  %v2058 = vadd.f32 %v2026, %v1977
  %v2059 = vadd.f32 %v2027, %v1977
  %v2060 = vadd.f32 %v2028, %v1977
  %v2061 = vadd.f32 %v2029, %v1977
  %v2062 = vadd.f32 %v2030, %v1977
  %v2063 = vadd.f32 %v2031, %v1977
  %v2064 = vadd.f32 %v2032, %v1977
  %v2065 = vadd.f32 %v2033, %v1977
  %v2066 = vadd.f32 %v2034, %v1977
  %v2067 = vadd.f32 %v2035, %v1977
  %v2068 = vadd.f32 %v2036, %v1977
  %v2069 = vadd.f32 %v2037, %v1977
  %v2070 = vadd.f32 %v2038, %v1977
  %v2071 = vadd.f32 %v2039, %v1977
  %v2072 = vadd.f32 %v2040, %v1977
  %v2073 = vadd.f32 %v2041, %v1977
  %v2105 = vcombine.high %v1978, %v1978
  %v2106 = vcombine.high %v1979, %v1979
  %v2107 = vcombine.high %v1980, %v1980
  %v2108 = vcombine.high %v1981, %v1981
  %v2109 = vcombine.high %v1982, %v1982
  %v2110 = vcombine.high %v1983, %v1983
  %v2111 = vcombine.high %v1984, %v1984
  %v2112 = vcombine.high %v1985, %v1985
  %v2113 = vcombine.high %v1986, %v1986
  %v2114 = vcombine.high %v1987, %v1987
  %v2115 = vcombine.high %v1988, %v1988
  %v2116 = vcombine.high %v1989, %v1989
  %v2117 = vcombine.high %v1990, %v1990
  %v2118 = vcombine.high %v1991, %v1991
  %v2119 = vcombine.high %v1992, %v1992
  %v2120 = vcombine.high %v1993, %v1993
  %v2121 = vcombine.high %v1994, %v1994
  %v2122 = vcombine.high %v1995, %v1995
  %v2123 = vcombine.high %v1996, %v1996
  %v2124 = vcombine.high %v1997, %v1997
  %v2125 = vcombine.high %v1998, %v1998
  %v2126 = vcombine.high %v1999, %v1999
  %v2127 = vcombine.high %v2000, %v2000
  %v2128 = vcombine.high %v2001, %v2001
  %v2129 = vcombine.high %v2002, %v2002
  %v2130 = vcombine.high %v2003, %v2003
  %v2131 = vcombine.high %v2004, %v2004
  %v2132 = vcombine.high %v2005, %v2005
  %v2133 = vcombine.high %v2006, %v2006
  %v2134 = vcombine.high %v2007, %v2007
  %v2135 = vcombine.high %v2008, %v2008
  %vm2167 = vcmask 60416
  %v2168 = vsel %vm2167, %v1978, -inf
  %v2169 = vrot.slane %v2168, 4
  %v2170 = vmax.f32 %v2168, %v2169
  %v2171 = vrot.slane %v2170, 2
  %v2172 = vmax.f32 %v2170, %v2171
  %v2173 = vrot.slane %v2172, 1
  %v2174 = vmax.f32 %v2172, %v2173
  %v2175 = vsel %vm2167, %v2105, -inf
  %v2176 = vrot.slane %v2175, 4
  %v2177 = vmax.f32 %v2175, %v2176
  %v2178 = vrot.slane %v2177, 2
  %v2179 = vmax.f32 %v2177, %v2178
  %v2180 = vrot.slane %v2179, 1
  %v2181 = vmax.f32 %v2179, %v2180
  %v2182 = vsel %vm2167, %v1979, -inf
  %v2183 = vrot.slane %v2182, 4
  %v2184 = vmax.f32 %v2182, %v2183
  %v2185 = vrot.slane %v2184, 2
  %v2186 = vmax.f32 %v2184, %v2185
  %v2187 = vrot.slane %v2186, 1
  %v2188 = vmax.f32 %v2186, %v2187
  %v2189 = vsel %vm2167, %v2106, -inf
  %v2190 = vrot.slane %v2189, 4
  %v2191 = vmax.f32 %v2189, %v2190
  %v2192 = vrot.slane %v2191, 2
  %v2193 = vmax.f32 %v2191, %v2192
  %v2194 = vrot.slane %v2193, 1
  %v2195 = vmax.f32 %v2193, %v2194
  %v2196 = vsel %vm2167, %v1980, -inf
  %v2197 = vrot.slane %v2196, 4
  %v2198 = vmax.f32 %v2196, %v2197
  %v2199 = vrot.slane %v2198, 2
  %v2200 = vmax.f32 %v2198, %v2199
  %v2201 = vrot.slane %v2200, 1
  %v2202 = vmax.f32 %v2200, %v2201
  %v2203 = vsel %vm2167, %v2107, -inf
  %v2204 = vrot.slane %v2203, 4
  %v2205 = vmax.f32 %v2203, %v2204
  %v2206 = vrot.slane %v2205, 2
  %v2207 = vmax.f32 %v2205, %v2206
  %v2208 = vrot.slane %v2207, 1
  %v2209 = vmax.f32 %v2207, %v2208
  %v2210 = vsel %vm2167, %v1981, -inf
  %v2211 = vrot.slane %v2210, 4
  %v2212 = vmax.f32 %v2210, %v2211
  %v2213 = vrot.slane %v2212, 2
  %v2214 = vmax.f32 %v2212, %v2213
  %v2215 = vrot.slane %v2214, 1
  %v2216 = vmax.f32 %v2214, %v2215
  %v2217 = vsel %vm2167, %v2108, -inf
  %v2218 = vrot.slane %v2217, 4
  %v2219 = vmax.f32 %v2217, %v2218
  %v2220 = vrot.slane %v2219, 2
  %v2221 = vmax.f32 %v2219, %v2220
  %v2222 = vrot.slane %v2221, 1
  %v2223 = vmax.f32 %v2221, %v2222
  %v2224 = vsel %vm2167, %v1982, -inf
  %v2225 = vrot.slane %v2224, 4
  %v2226 = vmax.f32 %v2224, %v2225
  %v2227 = vrot.slane %v2226, 2
  %v2228 = vmax.f32 %v2226, %v2227
  %v2229 = vrot.slane %v2228, 1
  %v2230 = vmax.f32 %v2228, %v2229
  %v2231 = vsel %vm2167, %v2109, -inf
  %v2232 = vrot.slane %v2231, 4
  %v2233 = vmax.f32 %v2231, %v2232
  %v2234 = vrot.slane %v2233, 2
  %v2235 = vmax.f32 %v2233, %v2234
  %v2236 = vrot.slane %v2235, 1
  %v2237 = vmax.f32 %v2235, %v2236
  %v2238 = vsel %vm2167, %v1983, -inf
  %v2239 = vrot.slane %v2238, 4
  %v2240 = vmax.f32 %v2238, %v2239
  %v2241 = vrot.slane %v2240, 2
  %v2242 = vmax.f32 %v2240, %v2241
  %v2243 = vrot.slane %v2242, 1
  %v2244 = vmax.f32 %v2242, %v2243
  %v2245 = vsel %vm2167, %v2110, -inf
  %v2246 = vrot.slane %v2245, 4
  %v2247 = vmax.f32 %v2245, %v2246
  %v2248 = vrot.slane %v2247, 2
  %v2249 = vmax.f32 %v2247, %v2248
  %v2250 = vrot.slane %v2249, 1
  %v2251 = vmax.f32 %v2249, %v2250
  %v2252 = vsel %vm2167, %v1984, -inf
  %v2253 = vrot.slane %v2252, 4
  %v2254 = vmax.f32 %v2252, %v2253
  %v2255 = vrot.slane %v2254, 2
  %v2256 = vmax.f32 %v2254, %v2255
  %v2257 = vrot.slane %v2256, 1
  %v2258 = vmax.f32 %v2256, %v2257
  %v2259 = vsel %vm2167, %v2111, -inf
  %v2260 = vrot.slane %v2259, 4
  %v2261 = vmax.f32 %v2259, %v2260
  %v2262 = vrot.slane %v2261, 2
  %v2263 = vmax.f32 %v2261, %v2262
  %v2264 = vrot.slane %v2263, 1
  %v2265 = vmax.f32 %v2263, %v2264
  %v2266 = vsel %vm2167, %v1985, -inf
  %v2267 = vrot.slane %v2266, 4
  %v2268 = vmax.f32 %v2266, %v2267
  %v2269 = vrot.slane %v2268, 2
  %v2270 = vmax.f32 %v2268, %v2269
  %v2271 = vrot.slane %v2270, 1
  %v2272 = vmax.f32 %v2270, %v2271
  %v2273 = vsel %vm2167, %v2112, -inf
  %v2274 = vrot.slane %v2273, 4
  %v2275 = vmax.f32 %v2273, %v2274
  %v2276 = vrot.slane %v2275, 2
  %v2277 = vmax.f32 %v2275, %v2276
  %v2278 = vrot.slane %v2277, 1
  %v2279 = vmax.f32 %v2277, %v2278
  %v2280 = vsel %vm2167, %v1986, -inf
  %v2281 = vrot.slane %v2280, 4
  %v2282 = vmax.f32 %v2280, %v2281
  %v2283 = vrot.slane %v2282, 2
  %v2284 = vmax.f32 %v2282, %v2283
  %v2285 = vrot.slane %v2284, 1
  %v2286 = vmax.f32 %v2284, %v2285
  %v2287 = vsel %vm2167, %v2113, -inf
  %v2288 = vrot.slane %v2287, 4
  %v2289 = vmax.f32 %v2287, %v2288
  %v2290 = vrot.slane %v2289, 2
  %v2291 = vmax.f32 %v2289, %v2290
  %v2292 = vrot.slane %v2291, 1
  %v2293 = vmax.f32 %v2291, %v2292
  %v2294 = vsel %vm2167, %v1987, -inf
  %v2295 = vrot.slane %v2294, 4
  %v2296 = vmax.f32 %v2294, %v2295
  %v2297 = vrot.slane %v2296, 2
  %v2298 = vmax.f32 %v2296, %v2297
  %v2299 = vrot.slane %v2298, 1
  %v2300 = vmax.f32 %v2298, %v2299
  %v2301 = vsel %vm2167, %v2114, -inf
  %v2302 = vrot.slane %v2301, 4
  %v2303 = vmax.f32 %v2301, %v2302
  %v2304 = vrot.slane %v2303, 2
  %v2305 = vmax.f32 %v2303, %v2304
  %v2306 = vrot.slane %v2305, 1
  %v2307 = vmax.f32 %v2305, %v2306
  %v2308 = vsel %vm2167, %v1988, -inf
  %v2309 = vrot.slane %v2308, 4
  %v2310 = vmax.f32 %v2308, %v2309
  %v2311 = vrot.slane %v2310, 2
  %v2312 = vmax.f32 %v2310, %v2311
  %v2313 = vrot.slane %v2312, 1
  %v2314 = vmax.f32 %v2312, %v2313
  %v2315 = vsel %vm2167, %v2115, -inf
  %v2316 = vrot.slane %v2315, 4
  %v2317 = vmax.f32 %v2315, %v2316
  %v2318 = vrot.slane %v2317, 2
  %v2319 = vmax.f32 %v2317, %v2318
  %v2320 = vrot.slane %v2319, 1
  %v2321 = vmax.f32 %v2319, %v2320
  %v2322 = vsel %vm2167, %v1989, -inf
  %v2323 = vrot.slane %v2322, 4
  %v2324 = vmax.f32 %v2322, %v2323
  %v2325 = vrot.slane %v2324, 2
  %v2326 = vmax.f32 %v2324, %v2325
  %v2327 = vrot.slane %v2326, 1
  %v2328 = vmax.f32 %v2326, %v2327
  %v2329 = vsel %vm2167, %v2116, -inf
  %v2330 = vrot.slane %v2329, 4
  %v2331 = vmax.f32 %v2329, %v2330
  %v2332 = vrot.slane %v2331, 2
  %v2333 = vmax.f32 %v2331, %v2332
  %v2334 = vrot.slane %v2333, 1
  %v2335 = vmax.f32 %v2333, %v2334
  %v2336 = vsel %vm2167, %v1990, -inf
  %v2337 = vrot.slane %v2336, 4
  %v2338 = vmax.f32 %v2336, %v2337
  %v2339 = vrot.slane %v2338, 2
  %v2340 = vmax.f32 %v2338, %v2339
  %v2341 = vrot.slane %v2340, 1
  %v2342 = vmax.f32 %v2340, %v2341
  %v2343 = vsel %vm2167, %v2117, -inf
  %v2344 = vrot.slane %v2343, 4
  %v2345 = vmax.f32 %v2343, %v2344
  %v2346 = vrot.slane %v2345, 2
  %v2347 = vmax.f32 %v2345, %v2346
  %v2348 = vrot.slane %v2347, 1
  %v2349 = vmax.f32 %v2347, %v2348
  %v2350 = vsel %vm2167, %v1991, -inf
  %v2351 = vrot.slane %v2350, 4
  %v2352 = vmax.f32 %v2350, %v2351
  %v2353 = vrot.slane %v2352, 2
  %v2354 = vmax.f32 %v2352, %v2353
  %v2355 = vrot.slane %v2354, 1
  %v2356 = vmax.f32 %v2354, %v2355
  %v2357 = vsel %vm2167, %v2118, -inf
  %v2358 = vrot.slane %v2357, 4
  %v2359 = vmax.f32 %v2357, %v2358
  %v2360 = vrot.slane %v2359, 2
  %v2361 = vmax.f32 %v2359, %v2360
  %v2362 = vrot.slane %v2361, 1
  %v2363 = vmax.f32 %v2361, %v2362
  %v2364 = vsel %vm2167, %v1992, -inf
  %v2365 = vrot.slane %v2364, 4
  %v2366 = vmax.f32 %v2364, %v2365
  %v2367 = vrot.slane %v2366, 2
  %v2368 = vmax.f32 %v2366, %v2367
  %v2369 = vrot.slane %v2368, 1
  %v2370 = vmax.f32 %v2368, %v2369
  %v2371 = vsel %vm2167, %v2119, -inf
  %v2372 = vrot.slane %v2371, 4
  %v2373 = vmax.f32 %v2371, %v2372
  %v2374 = vrot.slane %v2373, 2
  %v2375 = vmax.f32 %v2373, %v2374
  %v2376 = vrot.slane %v2375, 1
  %v2377 = vmax.f32 %v2375, %v2376
  %v2378 = vsel %vm2167, %v1993, -inf
  %v2379 = vrot.slane %v2378, 4
  %v2380 = vmax.f32 %v2378, %v2379
  %v2381 = vrot.slane %v2380, 2
  %v2382 = vmax.f32 %v2380, %v2381
  %v2383 = vrot.slane %v2382, 1
  %v2384 = vmax.f32 %v2382, %v2383
  %v2385 = vsel %vm2167, %v2120, -inf
  %v2386 = vrot.slane %v2385, 4
  %v2387 = vmax.f32 %v2385, %v2386
  %v2388 = vrot.slane %v2387, 2
  %v2389 = vmax.f32 %v2387, %v2388
  %v2390 = vrot.slane %v2389, 1
  %v2391 = vmax.f32 %v2389, %v2390
  %v2392 = vsel %vm2167, %v1994, -inf
  %v2393 = vrot.slane %v2392, 4
  %v2394 = vmax.f32 %v2392, %v2393
  %v2395 = vrot.slane %v2394, 2
  %v2396 = vmax.f32 %v2394, %v2395
  %v2397 = vrot.slane %v2396, 1
  %v2398 = vmax.f32 %v2396, %v2397
  %v2399 = vsel %vm2167, %v2121, -inf
  %v2400 = vrot.slane %v2399, 4
  %v2401 = vmax.f32 %v2399, %v2400
  %v2402 = vrot.slane %v2401, 2
  %v2403 = vmax.f32 %v2401, %v2402
  %v2404 = vrot.slane %v2403, 1
  %v2405 = vmax.f32 %v2403, %v2404
  %v2406 = vsel %vm2167, %v1995, -inf
  %v2407 = vrot.slane %v2406, 4
  %v2408 = vmax.f32 %v2406, %v2407
  %v2409 = vrot.slane %v2408, 2
  %v2410 = vmax.f32 %v2408, %v2409
  %v2411 = vrot.slane %v2410, 1
  %v2412 = vmax.f32 %v2410, %v2411
  %v2413 = vsel %vm2167, %v2122, -inf
  %v2414 = vrot.slane %v2413, 4
  %v2415 = vmax.f32 %v2413, %v2414
  %v2416 = vrot.slane %v2415, 2
  %v2417 = vmax.f32 %v2415, %v2416
  %v2418 = vrot.slane %v2417, 1
  %v2419 = vmax.f32 %v2417, %v2418
  %v2420 = vsel %vm2167, %v1996, -inf
  %v2421 = vrot.slane %v2420, 4
  %v2422 = vmax.f32 %v2420, %v2421
  %v2423 = vrot.slane %v2422, 2
  %v2424 = vmax.f32 %v2422, %v2423
  %v2425 = vrot.slane %v2424, 1
  %v2426 = vmax.f32 %v2424, %v2425
  %v2427 = vsel %vm2167, %v2123, -inf
  %v2428 = vrot.slane %v2427, 4
  %v2429 = vmax.f32 %v2427, %v2428
  %v2430 = vrot.slane %v2429, 2
  %v2431 = vmax.f32 %v2429, %v2430
  %v2432 = vrot.slane %v2431, 1
  %v2433 = vmax.f32 %v2431, %v2432
  %v2434 = vsel %vm2167, %v1997, -inf
  %v2435 = vrot.slane %v2434, 4
  %v2436 = vmax.f32 %v2434, %v2435
  %v2437 = vrot.slane %v2436, 2
  %v2438 = vmax.f32 %v2436, %v2437
  %v2439 = vrot.slane %v2438, 1
  %v2440 = vmax.f32 %v2438, %v2439
  %v2441 = vsel %vm2167, %v2124, -inf
  %v2442 = vrot.slane %v2441, 4
  %v2443 = vmax.f32 %v2441, %v2442
  %v2444 = vrot.slane %v2443, 2
  %v2445 = vmax.f32 %v2443, %v2444
  %v2446 = vrot.slane %v2445, 1
  %v2447 = vmax.f32 %v2445, %v2446
  %v2448 = vsel %vm2167, %v1998, -inf
  %v2449 = vrot.slane %v2448, 4
  %v2450 = vmax.f32 %v2448, %v2449
  %v2451 = vrot.slane %v2450, 2
  %v2452 = vmax.f32 %v2450, %v2451
  %v2453 = vrot.slane %v2452, 1
  %v2454 = vmax.f32 %v2452, %v2453
  %v2455 = vsel %vm2167, %v2125, -inf
  %v2456 = vrot.slane %v2455, 4
  %v2457 = vmax.f32 %v2455, %v2456
  %v2458 = vrot.slane %v2457, 2
  %v2459 = vmax.f32 %v2457, %v2458
  %v2460 = vrot.slane %v2459, 1
  %v2461 = vmax.f32 %v2459, %v2460
  %v2462 = vsel %vm2167, %v1999, -inf
  %v2463 = vrot.slane %v2462, 4
  %v2464 = vmax.f32 %v2462, %v2463
  %v2465 = vrot.slane %v2464, 2
  %v2466 = vmax.f32 %v2464, %v2465
  %v2467 = vrot.slane %v2466, 1
  %v2468 = vmax.f32 %v2466, %v2467
  %v2469 = vsel %vm2167, %v2126, -inf
  %v2470 = vrot.slane %v2469, 4
  %v2471 = vmax.f32 %v2469, %v2470
  %v2472 = vrot.slane %v2471, 2
  %v2473 = vmax.f32 %v2471, %v2472
  %v2474 = vrot.slane %v2473, 1
  %v2475 = vmax.f32 %v2473, %v2474
  %v2476 = vsel %vm2167, %v2000, -inf
  %v2477 = vrot.slane %v2476, 4
  %v2478 = vmax.f32 %v2476, %v2477
  %v2479 = vrot.slane %v2478, 2
  %v2480 = vmax.f32 %v2478, %v2479
  %v2481 = vrot.slane %v2480, 1
  %v2482 = vmax.f32 %v2480, %v2481
  %v2483 = vsel %vm2167, %v2127, -inf
  %v2484 = vrot.slane %v2483, 4
  %v2485 = vmax.f32 %v2483, %v2484
  %v2486 = vrot.slane %v2485, 2
  %v2487 = vmax.f32 %v2485, %v2486
  %v2488 = vrot.slane %v2487, 1
  %v2489 = vmax.f32 %v2487, %v2488
  %v2490 = vsel %vm2167, %v2001, -inf
  %v2491 = vrot.slane %v2490, 4
  %v2492 = vmax.f32 %v2490, %v2491
  %v2493 = vrot.slane %v2492, 2
  %v2494 = vmax.f32 %v2492, %v2493
  %v2495 = vrot.slane %v2494, 1
  %v2496 = vmax.f32 %v2494, %v2495
  %v2497 = vsel %vm2167, %v2128, -inf
  %v2498 = vrot.slane %v2497, 4
  %v2499 = vmax.f32 %v2497, %v2498
  %v2500 = vrot.slane %v2499, 2
  %v2501 = vmax.f32 %v2499, %v2500
  %v2502 = vrot.slane %v2501, 1
  %v2503 = vmax.f32 %v2501, %v2502
  %v2504 = vsel %vm2167, %v2002, -inf
  %v2505 = vrot.slane %v2504, 4
  %v2506 = vmax.f32 %v2504, %v2505
  %v2507 = vrot.slane %v2506, 2
  %v2508 = vmax.f32 %v2506, %v2507
  %v2509 = vrot.slane %v2508, 1
  %v2510 = vmax.f32 %v2508, %v2509
  %v2511 = vsel %vm2167, %v2129, -inf
  %v2512 = vrot.slane %v2511, 4
  %v2513 = vmax.f32 %v2511, %v2512
  %v2514 = vrot.slane %v2513, 2
  %v2515 = vmax.f32 %v2513, %v2514
  %v2516 = vrot.slane %v2515, 1
  %v2517 = vmax.f32 %v2515, %v2516
  %v2518 = vsel %vm2167, %v2003, -inf
  %v2519 = vrot.slane %v2518, 4
  %v2520 = vmax.f32 %v2518, %v2519
  %v2521 = vrot.slane %v2520, 2
  %v2522 = vmax.f32 %v2520, %v2521
  %v2523 = vrot.slane %v2522, 1
  %v2524 = vmax.f32 %v2522, %v2523
  %v2525 = vsel %vm2167, %v2130, -inf
  %v2526 = vrot.slane %v2525, 4
  %v2527 = vmax.f32 %v2525, %v2526
  %v2528 = vrot.slane %v2527, 2
  %v2529 = vmax.f32 %v2527, %v2528
  %v2530 = vrot.slane %v2529, 1
  %v2531 = vmax.f32 %v2529, %v2530
  %v2532 = vsel %vm2167, %v2004, -inf
  %v2533 = vrot.slane %v2532, 4
  %v2534 = vmax.f32 %v2532, %v2533
  %v2535 = vrot.slane %v2534, 2
  %v2536 = vmax.f32 %v2534, %v2535
  %v2537 = vrot.slane %v2536, 1
  %v2538 = vmax.f32 %v2536, %v2537
  %v2539 = vsel %vm2167, %v2131, -inf
  %v2540 = vrot.slane %v2539, 4
  %v2541 = vmax.f32 %v2539, %v2540
  %v2542 = vrot.slane %v2541, 2
  %v2543 = vmax.f32 %v2541, %v2542
  %v2544 = vrot.slane %v2543, 1
  %v2545 = vmax.f32 %v2543, %v2544
  %v2546 = vsel %vm2167, %v2005, -inf
  %v2547 = vrot.slane %v2546, 4
  %v2548 = vmax.f32 %v2546, %v2547
  %v2549 = vrot.slane %v2548, 2
  %v2550 = vmax.f32 %v2548, %v2549
  %v2551 = vrot.slane %v2550, 1
  %v2552 = vmax.f32 %v2550, %v2551
  %v2553 = vsel %vm2167, %v2132, -inf
  %v2554 = vrot.slane %v2553, 4
  %v2555 = vmax.f32 %v2553, %v2554
  %v2556 = vrot.slane %v2555, 2
  %v2557 = vmax.f32 %v2555, %v2556
  %v2558 = vrot.slane %v2557, 1
  %v2559 = vmax.f32 %v2557, %v2558
  %v2560 = vsel %vm2167, %v2006, -inf
  %v2561 = vrot.slane %v2560, 4
  %v2562 = vmax.f32 %v2560, %v2561
  %v2563 = vrot.slane %v2562, 2
  %v2564 = vmax.f32 %v2562, %v2563
  %v2565 = vrot.slane %v2564, 1
  %v2566 = vmax.f32 %v2564, %v2565
  %v2567 = vsel %vm2167, %v2133, -inf
  %v2568 = vrot.slane %v2567, 4
  %v2569 = vmax.f32 %v2567, %v2568
  %v2570 = vrot.slane %v2569, 2
  %v2571 = vmax.f32 %v2569, %v2570
  %v2572 = vrot.slane %v2571, 1
  %v2573 = vmax.f32 %v2571, %v2572
  %v2574 = vsel %vm2167, %v2007, -inf
  %v2575 = vrot.slane %v2574, 4
  %v2576 = vmax.f32 %v2574, %v2575
  %v2577 = vrot.slane %v2576, 2
  %v2578 = vmax.f32 %v2576, %v2577
  %v2579 = vrot.slane %v2578, 1
  %v2580 = vmax.f32 %v2578, %v2579
  %v2581 = vsel %vm2167, %v2134, -inf
  %v2582 = vrot.slane %v2581, 4
  %v2583 = vmax.f32 %v2581, %v2582
  %v2584 = vrot.slane %v2583, 2
  %v2585 = vmax.f32 %v2583, %v2584
  %v2586 = vrot.slane %v2585, 1
  %v2587 = vmax.f32 %v2585, %v2586
  %v2588 = vsel %vm2167, %v2008, -inf
  %v2589 = vrot.slane %v2588, 4
  %v2590 = vmax.f32 %v2588, %v2589
  %v2591 = vrot.slane %v2590, 2
  %v2592 = vmax.f32 %v2590, %v2591
  %v2593 = vrot.slane %v2592, 1
  %v2594 = vmax.f32 %v2592, %v2593
  %v2595 = vsel %vm2167, %v2135, -inf
  %v2596 = vrot.slane %v2595, 4
  %v2597 = vmax.f32 %v2595, %v2596
  %v2598 = vrot.slane %v2597, 2
  %v2599 = vmax.f32 %v2597, %v2598
  %v2600 = vrot.slane %v2599, 1
  %v2601 = vmax.f32 %v2599, %v2600
  %v2602 = vsel %vm2167, %v2009, -inf
  %v2603 = vrot.slane %v2602, 4
  %v2604 = vmax.f32 %v2602, %v2603
  %v2605 = vrot.slane %v2604, 2
  %v2606 = vmax.f32 %v2604, %v2605
  %v2607 = vrot.slane %v2606, 1
  %v2608 = vmax.f32 %v2606, %v2607
  %v2609 = vmax.f32 %v2174, 0.0
  %v2610 = vmax.f32 %v2181, 0.0
  %v2611 = vmax.f32 %v2188, 0.0
  %v2612 = vmax.f32 %v2195, 0.0
  %v2613 = vmax.f32 %v2202, 0.0
  %v2614 = vmax.f32 %v2209, 0.0
  %v2615 = vmax.f32 %v2216, 0.0
  %v2616 = vmax.f32 %v2223, 0.0
  %v2617 = vmax.f32 %v2230, 0.0
  %v2618 = vmax.f32 %v2237, 0.0
  %v2619 = vmax.f32 %v2244, 0.0
  %v2620 = vmax.f32 %v2251, 0.0
  %v2621 = vmax.f32 %v2258, 0.0
  %v2622 = vmax.f32 %v2265, 0.0
  %v2623 = vmax.f32 %v2272, 0.0
  %v2624 = vmax.f32 %v2279, 0.0
  %v2625 = vmax.f32 %v2286, 0.0
  %v2626 = vmax.f32 %v2293, 0.0
  %v2627 = vmax.f32 %v2300, 0.0
  %v2628 = vmax.f32 %v2307, 0.0
  %v2629 = vmax.f32 %v2314, 0.0
  %v2630 = vmax.f32 %v2321, 0.0
  %v2631 = vmax.f32 %v2328, 0.0
  %v2632 = vmax.f32 %v2335, 0.0
  %v2633 = vmax.f32 %v2342, 0.0
  %v2634 = vmax.f32 %v2349, 0.0
  %v2635 = vmax.f32 %v2356, 0.0
  %v2636 = vmax.f32 %v2363, 0.0
  %v2637 = vmax.f32 %v2370, 0.0
  %v2638 = vmax.f32 %v2377, 0.0
  %v2639 = vmax.f32 %v2384, 0.0
  %v2640 = vmax.f32 %v2391, 0.0
  %v2641 = vmax.f32 %v2398, 0.0
  %v2642 = vmax.f32 %v2405, 0.0
  %v2643 = vmax.f32 %v2412, 0.0
  %v2644 = vmax.f32 %v2419, 0.0
  %v2645 = vmax.f32 %v2426, 0.0
  %v2646 = vmax.f32 %v2433, 0.0
  %v2647 = vmax.f32 %v2440, 0.0
  %v2648 = vmax.f32 %v2447, 0.0
  %v2649 = vmax.f32 %v2454, 0.0
  %v2650 = vmax.f32 %v2461, 0.0
  %v2651 = vmax.f32 %v2468, 0.0
  %v2652 = vmax.f32 %v2475, 0.0
  %v2653 = vmax.f32 %v2482, 0.0
  %v2654 = vmax.f32 %v2489, 0.0
  %v2655 = vmax.f32 %v2496, 0.0
  %v2656 = vmax.f32 %v2503, 0.0
  %v2657 = vmax.f32 %v2510, 0.0
  %v2658 = vmax.f32 %v2517, 0.0
  %v2659 = vmax.f32 %v2524, 0.0
  %v2660 = vmax.f32 %v2531, 0.0
  %v2661 = vmax.f32 %v2538, 0.0
  %v2662 = vmax.f32 %v2545, 0.0
  %v2663 = vmax.f32 %v2552, 0.0
  %v2664 = vmax.f32 %v2559, 0.0
  %v2665 = vmax.f32 %v2566, 0.0
  %v2666 = vmax.f32 %v2573, 0.0
  %v2667 = vmax.f32 %v2580, 0.0
  %v2668 = vmax.f32 %v2587, 0.0
  %v2669 = vmax.f32 %v2594, 0.0
  %v2670 = vmax.f32 %v2601, 0.0
  %v2671 = vmax.f32 %v2608, 0.0
  %v2703 = vcombine.high %v2042, %v2042
  %v2704 = vcombine.high %v2043, %v2043
  %v2705 = vcombine.high %v2044, %v2044
  %v2706 = vcombine.high %v2045, %v2045
  %v2707 = vcombine.high %v2046, %v2046
  %v2708 = vcombine.high %v2047, %v2047
  %v2709 = vcombine.high %v2048, %v2048
  %v2710 = vcombine.high %v2049, %v2049
  %v2711 = vcombine.high %v2050, %v2050
  %v2712 = vcombine.high %v2051, %v2051
  %v2713 = vcombine.high %v2052, %v2052
  %v2714 = vcombine.high %v2053, %v2053
  %v2715 = vcombine.high %v2054, %v2054
  %v2716 = vcombine.high %v2055, %v2055
  %v2717 = vcombine.high %v2056, %v2056
  %v2718 = vcombine.high %v2057, %v2057
  %v2719 = vcombine.high %v2058, %v2058
  %v2720 = vcombine.high %v2059, %v2059
  %v2721 = vcombine.high %v2060, %v2060
  %v2722 = vcombine.high %v2061, %v2061
  %v2723 = vcombine.high %v2062, %v2062
  %v2724 = vcombine.high %v2063, %v2063
  %v2725 = vcombine.high %v2064, %v2064
  %v2726 = vcombine.high %v2065, %v2065
  %v2727 = vcombine.high %v2066, %v2066
  %v2728 = vcombine.high %v2067, %v2067
  %v2729 = vcombine.high %v2068, %v2068
  %v2730 = vcombine.high %v2069, %v2069
  %v2731 = vcombine.high %v2070, %v2070
  %v2732 = vcombine.high %v2071, %v2071
  %v2733 = vcombine.high %v2072, %v2072
  %v2765 = vsel %vm2167, %v2042, -inf
  %v2766 = vrot.slane %v2765, 4
  %v2767 = vmax.f32 %v2765, %v2766
  %v2768 = vrot.slane %v2767, 2
  %v2769 = vmax.f32 %v2767, %v2768
  %v2770 = vrot.slane %v2769, 1
  %v2771 = vmax.f32 %v2769, %v2770
  %v2772 = vsel %vm2167, %v2703, -inf
  %v2773 = vrot.slane %v2772, 4
  %v2774 = vmax.f32 %v2772, %v2773
  %v2775 = vrot.slane %v2774, 2
  %v2776 = vmax.f32 %v2774, %v2775
  %v2777 = vrot.slane %v2776, 1
  %v2778 = vmax.f32 %v2776, %v2777
  %v2779 = vsel %vm2167, %v2043, -inf
  %v2780 = vrot.slane %v2779, 4
  %v2781 = vmax.f32 %v2779, %v2780
  %v2782 = vrot.slane %v2781, 2
  %v2783 = vmax.f32 %v2781, %v2782
  %v2784 = vrot.slane %v2783, 1
  %v2785 = vmax.f32 %v2783, %v2784
  %v2786 = vsel %vm2167, %v2704, -inf
  %v2787 = vrot.slane %v2786, 4
  %v2788 = vmax.f32 %v2786, %v2787
  %v2789 = vrot.slane %v2788, 2
  %v2790 = vmax.f32 %v2788, %v2789
  %v2791 = vrot.slane %v2790, 1
  %v2792 = vmax.f32 %v2790, %v2791
  %v2793 = vsel %vm2167, %v2044, -inf
  %v2794 = vrot.slane %v2793, 4
  %v2795 = vmax.f32 %v2793, %v2794
  %v2796 = vrot.slane %v2795, 2
  %v2797 = vmax.f32 %v2795, %v2796
  %v2798 = vrot.slane %v2797, 1
  %v2799 = vmax.f32 %v2797, %v2798
  %v2800 = vsel %vm2167, %v2705, -inf
  %v2801 = vrot.slane %v2800, 4
  %v2802 = vmax.f32 %v2800, %v2801
  %v2803 = vrot.slane %v2802, 2
  %v2804 = vmax.f32 %v2802, %v2803
  %v2805 = vrot.slane %v2804, 1
  %v2806 = vmax.f32 %v2804, %v2805
  %v2807 = vsel %vm2167, %v2045, -inf
  %v2808 = vrot.slane %v2807, 4
  %v2809 = vmax.f32 %v2807, %v2808
  %v2810 = vrot.slane %v2809, 2
  %v2811 = vmax.f32 %v2809, %v2810
  %v2812 = vrot.slane %v2811, 1
  %v2813 = vmax.f32 %v2811, %v2812
  %v2814 = vsel %vm2167, %v2706, -inf
  %v2815 = vrot.slane %v2814, 4
  %v2816 = vmax.f32 %v2814, %v2815
  %v2817 = vrot.slane %v2816, 2
  %v2818 = vmax.f32 %v2816, %v2817
  %v2819 = vrot.slane %v2818, 1
  %v2820 = vmax.f32 %v2818, %v2819
  %v2821 = vsel %vm2167, %v2046, -inf
  %v2822 = vrot.slane %v2821, 4
  %v2823 = vmax.f32 %v2821, %v2822
  %v2824 = vrot.slane %v2823, 2
  %v2825 = vmax.f32 %v2823, %v2824
  %v2826 = vrot.slane %v2825, 1
  %v2827 = vmax.f32 %v2825, %v2826
  %v2828 = vsel %vm2167, %v2707, -inf
  %v2829 = vrot.slane %v2828, 4
  %v2830 = vmax.f32 %v2828, %v2829
  %v2831 = vrot.slane %v2830, 2
  %v2832 = vmax.f32 %v2830, %v2831
  %v2833 = vrot.slane %v2832, 1
  %v2834 = vmax.f32 %v2832, %v2833
  %v2835 = vsel %vm2167, %v2047, -inf
  %v2836 = vrot.slane %v2835, 4
  %v2837 = vmax.f32 %v2835, %v2836
  %v2838 = vrot.slane %v2837, 2
  %v2839 = vmax.f32 %v2837, %v2838
  %v2840 = vrot.slane %v2839, 1
  %v2841 = vmax.f32 %v2839, %v2840
  %v2842 = vsel %vm2167, %v2708, -inf
  %v2843 = vrot.slane %v2842, 4
  %v2844 = vmax.f32 %v2842, %v2843
  %v2845 = vrot.slane %v2844, 2
  %v2846 = vmax.f32 %v2844, %v2845
  %v2847 = vrot.slane %v2846, 1
  %v2848 = vmax.f32 %v2846, %v2847
  %v2849 = vsel %vm2167, %v2048, -inf
  %v2850 = vrot.slane %v2849, 4
  %v2851 = vmax.f32 %v2849, %v2850
  %v2852 = vrot.slane %v2851, 2
  %v2853 = vmax.f32 %v2851, %v2852
  %v2854 = vrot.slane %v2853, 1
  %v2855 = vmax.f32 %v2853, %v2854
  %v2856 = vsel %vm2167, %v2709, -inf
  %v2857 = vrot.slane %v2856, 4
  %v2858 = vmax.f32 %v2856, %v2857
  %v2859 = vrot.slane %v2858, 2
  %v2860 = vmax.f32 %v2858, %v2859
  %v2861 = vrot.slane %v2860, 1
  %v2862 = vmax.f32 %v2860, %v2861
  %v2863 = vsel %vm2167, %v2049, -inf
  %v2864 = vrot.slane %v2863, 4
  %v2865 = vmax.f32 %v2863, %v2864
  %v2866 = vrot.slane %v2865, 2
  %v2867 = vmax.f32 %v2865, %v2866
  %v2868 = vrot.slane %v2867, 1
  %v2869 = vmax.f32 %v2867, %v2868
  %v2870 = vsel %vm2167, %v2710, -inf
  %v2871 = vrot.slane %v2870, 4
  %v2872 = vmax.f32 %v2870, %v2871
  %v2873 = vrot.slane %v2872, 2
  %v2874 = vmax.f32 %v2872, %v2873
  %v2875 = vrot.slane %v2874, 1
  %v2876 = vmax.f32 %v2874, %v2875
  %v2877 = vsel %vm2167, %v2050, -inf
  %v2878 = vrot.slane %v2877, 4
  %v2879 = vmax.f32 %v2877, %v2878
  %v2880 = vrot.slane %v2879, 2
  %v2881 = vmax.f32 %v2879, %v2880
  %v2882 = vrot.slane %v2881, 1
  %v2883 = vmax.f32 %v2881, %v2882
  %v2884 = vsel %vm2167, %v2711, -inf
  %v2885 = vrot.slane %v2884, 4
  %v2886 = vmax.f32 %v2884, %v2885
  %v2887 = vrot.slane %v2886, 2
  %v2888 = vmax.f32 %v2886, %v2887
  %v2889 = vrot.slane %v2888, 1
  %v2890 = vmax.f32 %v2888, %v2889
  %v2891 = vsel %vm2167, %v2051, -inf
  %v2892 = vrot.slane %v2891, 4
  %v2893 = vmax.f32 %v2891, %v2892
  %v2894 = vrot.slane %v2893, 2
  %v2895 = vmax.f32 %v2893, %v2894
  %v2896 = vrot.slane %v2895, 1
  %v2897 = vmax.f32 %v2895, %v2896
  %v2898 = vsel %vm2167, %v2712, -inf
  %v2899 = vrot.slane %v2898, 4
  %v2900 = vmax.f32 %v2898, %v2899
  %v2901 = vrot.slane %v2900, 2
  %v2902 = vmax.f32 %v2900, %v2901
  %v2903 = vrot.slane %v2902, 1
  %v2904 = vmax.f32 %v2902, %v2903
  %v2905 = vsel %vm2167, %v2052, -inf
  %v2906 = vrot.slane %v2905, 4
  %v2907 = vmax.f32 %v2905, %v2906
  %v2908 = vrot.slane %v2907, 2
  %v2909 = vmax.f32 %v2907, %v2908
  %v2910 = vrot.slane %v2909, 1
  %v2911 = vmax.f32 %v2909, %v2910
  %v2912 = vsel %vm2167, %v2713, -inf
  %v2913 = vrot.slane %v2912, 4
  %v2914 = vmax.f32 %v2912, %v2913
  %v2915 = vrot.slane %v2914, 2
  %v2916 = vmax.f32 %v2914, %v2915
  %v2917 = vrot.slane %v2916, 1
  %v2918 = vmax.f32 %v2916, %v2917
  %v2919 = vsel %vm2167, %v2053, -inf
  %v2920 = vrot.slane %v2919, 4
  %v2921 = vmax.f32 %v2919, %v2920
  %v2922 = vrot.slane %v2921, 2
  %v2923 = vmax.f32 %v2921, %v2922
  %v2924 = vrot.slane %v2923, 1
  %v2925 = vmax.f32 %v2923, %v2924
  %v2926 = vsel %vm2167, %v2714, -inf
  %v2927 = vrot.slane %v2926, 4
  %v2928 = vmax.f32 %v2926, %v2927
  %v2929 = vrot.slane %v2928, 2
  %v2930 = vmax.f32 %v2928, %v2929
  %v2931 = vrot.slane %v2930, 1
  %v2932 = vmax.f32 %v2930, %v2931
  %v2933 = vsel %vm2167, %v2054, -inf
  %v2934 = vrot.slane %v2933, 4
  %v2935 = vmax.f32 %v2933, %v2934
  %v2936 = vrot.slane %v2935, 2
  %v2937 = vmax.f32 %v2935, %v2936
  %v2938 = vrot.slane %v2937, 1
  %v2939 = vmax.f32 %v2937, %v2938
  %v2940 = vsel %vm2167, %v2715, -inf
  %v2941 = vrot.slane %v2940, 4
  %v2942 = vmax.f32 %v2940, %v2941
  %v2943 = vrot.slane %v2942, 2
  %v2944 = vmax.f32 %v2942, %v2943
  %v2945 = vrot.slane %v2944, 1
  %v2946 = vmax.f32 %v2944, %v2945
  %v2947 = vsel %vm2167, %v2055, -inf
  %v2948 = vrot.slane %v2947, 4
  %v2949 = vmax.f32 %v2947, %v2948
  %v2950 = vrot.slane %v2949, 2
  %v2951 = vmax.f32 %v2949, %v2950
  %v2952 = vrot.slane %v2951, 1
  %v2953 = vmax.f32 %v2951, %v2952
  %v2954 = vsel %vm2167, %v2716, -inf
  %v2955 = vrot.slane %v2954, 4
  %v2956 = vmax.f32 %v2954, %v2955
  %v2957 = vrot.slane %v2956, 2
  %v2958 = vmax.f32 %v2956, %v2957
  %v2959 = vrot.slane %v2958, 1
  %v2960 = vmax.f32 %v2958, %v2959
  %v2961 = vsel %vm2167, %v2056, -inf
  %v2962 = vrot.slane %v2961, 4
  %v2963 = vmax.f32 %v2961, %v2962
  %v2964 = vrot.slane %v2963, 2
  %v2965 = vmax.f32 %v2963, %v2964
  %v2966 = vrot.slane %v2965, 1
  %v2967 = vmax.f32 %v2965, %v2966
  %v2968 = vsel %vm2167, %v2717, -inf
  %v2969 = vrot.slane %v2968, 4
  %v2970 = vmax.f32 %v2968, %v2969
  %v2971 = vrot.slane %v2970, 2
  %v2972 = vmax.f32 %v2970, %v2971
  %v2973 = vrot.slane %v2972, 1
  %v2974 = vmax.f32 %v2972, %v2973
  %v2975 = vsel %vm2167, %v2057, -inf
  %v2976 = vrot.slane %v2975, 4
  %v2977 = vmax.f32 %v2975, %v2976
  %v2978 = vrot.slane %v2977, 2
  %v2979 = vmax.f32 %v2977, %v2978
  %v2980 = vrot.slane %v2979, 1
  %v2981 = vmax.f32 %v2979, %v2980
  %v2982 = vsel %vm2167, %v2718, -inf
  %v2983 = vrot.slane %v2982, 4
  %v2984 = vmax.f32 %v2982, %v2983
  %v2985 = vrot.slane %v2984, 2
  %v2986 = vmax.f32 %v2984, %v2985
  %v2987 = vrot.slane %v2986, 1
  %v2988 = vmax.f32 %v2986, %v2987
  %v2989 = vsel %vm2167, %v2058, -inf
  %v2990 = vrot.slane %v2989, 4
  %v2991 = vmax.f32 %v2989, %v2990
  %v2992 = vrot.slane %v2991, 2
  %v2993 = vmax.f32 %v2991, %v2992
  %v2994 = vrot.slane %v2993, 1
  %v2995 = vmax.f32 %v2993, %v2994
  %v2996 = vsel %vm2167, %v2719, -inf
  %v2997 = vrot.slane %v2996, 4
  %v2998 = vmax.f32 %v2996, %v2997
  %v2999 = vrot.slane %v2998, 2
  %v3000 = vmax.f32 %v2998, %v2999
  %v3001 = vrot.slane %v3000, 1
  %v3002 = vmax.f32 %v3000, %v3001
  %v3003 = vsel %vm2167, %v2059, -inf
  %v3004 = vrot.slane %v3003, 4
  %v3005 = vmax.f32 %v3003, %v3004
  %v3006 = vrot.slane %v3005, 2
  %v3007 = vmax.f32 %v3005, %v3006
  %v3008 = vrot.slane %v3007, 1
  %v3009 = vmax.f32 %v3007, %v3008
  %v3010 = vsel %vm2167, %v2720, -inf
  %v3011 = vrot.slane %v3010, 4
  %v3012 = vmax.f32 %v3010, %v3011
  %v3013 = vrot.slane %v3012, 2
  %v3014 = vmax.f32 %v3012, %v3013
  %v3015 = vrot.slane %v3014, 1
  %v3016 = vmax.f32 %v3014, %v3015
  %v3017 = vsel %vm2167, %v2060, -inf
  %v3018 = vrot.slane %v3017, 4
  %v3019 = vmax.f32 %v3017, %v3018
  %v3020 = vrot.slane %v3019, 2
  %v3021 = vmax.f32 %v3019, %v3020
  %v3022 = vrot.slane %v3021, 1
  %v3023 = vmax.f32 %v3021, %v3022
  %v3024 = vsel %vm2167, %v2721, -inf
  %v3025 = vrot.slane %v3024, 4
  %v3026 = vmax.f32 %v3024, %v3025
  %v3027 = vrot.slane %v3026, 2
  %v3028 = vmax.f32 %v3026, %v3027
  %v3029 = vrot.slane %v3028, 1
  %v3030 = vmax.f32 %v3028, %v3029
  %v3031 = vsel %vm2167, %v2061, -inf
  %v3032 = vrot.slane %v3031, 4
  %v3033 = vmax.f32 %v3031, %v3032
  %v3034 = vrot.slane %v3033, 2
  %v3035 = vmax.f32 %v3033, %v3034
  %v3036 = vrot.slane %v3035, 1
  %v3037 = vmax.f32 %v3035, %v3036
  %v3038 = vsel %vm2167, %v2722, -inf
  %v3039 = vrot.slane %v3038, 4
  %v3040 = vmax.f32 %v3038, %v3039
  %v3041 = vrot.slane %v3040, 2
  %v3042 = vmax.f32 %v3040, %v3041
  %v3043 = vrot.slane %v3042, 1
  %v3044 = vmax.f32 %v3042, %v3043
  %v3045 = vsel %vm2167, %v2062, -inf
  %v3046 = vrot.slane %v3045, 4
  %v3047 = vmax.f32 %v3045, %v3046
  %v3048 = vrot.slane %v3047, 2
  %v3049 = vmax.f32 %v3047, %v3048
  %v3050 = vrot.slane %v3049, 1
  %v3051 = vmax.f32 %v3049, %v3050
  %v3052 = vsel %vm2167, %v2723, -inf
  %v3053 = vrot.slane %v3052, 4
  %v3054 = vmax.f32 %v3052, %v3053
  %v3055 = vrot.slane %v3054, 2
  %v3056 = vmax.f32 %v3054, %v3055
  %v3057 = vrot.slane %v3056, 1
  %v3058 = vmax.f32 %v3056, %v3057
  %v3059 = vsel %vm2167, %v2063, -inf
  %v3060 = vrot.slane %v3059, 4
  %v3061 = vmax.f32 %v3059, %v3060
  %v3062 = vrot.slane %v3061, 2
  %v3063 = vmax.f32 %v3061, %v3062
  %v3064 = vrot.slane %v3063, 1
  %v3065 = vmax.f32 %v3063, %v3064
  %v3066 = vsel %vm2167, %v2724, -inf
  %v3067 = vrot.slane %v3066, 4
  %v3068 = vmax.f32 %v3066, %v3067
  %v3069 = vrot.slane %v3068, 2
  %v3070 = vmax.f32 %v3068, %v3069
  %v3071 = vrot.slane %v3070, 1
  %v3072 = vmax.f32 %v3070, %v3071
  %v3073 = vsel %vm2167, %v2064, -inf
  %v3074 = vrot.slane %v3073, 4
  %v3075 = vmax.f32 %v3073, %v3074
  %v3076 = vrot.slane %v3075, 2
  %v3077 = vmax.f32 %v3075, %v3076
  %v3078 = vrot.slane %v3077, 1
  %v3079 = vmax.f32 %v3077, %v3078
  %v3080 = vsel %vm2167, %v2725, -inf
  %v3081 = vrot.slane %v3080, 4
  %v3082 = vmax.f32 %v3080, %v3081
  %v3083 = vrot.slane %v3082, 2
  %v3084 = vmax.f32 %v3082, %v3083
  %v3085 = vrot.slane %v3084, 1
  %v3086 = vmax.f32 %v3084, %v3085
  %v3087 = vsel %vm2167, %v2065, -inf
  %v3088 = vrot.slane %v3087, 4
  %v3089 = vmax.f32 %v3087, %v3088
  %v3090 = vrot.slane %v3089, 2
  %v3091 = vmax.f32 %v3089, %v3090
  %v3092 = vrot.slane %v3091, 1
  %v3093 = vmax.f32 %v3091, %v3092
  %v3094 = vsel %vm2167, %v2726, -inf
  %v3095 = vrot.slane %v3094, 4
  %v3096 = vmax.f32 %v3094, %v3095
  %v3097 = vrot.slane %v3096, 2
  %v3098 = vmax.f32 %v3096, %v3097
  %v3099 = vrot.slane %v3098, 1
  %v3100 = vmax.f32 %v3098, %v3099
  %v3101 = vsel %vm2167, %v2066, -inf
  %v3102 = vrot.slane %v3101, 4
  %v3103 = vmax.f32 %v3101, %v3102
  %v3104 = vrot.slane %v3103, 2
  %v3105 = vmax.f32 %v3103, %v3104
  %v3106 = vrot.slane %v3105, 1
  %v3107 = vmax.f32 %v3105, %v3106
  %v3108 = vsel %vm2167, %v2727, -inf
  %v3109 = vrot.slane %v3108, 4
  %v3110 = vmax.f32 %v3108, %v3109
  %v3111 = vrot.slane %v3110, 2
  %v3112 = vmax.f32 %v3110, %v3111
  %v3113 = vrot.slane %v3112, 1
  %v3114 = vmax.f32 %v3112, %v3113
  %v3115 = vsel %vm2167, %v2067, -inf
  %v3116 = vrot.slane %v3115, 4
  %v3117 = vmax.f32 %v3115, %v3116
  %v3118 = vrot.slane %v3117, 2
  %v3119 = vmax.f32 %v3117, %v3118
  %v3120 = vrot.slane %v3119, 1
  %v3121 = vmax.f32 %v3119, %v3120
  %v3122 = vsel %vm2167, %v2728, -inf
  %v3123 = vrot.slane %v3122, 4
  %v3124 = vmax.f32 %v3122, %v3123
  %v3125 = vrot.slane %v3124, 2
  %v3126 = vmax.f32 %v3124, %v3125
  %v3127 = vrot.slane %v3126, 1
  %v3128 = vmax.f32 %v3126, %v3127
  %v3129 = vsel %vm2167, %v2068, -inf
  %v3130 = vrot.slane %v3129, 4
  %v3131 = vmax.f32 %v3129, %v3130
  %v3132 = vrot.slane %v3131, 2
  %v3133 = vmax.f32 %v3131, %v3132
  %v3134 = vrot.slane %v3133, 1
  %v3135 = vmax.f32 %v3133, %v3134
  %v3136 = vsel %vm2167, %v2729, -inf
  %v3137 = vrot.slane %v3136, 4
  %v3138 = vmax.f32 %v3136, %v3137
  %v3139 = vrot.slane %v3138, 2
  %v3140 = vmax.f32 %v3138, %v3139
  %v3141 = vrot.slane %v3140, 1
  %v3142 = vmax.f32 %v3140, %v3141
  %v3143 = vsel %vm2167, %v2069, -inf
  %v3144 = vrot.slane %v3143, 4
  %v3145 = vmax.f32 %v3143, %v3144
  %v3146 = vrot.slane %v3145, 2
  %v3147 = vmax.f32 %v3145, %v3146
  %v3148 = vrot.slane %v3147, 1
  %v3149 = vmax.f32 %v3147, %v3148
  %v3150 = vsel %vm2167, %v2730, -inf
  %v3151 = vrot.slane %v3150, 4
  %v3152 = vmax.f32 %v3150, %v3151
  %v3153 = vrot.slane %v3152, 2
  %v3154 = vmax.f32 %v3152, %v3153
  %v3155 = vrot.slane %v3154, 1
  %v3156 = vmax.f32 %v3154, %v3155
  %v3157 = vsel %vm2167, %v2070, -inf
  %v3158 = vrot.slane %v3157, 4
  %v3159 = vmax.f32 %v3157, %v3158
  %v3160 = vrot.slane %v3159, 2
  %v3161 = vmax.f32 %v3159, %v3160
  %v3162 = vrot.slane %v3161, 1
  %v3163 = vmax.f32 %v3161, %v3162
  %v3164 = vsel %vm2167, %v2731, -inf
  %v3165 = vrot.slane %v3164, 4
  %v3166 = vmax.f32 %v3164, %v3165
  %v3167 = vrot.slane %v3166, 2
  %v3168 = vmax.f32 %v3166, %v3167
  %v3169 = vrot.slane %v3168, 1
  %v3170 = vmax.f32 %v3168, %v3169
  %v3171 = vsel %vm2167, %v2071, -inf
  %v3172 = vrot.slane %v3171, 4
  %v3173 = vmax.f32 %v3171, %v3172
  %v3174 = vrot.slane %v3173, 2
  %v3175 = vmax.f32 %v3173, %v3174
  %v3176 = vrot.slane %v3175, 1
  %v3177 = vmax.f32 %v3175, %v3176
  %v3178 = vsel %vm2167, %v2732, -inf
  %v3179 = vrot.slane %v3178, 4
  %v3180 = vmax.f32 %v3178, %v3179
  %v3181 = vrot.slane %v3180, 2
  %v3182 = vmax.f32 %v3180, %v3181
  %v3183 = vrot.slane %v3182, 1
  %v3184 = vmax.f32 %v3182, %v3183
  %v3185 = vsel %vm2167, %v2072, -inf
  %v3186 = vrot.slane %v3185, 4
  %v3187 = vmax.f32 %v3185, %v3186
  %v3188 = vrot.slane %v3187, 2
  %v3189 = vmax.f32 %v3187, %v3188
  %v3190 = vrot.slane %v3189, 1
  %v3191 = vmax.f32 %v3189, %v3190
  %v3192 = vsel %vm2167, %v2733, -inf
  %v3193 = vrot.slane %v3192, 4
  %v3194 = vmax.f32 %v3192, %v3193
  %v3195 = vrot.slane %v3194, 2
  %v3196 = vmax.f32 %v3194, %v3195
  %v3197 = vrot.slane %v3196, 1
  %v3198 = vmax.f32 %v3196, %v3197
  %v3199 = vsel %vm2167, %v2073, -inf
  %v3200 = vrot.slane %v3199, 4
  %v3201 = vmax.f32 %v3199, %v3200
  %v3202 = vrot.slane %v3201, 2
  %v3203 = vmax.f32 %v3201, %v3202
  %v3204 = vrot.slane %v3203, 1
  %v3205 = vmax.f32 %v3203, %v3204
  %v3206 = vmax.f32 %v2771, 0.0
  %v3207 = vmax.f32 %v2778, 0.0
  %v3208 = vmax.f32 %v2785, 0.0
  %v3209 = vmax.f32 %v2792, 0.0
  %v3210 = vmax.f32 %v2799, 0.0
  %v3211 = vmax.f32 %v2806, 0.0
  %v3212 = vmax.f32 %v2813, 0.0
  %v3213 = vmax.f32 %v2820, 0.0
  %v3214 = vmax.f32 %v2827, 0.0
  %v3215 = vmax.f32 %v2834, 0.0
  %v3216 = vmax.f32 %v2841, 0.0
  %v3217 = vmax.f32 %v2848, 0.0
  %v3218 = vmax.f32 %v2855, 0.0
  %v3219 = vmax.f32 %v2862, 0.0
  %v3220 = vmax.f32 %v2869, 0.0
  %v3221 = vmax.f32 %v2876, 0.0
  %v3222 = vmax.f32 %v2883, 0.0
  %v3223 = vmax.f32 %v2890, 0.0
  %v3224 = vmax.f32 %v2897, 0.0
  %v3225 = vmax.f32 %v2904, 0.0
  %v3226 = vmax.f32 %v2911, 0.0
  %v3227 = vmax.f32 %v2918, 0.0
  %v3228 = vmax.f32 %v2925, 0.0
  %v3229 = vmax.f32 %v2932, 0.0
  %v3230 = vmax.f32 %v2939, 0.0
  %v3231 = vmax.f32 %v2946, 0.0
  %v3232 = vmax.f32 %v2953, 0.0
  %v3233 = vmax.f32 %v2960, 0.0
  %v3234 = vmax.f32 %v2967, 0.0
  %v3235 = vmax.f32 %v2974, 0.0
  %v3236 = vmax.f32 %v2981, 0.0
  %v3237 = vmax.f32 %v2988, 0.0
  %v3238 = vmax.f32 %v2995, 0.0
  %v3239 = vmax.f32 %v3002, 0.0
  %v3240 = vmax.f32 %v3009, 0.0
  %v3241 = vmax.f32 %v3016, 0.0
  %v3242 = vmax.f32 %v3023, 0.0
  %v3243 = vmax.f32 %v3030, 0.0
  %v3244 = vmax.f32 %v3037, 0.0
  %v3245 = vmax.f32 %v3044, 0.0
  %v3246 = vmax.f32 %v3051, 0.0
  %v3247 = vmax.f32 %v3058, 0.0
  %v3248 = vmax.f32 %v3065, 0.0
  %v3249 = vmax.f32 %v3072, 0.0
  %v3250 = vmax.f32 %v3079, 0.0
  %v3251 = vmax.f32 %v3086, 0.0
  %v3252 = vmax.f32 %v3093, 0.0
  %v3253 = vmax.f32 %v3100, 0.0
  %v3254 = vmax.f32 %v3107, 0.0
  %v3255 = vmax.f32 %v3114, 0.0
  %v3256 = vmax.f32 %v3121, 0.0
  %v3257 = vmax.f32 %v3128, 0.0
  %v3258 = vmax.f32 %v3135, 0.0
  %v3259 = vmax.f32 %v3142, 0.0
  %v3260 = vmax.f32 %v3149, 0.0
  %v3261 = vmax.f32 %v3156, 0.0
  %v3262 = vmax.f32 %v3163, 0.0
  %v3263 = vmax.f32 %v3170, 0.0
  %v3264 = vmax.f32 %v3177, 0.0
  %v3265 = vmax.f32 %v3184, 0.0
  %v3266 = vmax.f32 %v3191, 0.0
  %v3267 = vmax.f32 %v3198, 0.0
  %v3268 = vmax.f32 %v3205, 0.0
  %vm3330 = vcmask 1041409
  %v3331 = vsel %vm3330, %v2610, %v2609
  %vm3332 = vcmask 1042434
  %v3333 = vsel %vm3332, %v2611, %v3331
  %vm3334 = vcmask 1043459
  %v3335 = vsel %vm3334, %v2612, %v3333
  %vm3336 = vcmask 1044484
  %v3337 = vsel %vm3336, %v2613, %v3335
  %vm3338 = vcmask 1045509
  %v3339 = vsel %vm3338, %v2614, %v3337
  %vm3340 = vcmask 1046534
  %v3341 = vsel %vm3340, %v2615, %v3339
  %vm3342 = vcmask 1047559
  %v3343 = vsel %vm3342, %v2616, %v3341
  %v3344 = vsel %vm3330, %v2618, %v2617
  %v3345 = vsel %vm3332, %v2619, %v3344
  %v3346 = vsel %vm3334, %v2620, %v3345
  %v3347 = vsel %vm3336, %v2621, %v3346
  %v3348 = vsel %vm3338, %v2622, %v3347
  %v3349 = vsel %vm3340, %v2623, %v3348
  %v3350 = vsel %vm3342, %v2624, %v3349
  %v3351 = vsel %vm3330, %v2626, %v2625
  %v3352 = vsel %vm3332, %v2627, %v3351
  %v3353 = vsel %vm3334, %v2628, %v3352
  %v3354 = vsel %vm3336, %v2629, %v3353
  %v3355 = vsel %vm3338, %v2630, %v3354
  %v3356 = vsel %vm3340, %v2631, %v3355
  %v3357 = vsel %vm3342, %v2632, %v3356
  %v3358 = vsel %vm3330, %v2634, %v2633
  %v3359 = vsel %vm3332, %v2635, %v3358
  %v3360 = vsel %vm3334, %v2636, %v3359
  %v3361 = vsel %vm3336, %v2637, %v3360
  %v3362 = vsel %vm3338, %v2638, %v3361
  %v3363 = vsel %vm3340, %v2639, %v3362
  %v3364 = vsel %vm3342, %v2640, %v3363
  %v3365 = vsel %vm3330, %v2642, %v2641
  %v3366 = vsel %vm3332, %v2643, %v3365
  %v3367 = vsel %vm3334, %v2644, %v3366
  %v3368 = vsel %vm3336, %v2645, %v3367
  %v3369 = vsel %vm3338, %v2646, %v3368
  %v3370 = vsel %vm3340, %v2647, %v3369
  %v3371 = vsel %vm3342, %v2648, %v3370
  %v3372 = vsel %vm3330, %v2650, %v2649
  %v3373 = vsel %vm3332, %v2651, %v3372
  %v3374 = vsel %vm3334, %v2652, %v3373
  %v3375 = vsel %vm3336, %v2653, %v3374
  %v3376 = vsel %vm3338, %v2654, %v3375
  %v3377 = vsel %vm3340, %v2655, %v3376
  %v3378 = vsel %vm3342, %v2656, %v3377
  %v3379 = vsel %vm3330, %v2658, %v2657
  %v3380 = vsel %vm3332, %v2659, %v3379
  %v3381 = vsel %vm3334, %v2660, %v3380
  %v3382 = vsel %vm3336, %v2661, %v3381
  %v3383 = vsel %vm3338, %v2662, %v3382
  %v3384 = vsel %vm3340, %v2663, %v3383
  %v3385 = vsel %vm3342, %v2664, %v3384
  %v3386 = vsel %vm3330, %v2666, %v2665
  %v3387 = vsel %vm3332, %v2667, %v3386
  %v3388 = vsel %vm3334, %v2668, %v3387
  %v3389 = vsel %vm3336, %v2669, %v3388
  %v3399 = vsel %vm3330, %v2611, %v2610
  %v3400 = vsel %vm3332, %v2612, %v3399
  %v3401 = vsel %vm3334, %v2613, %v3400
  %v3402 = vsel %vm3336, %v2614, %v3401
  %v3403 = vsel %vm3338, %v2615, %v3402
  %v3404 = vsel %vm3340, %v2616, %v3403
  %v3405 = vsel %vm3342, %v2617, %v3404
  %v3406 = vsel %vm3330, %v2619, %v2618
  %v3407 = vsel %vm3332, %v2620, %v3406
  %v3408 = vsel %vm3334, %v2621, %v3407
  %v3409 = vsel %vm3336, %v2622, %v3408
  %v3410 = vsel %vm3338, %v2623, %v3409
  %v3411 = vsel %vm3340, %v2624, %v3410
  %v3412 = vsel %vm3342, %v2625, %v3411
  %v3413 = vsel %vm3330, %v2627, %v2626
  %v3414 = vsel %vm3332, %v2628, %v3413
  %v3415 = vsel %vm3334, %v2629, %v3414
  %v3416 = vsel %vm3336, %v2630, %v3415
  %v3417 = vsel %vm3338, %v2631, %v3416
  %v3418 = vsel %vm3340, %v2632, %v3417
  %v3419 = vsel %vm3342, %v2633, %v3418
  %v3420 = vsel %vm3330, %v2635, %v2634
  %v3421 = vsel %vm3332, %v2636, %v3420
  %v3422 = vsel %vm3334, %v2637, %v3421
  %v3423 = vsel %vm3336, %v2638, %v3422
  %v3424 = vsel %vm3338, %v2639, %v3423
  %v3425 = vsel %vm3340, %v2640, %v3424
  %v3426 = vsel %vm3342, %v2641, %v3425
  %v3427 = vsel %vm3330, %v2643, %v2642
  %v3428 = vsel %vm3332, %v2644, %v3427
  %v3429 = vsel %vm3334, %v2645, %v3428
  %v3430 = vsel %vm3336, %v2646, %v3429
  %v3431 = vsel %vm3338, %v2647, %v3430
  %v3432 = vsel %vm3340, %v2648, %v3431
  %v3433 = vsel %vm3342, %v2649, %v3432
  %v3434 = vsel %vm3330, %v2651, %v2650
  %v3435 = vsel %vm3332, %v2652, %v3434
  %v3436 = vsel %vm3334, %v2653, %v3435
  %v3437 = vsel %vm3336, %v2654, %v3436
  %v3438 = vsel %vm3338, %v2655, %v3437
  %v3439 = vsel %vm3340, %v2656, %v3438
  %v3440 = vsel %vm3342, %v2657, %v3439
  %v3441 = vsel %vm3330, %v2659, %v2658
  %v3442 = vsel %vm3332, %v2660, %v3441
  %v3443 = vsel %vm3334, %v2661, %v3442
  %v3444 = vsel %vm3336, %v2662, %v3443
  %v3445 = vsel %vm3338, %v2663, %v3444
  %v3446 = vsel %vm3340, %v2664, %v3445
  %v3447 = vsel %vm3342, %v2665, %v3446
  %v3448 = vsel %vm3330, %v2667, %v2666
  %v3449 = vsel %vm3332, %v2668, %v3448
  %v3450 = vsel %vm3334, %v2669, %v3449
  %v3451 = vsel %vm3336, %v2670, %v3450
  %3452 = vrot.lane.b32.xlu0 %v3405, 8
  %v3453 = vpop.permute.xlu0 %3452
  %3454 = vrot.lane.b32.xlu0 %v3412, 8
  %v3455 = vpop.permute.xlu0 %3454
  %3456 = vrot.lane.b32.xlu0 %v3419, 8
  %v3457 = vpop.permute.xlu0 %3456
  %3458 = vrot.lane.b32.xlu0 %v3426, 8
  %v3459 = vpop.permute.xlu0 %3458
  %3460 = vrot.lane.b32.xlu0 %v3433, 8
  %v3461 = vpop.permute.xlu0 %3460
  %3462 = vrot.lane.b32.xlu0 %v3440, 8
  %v3463 = vpop.permute.xlu0 %3462
  %3464 = vrot.lane.b32.xlu0 %v3447, 8
  %v3465 = vpop.permute.xlu0 %3464
  %3466 = vrot.lane.b32.xlu0 %v3451, 8
  %v3467 = vpop.permute.xlu0 %3466
  %v3477 = vsel %vm3330, %v2612, %v2611
  %v3478 = vsel %vm3332, %v2613, %v3477
  %v3479 = vsel %vm3334, %v2614, %v3478
  %v3480 = vsel %vm3336, %v2615, %v3479
  %v3481 = vsel %vm3338, %v2616, %v3480
  %v3482 = vsel %vm3340, %v2617, %v3481
  %v3483 = vsel %vm3342, %v2618, %v3482
  %v3484 = vsel %vm3330, %v2620, %v2619
  %v3485 = vsel %vm3332, %v2621, %v3484
  %v3486 = vsel %vm3334, %v2622, %v3485
  %v3487 = vsel %vm3336, %v2623, %v3486
  %v3488 = vsel %vm3338, %v2624, %v3487
  %v3489 = vsel %vm3340, %v2625, %v3488
  %v3490 = vsel %vm3342, %v2626, %v3489
  %v3491 = vsel %vm3330, %v2628, %v2627
  %v3492 = vsel %vm3332, %v2629, %v3491
  %v3493 = vsel %vm3334, %v2630, %v3492
  %v3494 = vsel %vm3336, %v2631, %v3493
  %v3495 = vsel %vm3338, %v2632, %v3494
  %v3496 = vsel %vm3340, %v2633, %v3495
  %v3497 = vsel %vm3342, %v2634, %v3496
  %v3498 = vsel %vm3330, %v2636, %v2635
  %v3499 = vsel %vm3332, %v2637, %v3498
  %v3500 = vsel %vm3334, %v2638, %v3499
  %v3501 = vsel %vm3336, %v2639, %v3500
  %v3502 = vsel %vm3338, %v2640, %v3501
  %v3503 = vsel %vm3340, %v2641, %v3502
  %v3504 = vsel %vm3342, %v2642, %v3503
  %v3505 = vsel %vm3330, %v2644, %v2643
  %v3506 = vsel %vm3332, %v2645, %v3505
  %v3507 = vsel %vm3334, %v2646, %v3506
  %v3508 = vsel %vm3336, %v2647, %v3507
  %v3509 = vsel %vm3338, %v2648, %v3508
  %v3510 = vsel %vm3340, %v2649, %v3509
  %v3511 = vsel %vm3342, %v2650, %v3510
  %v3512 = vsel %vm3330, %v2652, %v2651
  %v3513 = vsel %vm3332, %v2653, %v3512
  %v3514 = vsel %vm3334, %v2654, %v3513
  %v3515 = vsel %vm3336, %v2655, %v3514
  %v3516 = vsel %vm3338, %v2656, %v3515
  %v3517 = vsel %vm3340, %v2657, %v3516
  %v3518 = vsel %vm3342, %v2658, %v3517
  %v3519 = vsel %vm3330, %v2660, %v2659
  %v3520 = vsel %vm3332, %v2661, %v3519
  %v3521 = vsel %vm3334, %v2662, %v3520
  %v3522 = vsel %vm3336, %v2663, %v3521
  %v3523 = vsel %vm3338, %v2664, %v3522
  %v3524 = vsel %vm3340, %v2665, %v3523
  %v3525 = vsel %vm3342, %v2666, %v3524
  %v3526 = vsel %vm3330, %v2668, %v2667
  %v3527 = vsel %vm3332, %v2669, %v3526
  %v3528 = vsel %vm3334, %v2670, %v3527
  %v3529 = vsel %vm3336, %v2671, %v3528
  %3530 = vrot.lane.b32.xlu0 %v3483, 16
  %v3531 = vpop.permute.xlu0 %3530
  %3532 = vrot.lane.b32.xlu0 %v3490, 16
  %v3533 = vpop.permute.xlu0 %3532
  %3534 = vrot.lane.b32.xlu0 %v3497, 16
  %v3535 = vpop.permute.xlu0 %3534
  %3536 = vrot.lane.b32.xlu0 %v3504, 16
  %v3537 = vpop.permute.xlu0 %3536
  %3538 = vrot.lane.b32.xlu0 %v3511, 16
  %v3539 = vpop.permute.xlu0 %3538
  %3540 = vrot.lane.b32.xlu0 %v3518, 16
  %v3541 = vpop.permute.xlu0 %3540
  %3542 = vrot.lane.b32.xlu0 %v3525, 16
  %v3543 = vpop.permute.xlu0 %3542
  %3544 = vrot.lane.b32.xlu0 %v3529, 16
  %v3545 = vpop.permute.xlu0 %3544
  %v3554 = vsel %vm486, %v3343, %v3453
  %v3555 = vsel %vm486, %v3350, %v3455
  %v3556 = vsel %vm486, %v3357, %v3457
  %v3557 = vsel %vm486, %v3364, %v3459
  %v3558 = vsel %vm486, %v3371, %v3461
  %v3559 = vsel %vm486, %v3378, %v3463
  %v3560 = vsel %vm486, %v3385, %v3465
  %v3561 = vsel %vm486, %v3389, %v3467
  %vm3562 = vcmask 130048
  %v3563 = vsel %vm3562, %v3554, %v3531
  %v3564 = vsel %vm3562, %v3555, %v3533
  %v3565 = vsel %vm3562, %v3556, %v3535
  %v3566 = vsel %vm3562, %v3557, %v3537
  %v3567 = vsel %vm3562, %v3558, %v3539
  %v3568 = vsel %vm3562, %v3559, %v3541
  %v3569 = vsel %vm3562, %v3560, %v3543
  %v3570 = vsel %vm3562, %v3561, %v3545
  %v3571 = vlaneseq
  %v3572 = vshrl.u32 %v3571, 7
  %v3573 = vsub.s32 0, %v3572
  %v3574 = vrot.slane %v28, %v3573
  %vm3575 = vcmask 195584
  %v3577 = vsel %vm3575, %v3563, 0
  %v3580 = vsel %vm3575, %v3564, 0
  %v3583 = vsel %vm3575, %v3565, 0
  %v3586 = vsel %vm3575, %v3566, 0
  %v3589 = vsel %vm3575, %v3567, 0
  %v3592 = vsel %vm3575, %v3568, 0
  %v3595 = vsel %vm3575, %v3569, 0
  %v3598 = vsel %vm3575, %v3570, 0
  %3600 = vmatprep.subr.mxu0 0.0
  %3601 = vmatpush1.msra.mxu0 0.0
  %3602 = vmatprep.subr.mxu0 0.0
  %3603 = vmatpush1.msra.mxu0 0.0
  %3604 = vmatprep.subr.mxu0 0.0
  %3605 = vmatpush1.msra.mxu0 0.0
  %3606 = vmatprep.subr.mxu0 0.0
  %3607 = vmatpush1.msra.mxu0 0.0
  %3608 = vmatprep.subr.mxu0 0.0
  %3609 = vmatpush1.msra.mxu0 0.0
  %3610 = vmatprep.subr.mxu0 0.0
  %3611 = vmatpush1.msra.mxu0 0.0
  %3612 = vmatprep.subr.mxu0 0.0
  %3613 = vmatpush1.msra.mxu0 0.0
  %3614 = vmatprep.subr.mxu0 0.0
  %3615 = vmatpush1.msra.mxu0 0.0
  %3616 = vmatprep.subr.mxu0 0.0
  %3617 = vmatpush1.msra.mxu0 0.0
  %3618 = vmatprep.subr.mxu0 0.0
  %3619 = vmatpush1.msra.mxu0 0.0
  %3620 = vmatprep.subr.mxu0 0.0
  %3621 = vmatpush1.msra.mxu0 0.0
  %3622 = vmatprep.subr.mxu0 0.0
  %3623 = vmatpush1.msra.mxu0 0.0
  %3624 = vmatprep.subr.mxu0 0.0
  %3625 = vmatpush1.msra.mxu0 0.0
  %3626 = vmatprep.subr.mxu0 0.0
  %3627 = vmatpush1.msra.mxu0 %v18
  %3628 = vmatprep.subr.mxu0 0.0
  %3629 = vmatpush1.msra.mxu0 %v17
  %3630 = vmatprep.subr.mxu0 0.0
  %3631 = vmatpush1.msra.mxu0 %v16
  %3632 = vmatprep.subr.mxu0 0.0
  %3633 = vmatpush2.msra.mxu0 0.0
  %3634 = vmatprep.subr.mxu0 0.0
  %3635 = vmatpush2.msra.mxu0 0.0
  %3636 = vmatprep.subr.mxu0 0.0
  %3637 = vmatpush2.msra.mxu0 0.0
  %3638 = vmatprep.subr.mxu0 0.0
  %3639 = vmatpush2.msra.mxu0 0.0
  %3640 = vmatprep.subr.mxu0 0.0
  %3641 = vmatpush2.msra.mxu0 0.0
  %3642 = vmatprep.subr.mxu0 0.0
  %3643 = vmatpush2.msra.mxu0 0.0
  %3644 = vmatprep.subr.mxu0 0.0
  %3645 = vmatpush2.msra.mxu0 0.0
  %3646 = vmatprep.subr.mxu0 0.0
  %3647 = vmatpush2.msra.mxu0 0.0
  %3648 = vmatprep.subr.mxu0 0.0
  %3649 = vmatpush2.msra.mxu0 0.0
  %3650 = vmatprep.subr.mxu0 0.0
  %3651 = vmatpush2.msra.mxu0 0.0
  %3652 = vmatprep.subr.mxu0 0.0
  %3653 = vmatpush2.msra.mxu0 0.0
  %3654 = vmatprep.subr.mxu0 0.0
  %3655 = vmatpush2.msra.mxu0 0.0
  %3656 = vmatprep.subr.mxu0 0.0
  %3657 = vmatpush2.msra.mxu0 0.0
  %3658 = vmatprep.subr.mxu0 0.0
  %3659 = vmatpush2.msra.mxu0 0.0
  %3660 = vmatprep.subr.mxu0 0.0
  %3661 = vmatpush2.msra.mxu0 0.0
  %3662 = vmatprep.subr.mxu0 0.0
  %3663 = vmatpush2.msra.mxu0 0.0
  %3664 = vmatprep.mubr.f32.mxu0 0.0
  %3665 = vmatmul.mubr.f32.gmra.mxu0 %v3577
  %v3666 = vpop.f32.mrf.mxu0
  %v3667 = vadd.f32 %v3574, %v3666
  %v3668 = vpop.f32.mrf.mxu0
  %3669 = vmatprep.mubr.f32.mxu0 0.0
  %3670 = vmatmul.mubr.f32.gmra.mxu0 %v3580
  %v3671 = vpop.f32.mrf.mxu0
  %v3672 = vadd.f32 %v3574, %v3671
  %v3673 = vpop.f32.mrf.mxu0
  %3674 = vmatprep.mubr.f32.mxu0 0.0
  %3675 = vmatmul.mubr.f32.gmra.mxu0 %v3583
  %v3676 = vpop.f32.mrf.mxu0
  %v3677 = vadd.f32 %v3574, %v3676
  %v3678 = vpop.f32.mrf.mxu0
  %3679 = vmatprep.mubr.f32.mxu0 0.0
  %3680 = vmatmul.mubr.f32.gmra.mxu0 %v3586
  %v3681 = vpop.f32.mrf.mxu0
  %v3682 = vadd.f32 %v3574, %v3681
  %v3683 = vpop.f32.mrf.mxu0
  %3684 = vmatprep.mubr.f32.mxu0 0.0
  %3685 = vmatmul.mubr.f32.gmra.mxu0 %v3589
  %v3686 = vpop.f32.mrf.mxu0
  %v3687 = vadd.f32 %v3574, %v3686
  %v3688 = vpop.f32.mrf.mxu0
  %3689 = vmatprep.mubr.f32.mxu0 0.0
  %3690 = vmatmul.mubr.f32.gmra.mxu0 %v3592
  %v3691 = vpop.f32.mrf.mxu0
  %v3692 = vadd.f32 %v3574, %v3691
  %v3693 = vpop.f32.mrf.mxu0
  %3694 = vmatprep.mubr.f32.mxu0 0.0
  %3695 = vmatmul.mubr.f32.gmra.mxu0 %v3595
  %v3696 = vpop.f32.mrf.mxu0
  %v3697 = vadd.f32 %v3574, %v3696
  %v3698 = vpop.f32.mrf.mxu0
  %3699 = vmatprep.mubr.f32.mxu0 0.0
  %3700 = vmatmul.mubr.f32.gmra.mxu0 %v3598
  %v3701 = vpop.f32.mrf.mxu0
  %v3702 = vadd.f32 %v3574, %v3701
  %v3703 = vpop.f32.mrf.mxu0
  %3704 = vdwg.mxu0
  %v3766 = vsel %vm3330, %v3207, %v3206
  %v3767 = vsel %vm3332, %v3208, %v3766
  %v3768 = vsel %vm3334, %v3209, %v3767
  %v3769 = vsel %vm3336, %v3210, %v3768
  %v3770 = vsel %vm3338, %v3211, %v3769
  %v3771 = vsel %vm3340, %v3212, %v3770
  %v3772 = vsel %vm3342, %v3213, %v3771
  %v3773 = vsel %vm3330, %v3215, %v3214
  %v3774 = vsel %vm3332, %v3216, %v3773
  %v3775 = vsel %vm3334, %v3217, %v3774
  %v3776 = vsel %vm3336, %v3218, %v3775
  %v3777 = vsel %vm3338, %v3219, %v3776
  %v3778 = vsel %vm3340, %v3220, %v3777
  %v3779 = vsel %vm3342, %v3221, %v3778
  %v3780 = vsel %vm3330, %v3223, %v3222
  %v3781 = vsel %vm3332, %v3224, %v3780
  %v3782 = vsel %vm3334, %v3225, %v3781
  %v3783 = vsel %vm3336, %v3226, %v3782
  %v3784 = vsel %vm3338, %v3227, %v3783
  %v3785 = vsel %vm3340, %v3228, %v3784
  %v3786 = vsel %vm3342, %v3229, %v3785
  %v3787 = vsel %vm3330, %v3231, %v3230
  %v3788 = vsel %vm3332, %v3232, %v3787
  %v3789 = vsel %vm3334, %v3233, %v3788
  %v3790 = vsel %vm3336, %v3234, %v3789
  %v3791 = vsel %vm3338, %v3235, %v3790
  %v3792 = vsel %vm3340, %v3236, %v3791
  %v3793 = vsel %vm3342, %v3237, %v3792
  %v3794 = vsel %vm3330, %v3239, %v3238
  %v3795 = vsel %vm3332, %v3240, %v3794
  %v3796 = vsel %vm3334, %v3241, %v3795
  %v3797 = vsel %vm3336, %v3242, %v3796
  %v3798 = vsel %vm3338, %v3243, %v3797
  %v3799 = vsel %vm3340, %v3244, %v3798
  %v3800 = vsel %vm3342, %v3245, %v3799
  %v3801 = vsel %vm3330, %v3247, %v3246
  %v3802 = vsel %vm3332, %v3248, %v3801
  %v3803 = vsel %vm3334, %v3249, %v3802
  %v3804 = vsel %vm3336, %v3250, %v3803
  %v3805 = vsel %vm3338, %v3251, %v3804
  %v3806 = vsel %vm3340, %v3252, %v3805
  %v3807 = vsel %vm3342, %v3253, %v3806
  %v3808 = vsel %vm3330, %v3255, %v3254
  %v3809 = vsel %vm3332, %v3256, %v3808
  %v3810 = vsel %vm3334, %v3257, %v3809
  %v3811 = vsel %vm3336, %v3258, %v3810
  %v3812 = vsel %vm3338, %v3259, %v3811
  %v3813 = vsel %vm3340, %v3260, %v3812
  %v3814 = vsel %vm3342, %v3261, %v3813
  %v3815 = vsel %vm3330, %v3263, %v3262
  %v3816 = vsel %vm3332, %v3264, %v3815
  %v3817 = vsel %vm3334, %v3265, %v3816
  %v3818 = vsel %vm3336, %v3266, %v3817
  %v3828 = vsel %vm3330, %v3208, %v3207
  %v3829 = vsel %vm3332, %v3209, %v3828
  %v3830 = vsel %vm3334, %v3210, %v3829
  %v3831 = vsel %vm3336, %v3211, %v3830
  %v3832 = vsel %vm3338, %v3212, %v3831
  %v3833 = vsel %vm3340, %v3213, %v3832
  %v3834 = vsel %vm3342, %v3214, %v3833
  %v3835 = vsel %vm3330, %v3216, %v3215
  %v3836 = vsel %vm3332, %v3217, %v3835
  %v3837 = vsel %vm3334, %v3218, %v3836
  %v3838 = vsel %vm3336, %v3219, %v3837
  %v3839 = vsel %vm3338, %v3220, %v3838
  %v3840 = vsel %vm3340, %v3221, %v3839
  %v3841 = vsel %vm3342, %v3222, %v3840
  %v3842 = vsel %vm3330, %v3224, %v3223
  %v3843 = vsel %vm3332, %v3225, %v3842
  %v3844 = vsel %vm3334, %v3226, %v3843
  %v3845 = vsel %vm3336, %v3227, %v3844
  %v3846 = vsel %vm3338, %v3228, %v3845
  %v3847 = vsel %vm3340, %v3229, %v3846
  %v3848 = vsel %vm3342, %v3230, %v3847
  %v3849 = vsel %vm3330, %v3232, %v3231
  %v3850 = vsel %vm3332, %v3233, %v3849
  %v3851 = vsel %vm3334, %v3234, %v3850
  %v3852 = vsel %vm3336, %v3235, %v3851
  %v3853 = vsel %vm3338, %v3236, %v3852
  %v3854 = vsel %vm3340, %v3237, %v3853
  %v3855 = vsel %vm3342, %v3238, %v3854
  %v3856 = vsel %vm3330, %v3240, %v3239
  %v3857 = vsel %vm3332, %v3241, %v3856
  %v3858 = vsel %vm3334, %v3242, %v3857
  %v3859 = vsel %vm3336, %v3243, %v3858
  %v3860 = vsel %vm3338, %v3244, %v3859
  %v3861 = vsel %vm3340, %v3245, %v3860
  %v3862 = vsel %vm3342, %v3246, %v3861
  %v3863 = vsel %vm3330, %v3248, %v3247
  %v3864 = vsel %vm3332, %v3249, %v3863
  %v3865 = vsel %vm3334, %v3250, %v3864
  %v3866 = vsel %vm3336, %v3251, %v3865
  %v3867 = vsel %vm3338, %v3252, %v3866
  %v3868 = vsel %vm3340, %v3253, %v3867
  %v3869 = vsel %vm3342, %v3254, %v3868
  %v3870 = vsel %vm3330, %v3256, %v3255
  %v3871 = vsel %vm3332, %v3257, %v3870
  %v3872 = vsel %vm3334, %v3258, %v3871
  %v3873 = vsel %vm3336, %v3259, %v3872
  %v3874 = vsel %vm3338, %v3260, %v3873
  %v3875 = vsel %vm3340, %v3261, %v3874
  %v3876 = vsel %vm3342, %v3262, %v3875
  %v3877 = vsel %vm3330, %v3264, %v3263
  %v3878 = vsel %vm3332, %v3265, %v3877
  %v3879 = vsel %vm3334, %v3266, %v3878
  %v3880 = vsel %vm3336, %v3267, %v3879
  %3881 = vrot.lane.b32.xlu0 %v3834, 8
  %v3882 = vpop.permute.xlu0 %3881
  %3883 = vrot.lane.b32.xlu0 %v3841, 8
  %v3884 = vpop.permute.xlu0 %3883
  %3885 = vrot.lane.b32.xlu0 %v3848, 8
  %v3886 = vpop.permute.xlu0 %3885
  %3887 = vrot.lane.b32.xlu0 %v3855, 8
  %v3888 = vpop.permute.xlu0 %3887
  %3889 = vrot.lane.b32.xlu0 %v3862, 8
  %v3890 = vpop.permute.xlu0 %3889
  %3891 = vrot.lane.b32.xlu0 %v3869, 8
  %v3892 = vpop.permute.xlu0 %3891
  %3893 = vrot.lane.b32.xlu0 %v3876, 8
  %v3894 = vpop.permute.xlu0 %3893
  %3895 = vrot.lane.b32.xlu0 %v3880, 8
  %v3896 = vpop.permute.xlu0 %3895
  %v3906 = vsel %vm3330, %v3209, %v3208
  %v3907 = vsel %vm3332, %v3210, %v3906
  %v3908 = vsel %vm3334, %v3211, %v3907
  %v3909 = vsel %vm3336, %v3212, %v3908
  %v3910 = vsel %vm3338, %v3213, %v3909
  %v3911 = vsel %vm3340, %v3214, %v3910
  %v3912 = vsel %vm3342, %v3215, %v3911
  %v3913 = vsel %vm3330, %v3217, %v3216
  %v3914 = vsel %vm3332, %v3218, %v3913
  %v3915 = vsel %vm3334, %v3219, %v3914
  %v3916 = vsel %vm3336, %v3220, %v3915
  %v3917 = vsel %vm3338, %v3221, %v3916
  %v3918 = vsel %vm3340, %v3222, %v3917
  %v3919 = vsel %vm3342, %v3223, %v3918
  %v3920 = vsel %vm3330, %v3225, %v3224
  %v3921 = vsel %vm3332, %v3226, %v3920
  %v3922 = vsel %vm3334, %v3227, %v3921
  %v3923 = vsel %vm3336, %v3228, %v3922
  %v3924 = vsel %vm3338, %v3229, %v3923
  %v3925 = vsel %vm3340, %v3230, %v3924
  %v3926 = vsel %vm3342, %v3231, %v3925
  %v3927 = vsel %vm3330, %v3233, %v3232
  %v3928 = vsel %vm3332, %v3234, %v3927
  %v3929 = vsel %vm3334, %v3235, %v3928
  %v3930 = vsel %vm3336, %v3236, %v3929
  %v3931 = vsel %vm3338, %v3237, %v3930
  %v3932 = vsel %vm3340, %v3238, %v3931
  %v3933 = vsel %vm3342, %v3239, %v3932
  %v3934 = vsel %vm3330, %v3241, %v3240
  %v3935 = vsel %vm3332, %v3242, %v3934
  %v3936 = vsel %vm3334, %v3243, %v3935
  %v3937 = vsel %vm3336, %v3244, %v3936
  %v3938 = vsel %vm3338, %v3245, %v3937
  %v3939 = vsel %vm3340, %v3246, %v3938
  %v3940 = vsel %vm3342, %v3247, %v3939
  %v3941 = vsel %vm3330, %v3249, %v3248
  %v3942 = vsel %vm3332, %v3250, %v3941
  %v3943 = vsel %vm3334, %v3251, %v3942
  %v3944 = vsel %vm3336, %v3252, %v3943
  %v3945 = vsel %vm3338, %v3253, %v3944
  %v3946 = vsel %vm3340, %v3254, %v3945
  %v3947 = vsel %vm3342, %v3255, %v3946
  %v3948 = vsel %vm3330, %v3257, %v3256
  %v3949 = vsel %vm3332, %v3258, %v3948
  %v3950 = vsel %vm3334, %v3259, %v3949
  %v3951 = vsel %vm3336, %v3260, %v3950
  %v3952 = vsel %vm3338, %v3261, %v3951
  %v3953 = vsel %vm3340, %v3262, %v3952
  %v3954 = vsel %vm3342, %v3263, %v3953
  %v3955 = vsel %vm3330, %v3265, %v3264
  %v3956 = vsel %vm3332, %v3266, %v3955
  %v3957 = vsel %vm3334, %v3267, %v3956
  %v3958 = vsel %vm3336, %v3268, %v3957
  %3959 = vrot.lane.b32.xlu0 %v3912, 16
  %v3960 = vpop.permute.xlu0 %3959
  %3961 = vrot.lane.b32.xlu0 %v3919, 16
  %v3962 = vpop.permute.xlu0 %3961
  %3963 = vrot.lane.b32.xlu0 %v3926, 16
  %v3964 = vpop.permute.xlu0 %3963
  %3965 = vrot.lane.b32.xlu0 %v3933, 16
  %v3966 = vpop.permute.xlu0 %3965
  %3967 = vrot.lane.b32.xlu0 %v3940, 16
  %v3968 = vpop.permute.xlu0 %3967
  %3969 = vrot.lane.b32.xlu0 %v3947, 16
  %v3970 = vpop.permute.xlu0 %3969
  %3971 = vrot.lane.b32.xlu0 %v3954, 16
  %v3972 = vpop.permute.xlu0 %3971
  %3973 = vrot.lane.b32.xlu0 %v3958, 16
  %v3974 = vpop.permute.xlu0 %3973
  %v3983 = vsel %vm486, %v3772, %v3882
  %v3984 = vsel %vm486, %v3779, %v3884
  %v3985 = vsel %vm486, %v3786, %v3886
  %v3986 = vsel %vm486, %v3793, %v3888
  %v3987 = vsel %vm486, %v3800, %v3890
  %v3988 = vsel %vm486, %v3807, %v3892
  %v3989 = vsel %vm486, %v3814, %v3894
  %v3990 = vsel %vm486, %v3818, %v3896
  %v3991 = vsel %vm3562, %v3983, %v3960
  %v3992 = vsel %vm3562, %v3984, %v3962
  %v3993 = vsel %vm3562, %v3985, %v3964
  %v3994 = vsel %vm3562, %v3986, %v3966
  %v3995 = vsel %vm3562, %v3987, %v3968
  %v3996 = vsel %vm3562, %v3988, %v3970
  %v3997 = vsel %vm3562, %v3989, %v3972
  %v3998 = vsel %vm3562, %v3990, %v3974
  %v4000 = vsel %vm3575, %v3991, 0
  %v4003 = vsel %vm3575, %v3992, 0
  %v4006 = vsel %vm3575, %v3993, 0
  %v4009 = vsel %vm3575, %v3994, 0
  %v4012 = vsel %vm3575, %v3995, 0
  %v4015 = vsel %vm3575, %v3996, 0
  %v4018 = vsel %vm3575, %v3997, 0
  %v4021 = vsel %vm3575, %v3998, 0
  %4023 = vmatprep.subr.mxu0 0.0
  %4024 = vmatpush1.msra.mxu0 0.0
  %4025 = vmatprep.subr.mxu0 0.0
  %4026 = vmatpush1.msra.mxu0 0.0
  %4027 = vmatprep.subr.mxu0 0.0
  %4028 = vmatpush1.msra.mxu0 0.0
  %4029 = vmatprep.subr.mxu0 0.0
  %4030 = vmatpush1.msra.mxu0 0.0
  %4031 = vmatprep.subr.mxu0 0.0
  %4032 = vmatpush1.msra.mxu0 0.0
  %4033 = vmatprep.subr.mxu0 0.0
  %4034 = vmatpush1.msra.mxu0 0.0
  %4035 = vmatprep.subr.mxu0 0.0
  %4036 = vmatpush1.msra.mxu0 0.0
  %4037 = vmatprep.subr.mxu0 0.0
  %4038 = vmatpush1.msra.mxu0 0.0
  %4039 = vmatprep.subr.mxu0 0.0
  %4040 = vmatpush1.msra.mxu0 0.0
  %4041 = vmatprep.subr.mxu0 0.0
  %4042 = vmatpush1.msra.mxu0 0.0
  %4043 = vmatprep.subr.mxu0 0.0
  %4044 = vmatpush1.msra.mxu0 0.0
  %4045 = vmatprep.subr.mxu0 0.0
  %4046 = vmatpush1.msra.mxu0 0.0
  %4047 = vmatprep.subr.mxu0 0.0
  %4048 = vmatpush1.msra.mxu0 0.0
  %4049 = vmatprep.subr.mxu0 0.0
  %4050 = vmatpush1.msra.mxu0 %v18
  %4051 = vmatprep.subr.mxu0 0.0
  %4052 = vmatpush1.msra.mxu0 %v17
  %4053 = vmatprep.subr.mxu0 0.0
  %4054 = vmatpush1.msra.mxu0 %v16
  %4055 = vmatprep.subr.mxu0 0.0
  %4056 = vmatpush2.msra.mxu0 0.0
  %4057 = vmatprep.subr.mxu0 0.0
  %4058 = vmatpush2.msra.mxu0 0.0
  %4059 = vmatprep.subr.mxu0 0.0
  %4060 = vmatpush2.msra.mxu0 0.0
  %4061 = vmatprep.subr.mxu0 0.0
  %4062 = vmatpush2.msra.mxu0 0.0
  %4063 = vmatprep.subr.mxu0 0.0
  %4064 = vmatpush2.msra.mxu0 0.0
  %4065 = vmatprep.subr.mxu0 0.0
  %4066 = vmatpush2.msra.mxu0 0.0
  %4067 = vmatprep.subr.mxu0 0.0
  %4068 = vmatpush2.msra.mxu0 0.0
  %4069 = vmatprep.subr.mxu0 0.0
  %4070 = vmatpush2.msra.mxu0 0.0
  %4071 = vmatprep.subr.mxu0 0.0
  %4072 = vmatpush2.msra.mxu0 0.0
  %4073 = vmatprep.subr.mxu0 0.0
  %4074 = vmatpush2.msra.mxu0 0.0
  %4075 = vmatprep.subr.mxu0 0.0
  %4076 = vmatpush2.msra.mxu0 0.0
  %4077 = vmatprep.subr.mxu0 0.0
  %4078 = vmatpush2.msra.mxu0 0.0
  %4079 = vmatprep.subr.mxu0 0.0
  %4080 = vmatpush2.msra.mxu0 0.0
  %4081 = vmatprep.subr.mxu0 0.0
  %4082 = vmatpush2.msra.mxu0 0.0
  %4083 = vmatprep.subr.mxu0 0.0
  %4084 = vmatpush2.msra.mxu0 0.0
  %4085 = vmatprep.subr.mxu0 0.0
  %4086 = vmatpush2.msra.mxu0 0.0
  %4087 = vmatprep.mubr.f32.mxu0 0.0
  %4088 = vmatmul.mubr.f32.gmra.mxu0 %v4000
  %v4089 = vpop.f32.mrf.mxu0
  %v4090 = vadd.f32 %v3574, %v4089
  %v4091 = vpop.f32.mrf.mxu0
  %4092 = vmatprep.mubr.f32.mxu0 0.0
  %4093 = vmatmul.mubr.f32.gmra.mxu0 %v4003
  %v4094 = vpop.f32.mrf.mxu0
  %v4095 = vadd.f32 %v3574, %v4094
  %v4096 = vpop.f32.mrf.mxu0
  %4097 = vmatprep.mubr.f32.mxu0 0.0
  %4098 = vmatmul.mubr.f32.gmra.mxu0 %v4006
  %v4099 = vpop.f32.mrf.mxu0
  %v4100 = vadd.f32 %v3574, %v4099
  %v4101 = vpop.f32.mrf.mxu0
  %4102 = vmatprep.mubr.f32.mxu0 0.0
  %4103 = vmatmul.mubr.f32.gmra.mxu0 %v4009
  %v4104 = vpop.f32.mrf.mxu0
  %v4105 = vadd.f32 %v3574, %v4104
  %v4106 = vpop.f32.mrf.mxu0
  %4107 = vmatprep.mubr.f32.mxu0 0.0
  %4108 = vmatmul.mubr.f32.gmra.mxu0 %v4012
  %v4109 = vpop.f32.mrf.mxu0
  %v4110 = vadd.f32 %v3574, %v4109
  %v4111 = vpop.f32.mrf.mxu0
  %4112 = vmatprep.mubr.f32.mxu0 0.0
  %4113 = vmatmul.mubr.f32.gmra.mxu0 %v4015
  %v4114 = vpop.f32.mrf.mxu0
  %v4115 = vadd.f32 %v3574, %v4114
  %v4116 = vpop.f32.mrf.mxu0
  %4117 = vmatprep.mubr.f32.mxu0 0.0
  %4118 = vmatmul.mubr.f32.gmra.mxu0 %v4018
  %v4119 = vpop.f32.mrf.mxu0
  %v4120 = vadd.f32 %v3574, %v4119
  %v4121 = vpop.f32.mrf.mxu0
  %4122 = vmatprep.mubr.f32.mxu0 0.0
  %4123 = vmatmul.mubr.f32.gmra.mxu0 %v4021
  %v4124 = vpop.f32.mrf.mxu0
  %v4125 = vadd.f32 %v3574, %v4124
  %v4126 = vpop.f32.mrf.mxu0
  %4127 = vdwg.mxu0
  %v4128 = vsel %vm3562, %v3667, 0.0
  %v4129 = vsel %vm3562, %v3672, 0.0
  %v4130 = vadd.f32 %v4128, %v4129
  %v4131 = vsel %vm3562, %v3677, 0.0
  %v4132 = vadd.f32 %v4130, %v4131
  %v4133 = vsel %vm3562, %v3682, 0.0
  %v4134 = vadd.f32 %v4132, %v4133
  %v4135 = vsel %vm3562, %v3687, 0.0
  %v4136 = vadd.f32 %v4134, %v4135
  %v4137 = vsel %vm3562, %v3692, 0.0
  %v4138 = vadd.f32 %v4136, %v4137
  %v4139 = vsel %vm3562, %v3697, 0.0
  %v4140 = vadd.f32 %v4138, %v4139
  %vm4141 = vcmask 126976
  %v4142 = vsel %vm4141, %v3702, 0.0
  %v4143 = vadd.f32 %v4140, %v4142
  %v4144 = vrot.slane %v4143, 4
  %v4145 = vadd.f32 %v4143, %v4144
  %v4146 = vrot.slane %v4145, 2
  %v4147 = vadd.f32 %v4145, %v4146
  %v4148 = vrot.slane %v4147, 1
  %v4149 = vadd.f32 %v4147, %v4148
  %v4150 = vadd.f32 %v4149, 0.0
  %v4151 = vmul.f32 %v3667, %v3667
  %v4152 = vmul.f32 %v3672, %v3672
  %v4153 = vmul.f32 %v3677, %v3677
  %v4154 = vmul.f32 %v3682, %v3682
  %v4155 = vmul.f32 %v3687, %v3687
  %v4156 = vmul.f32 %v3692, %v3692
  %v4157 = vmul.f32 %v3697, %v3697
  %v4158 = vmul.f32 %v3702, %v3702
  %v4159 = vsel %vm3562, %v4151, 0.0
  %v4160 = vsel %vm3562, %v4152, 0.0
  %v4161 = vadd.f32 %v4159, %v4160
  %v4162 = vsel %vm3562, %v4153, 0.0
  %v4163 = vadd.f32 %v4161, %v4162
  %v4164 = vsel %vm3562, %v4154, 0.0
  %v4165 = vadd.f32 %v4163, %v4164
  %v4166 = vsel %vm3562, %v4155, 0.0
  %v4167 = vadd.f32 %v4165, %v4166
  %v4168 = vsel %vm3562, %v4156, 0.0
  %v4169 = vadd.f32 %v4167, %v4168
  %v4170 = vsel %vm3562, %v4157, 0.0
  %v4171 = vadd.f32 %v4169, %v4170
  %v4172 = vsel %vm4141, %v4158, 0.0
  %v4173 = vadd.f32 %v4171, %v4172
  %v4174 = vrot.slane %v4173, 4
  %v4175 = vadd.f32 %v4173, %v4174
  %v4176 = vrot.slane %v4175, 2
  %v4177 = vadd.f32 %v4175, %v4176
  %v4178 = vrot.slane %v4177, 1
  %v4179 = vadd.f32 %v4177, %v4178
  %v4180 = vadd.f32 %v4179, 0.0
  %v4181 = vsel %vm3562, %v4090, 0.0
  %v4182 = vsel %vm3562, %v4095, 0.0
  %v4183 = vadd.f32 %v4181, %v4182
  %v4184 = vsel %vm3562, %v4100, 0.0
  %v4185 = vadd.f32 %v4183, %v4184
  %v4186 = vsel %vm3562, %v4105, 0.0
  %v4187 = vadd.f32 %v4185, %v4186
  %v4188 = vsel %vm3562, %v4110, 0.0
  %v4189 = vadd.f32 %v4187, %v4188
  %v4190 = vsel %vm3562, %v4115, 0.0
  %v4191 = vadd.f32 %v4189, %v4190
  %v4192 = vsel %vm3562, %v4120, 0.0
  %v4193 = vadd.f32 %v4191, %v4192
  %v4194 = vsel %vm4141, %v4125, 0.0
  %v4195 = vadd.f32 %v4193, %v4194
  %v4196 = vrot.slane %v4195, 4
  %v4197 = vadd.f32 %v4195, %v4196
  %v4198 = vrot.slane %v4197, 2
  %v4199 = vadd.f32 %v4197, %v4198
  %v4200 = vrot.slane %v4199, 1
  %v4201 = vadd.f32 %v4199, %v4200
  %v4202 = vadd.f32 %v4150, %v4201
  %v4203 = vmul.f32 %v4090, %v4090
  %v4204 = vmul.f32 %v4095, %v4095
  %v4205 = vmul.f32 %v4100, %v4100
  %v4206 = vmul.f32 %v4105, %v4105
  %v4207 = vmul.f32 %v4110, %v4110
  %v4208 = vmul.f32 %v4115, %v4115
  %v4209 = vmul.f32 %v4120, %v4120
  %v4210 = vmul.f32 %v4125, %v4125
  %v4211 = vsel %vm3562, %v4203, 0.0
  %v4212 = vsel %vm3562, %v4204, 0.0
  %v4213 = vadd.f32 %v4211, %v4212
  %v4214 = vsel %vm3562, %v4205, 0.0
  %v4215 = vadd.f32 %v4213, %v4214
  %v4216 = vsel %vm3562, %v4206, 0.0
  %v4217 = vadd.f32 %v4215, %v4216
  %v4218 = vsel %vm3562, %v4207, 0.0
  %v4219 = vadd.f32 %v4217, %v4218
  %v4220 = vsel %vm3562, %v4208, 0.0
  %v4221 = vadd.f32 %v4219, %v4220
  %v4222 = vsel %vm3562, %v4209, 0.0
  %v4223 = vadd.f32 %v4221, %v4222
  %v4224 = vsel %vm4141, %v4210, 0.0
  %v4225 = vadd.f32 %v4223, %v4224
  %v4226 = vrot.slane %v4225, 4
  %v4227 = vadd.f32 %v4225, %v4226
  %v4228 = vrot.slane %v4227, 2
  %v4229 = vadd.f32 %v4227, %v4228
  %v4230 = vrot.slane %v4229, 1
  %v4231 = vadd.f32 %v4229, %v4230
  %v4232 = vadd.f32 %v4180, %v4231
  %v4233 = vmul.f32 %v4202, 0.008196721
  %v4234 = vmul.f32 %v4232, 0.008196721
  %v4235 = vmul.f32 %v4233, %v4233
  %v4236 = vsub.f32 %v4234, %v4235
  %v4237 = vadd.f32 %v4236, 1e-05
  %v4238 = vrsqrt.pop %v4237
  %v4239 = vmul.f32 %v29, %v4238
  %v4240 = vmul.f32 %v4233, %v4239
  %v4241 = vsub.f32 %v30, %v4240
  %v4242 = vlaneseq
  %v4243 = vshrl.u32 %v4242, 7
  %v4244 = vsub.s32 0, %v4243
  %v4245 = vrot.slane %v4239, %v4244
  %v4246 = vmul.f32 %v3667, %v4245
  %v4247 = vmul.f32 %v3672, %v4245
  %v4248 = vmul.f32 %v3677, %v4245
  %v4249 = vmul.f32 %v3682, %v4245
  %v4250 = vmul.f32 %v3687, %v4245
  %v4251 = vmul.f32 %v3692, %v4245
  %v4252 = vmul.f32 %v3697, %v4245
  %v4253 = vmul.f32 %v3702, %v4245
  %v4254 = vlaneseq
  %v4255 = vshrl.u32 %v4254, 7
  %v4256 = vsub.s32 0, %v4255
  %v4257 = vrot.slane %v4241, %v4256
  %v4258 = vadd.f32 %v4246, %v4257
  %v4259 = vadd.f32 %v4247, %v4257
  %v4260 = vadd.f32 %v4248, %v4257
  %v4261 = vadd.f32 %v4249, %v4257
  %v4262 = vadd.f32 %v4250, %v4257
  %v4263 = vadd.f32 %v4251, %v4257
  %v4264 = vadd.f32 %v4252, %v4257
  %v4265 = vadd.f32 %v4253, %v4257
  %v4266 = vmul.f32 %v4090, %v4245
  %v4267 = vmul.f32 %v4095, %v4245
  %v4268 = vmul.f32 %v4100, %v4245
  %v4269 = vmul.f32 %v4105, %v4245
  %v4270 = vmul.f32 %v4110, %v4245
  %v4271 = vmul.f32 %v4115, %v4245
  %v4272 = vmul.f32 %v4120, %v4245
  %v4273 = vmul.f32 %v4125, %v4245
  %v4274 = vadd.f32 %v4266, %v4257
  %v4275 = vadd.f32 %v4267, %v4257
  %v4276 = vadd.f32 %v4268, %v4257
  %v4277 = vadd.f32 %v4269, %v4257
  %v4278 = vadd.f32 %v4270, %v4257
  %v4279 = vadd.f32 %v4271, %v4257
  %v4280 = vadd.f32 %v4272, %v4257
  %v4281 = vadd.f32 %v4273, %v4257
  %v4289 = vcombine.high %v4258, %v4258
  %v4290 = vcombine.high %v4259, %v4259
  %v4291 = vcombine.high %v4260, %v4260
  %v4292 = vcombine.high %v4261, %v4261
  %v4293 = vcombine.high %v4262, %v4262
  %v4294 = vcombine.high %v4263, %v4263
  %v4295 = vcombine.high %v4264, %v4264
  %vm4303 = vcmask 125952
  %v4304 = vsel %vm4303, %v4258, -inf
  %v4305 = vrot.slane %v4304, 4
  %v4306 = vmax.f32 %v4304, %v4305
  %v4307 = vrot.slane %v4306, 2
  %v4308 = vmax.f32 %v4306, %v4307
  %v4309 = vrot.slane %v4308, 1
  %v4310 = vmax.f32 %v4308, %v4309
  %v4311 = vsel %vm4303, %v4289, -inf
  %v4312 = vrot.slane %v4311, 4
  %v4313 = vmax.f32 %v4311, %v4312
  %v4314 = vrot.slane %v4313, 2
  %v4315 = vmax.f32 %v4313, %v4314
  %v4316 = vrot.slane %v4315, 1
  %v4317 = vmax.f32 %v4315, %v4316
  %v4318 = vsel %vm4303, %v4259, -inf
  %v4319 = vrot.slane %v4318, 4
  %v4320 = vmax.f32 %v4318, %v4319
  %v4321 = vrot.slane %v4320, 2
  %v4322 = vmax.f32 %v4320, %v4321
  %v4323 = vrot.slane %v4322, 1
  %v4324 = vmax.f32 %v4322, %v4323
  %v4325 = vsel %vm4303, %v4290, -inf
  %v4326 = vrot.slane %v4325, 4
  %v4327 = vmax.f32 %v4325, %v4326
  %v4328 = vrot.slane %v4327, 2
  %v4329 = vmax.f32 %v4327, %v4328
  %v4330 = vrot.slane %v4329, 1
  %v4331 = vmax.f32 %v4329, %v4330
  %v4332 = vsel %vm4303, %v4260, -inf
  %v4333 = vrot.slane %v4332, 4
  %v4334 = vmax.f32 %v4332, %v4333
  %v4335 = vrot.slane %v4334, 2
  %v4336 = vmax.f32 %v4334, %v4335
  %v4337 = vrot.slane %v4336, 1
  %v4338 = vmax.f32 %v4336, %v4337
  %v4339 = vsel %vm4303, %v4291, -inf
  %v4340 = vrot.slane %v4339, 4
  %v4341 = vmax.f32 %v4339, %v4340
  %v4342 = vrot.slane %v4341, 2
  %v4343 = vmax.f32 %v4341, %v4342
  %v4344 = vrot.slane %v4343, 1
  %v4345 = vmax.f32 %v4343, %v4344
  %v4346 = vsel %vm4303, %v4261, -inf
  %v4347 = vrot.slane %v4346, 4
  %v4348 = vmax.f32 %v4346, %v4347
  %v4349 = vrot.slane %v4348, 2
  %v4350 = vmax.f32 %v4348, %v4349
  %v4351 = vrot.slane %v4350, 1
  %v4352 = vmax.f32 %v4350, %v4351
  %v4353 = vsel %vm4303, %v4292, -inf
  %v4354 = vrot.slane %v4353, 4
  %v4355 = vmax.f32 %v4353, %v4354
  %v4356 = vrot.slane %v4355, 2
  %v4357 = vmax.f32 %v4355, %v4356
  %v4358 = vrot.slane %v4357, 1
  %v4359 = vmax.f32 %v4357, %v4358
  %v4360 = vsel %vm4303, %v4262, -inf
  %v4361 = vrot.slane %v4360, 4
  %v4362 = vmax.f32 %v4360, %v4361
  %v4363 = vrot.slane %v4362, 2
  %v4364 = vmax.f32 %v4362, %v4363
  %v4365 = vrot.slane %v4364, 1
  %v4366 = vmax.f32 %v4364, %v4365
  %v4367 = vsel %vm4303, %v4293, -inf
  %v4368 = vrot.slane %v4367, 4
  %v4369 = vmax.f32 %v4367, %v4368
  %v4370 = vrot.slane %v4369, 2
  %v4371 = vmax.f32 %v4369, %v4370
  %v4372 = vrot.slane %v4371, 1
  %v4373 = vmax.f32 %v4371, %v4372
  %v4374 = vsel %vm4303, %v4263, -inf
  %v4375 = vrot.slane %v4374, 4
  %v4376 = vmax.f32 %v4374, %v4375
  %v4377 = vrot.slane %v4376, 2
  %v4378 = vmax.f32 %v4376, %v4377
  %v4379 = vrot.slane %v4378, 1
  %v4380 = vmax.f32 %v4378, %v4379
  %v4381 = vsel %vm4303, %v4294, -inf
  %v4382 = vrot.slane %v4381, 4
  %v4383 = vmax.f32 %v4381, %v4382
  %v4384 = vrot.slane %v4383, 2
  %v4385 = vmax.f32 %v4383, %v4384
  %v4386 = vrot.slane %v4385, 1
  %v4387 = vmax.f32 %v4385, %v4386
  %v4388 = vsel %vm4303, %v4264, -inf
  %v4389 = vrot.slane %v4388, 4
  %v4390 = vmax.f32 %v4388, %v4389
  %v4391 = vrot.slane %v4390, 2
  %v4392 = vmax.f32 %v4390, %v4391
  %v4393 = vrot.slane %v4392, 1
  %v4394 = vmax.f32 %v4392, %v4393
  %v4395 = vsel %vm4303, %v4295, -inf
  %v4396 = vrot.slane %v4395, 4
  %v4397 = vmax.f32 %v4395, %v4396
  %v4398 = vrot.slane %v4397, 2
  %v4399 = vmax.f32 %v4397, %v4398
  %v4400 = vrot.slane %v4399, 1
  %v4401 = vmax.f32 %v4399, %v4400
  %v4402 = vsel %vm4303, %v4265, -inf
  %v4403 = vrot.slane %v4402, 4
  %v4404 = vmax.f32 %v4402, %v4403
  %v4405 = vrot.slane %v4404, 2
  %v4406 = vmax.f32 %v4404, %v4405
  %v4407 = vrot.slane %v4406, 1
  %v4408 = vmax.f32 %v4406, %v4407
  %v4409 = vmax.f32 %v4310, 0.0
  %v4410 = vmax.f32 %v4317, 0.0
  %v4411 = vmax.f32 %v4324, 0.0
  %v4412 = vmax.f32 %v4331, 0.0
  %v4413 = vmax.f32 %v4338, 0.0
  %v4414 = vmax.f32 %v4345, 0.0
  %v4415 = vmax.f32 %v4352, 0.0
  %v4416 = vmax.f32 %v4359, 0.0
  %v4417 = vmax.f32 %v4366, 0.0
  %v4418 = vmax.f32 %v4373, 0.0
  %v4419 = vmax.f32 %v4380, 0.0
  %v4420 = vmax.f32 %v4387, 0.0
  %v4421 = vmax.f32 %v4394, 0.0
  %v4422 = vmax.f32 %v4401, 0.0
  %v4423 = vmax.f32 %v4408, 0.0
  %v4431 = vcombine.high %v4274, %v4274
  %v4432 = vcombine.high %v4275, %v4275
  %v4433 = vcombine.high %v4276, %v4276
  %v4434 = vcombine.high %v4277, %v4277
  %v4435 = vcombine.high %v4278, %v4278
  %v4436 = vcombine.high %v4279, %v4279
  %v4437 = vcombine.high %v4280, %v4280
  %v4445 = vsel %vm4303, %v4274, -inf
  %v4446 = vrot.slane %v4445, 4
  %v4447 = vmax.f32 %v4445, %v4446
  %v4448 = vrot.slane %v4447, 2
  %v4449 = vmax.f32 %v4447, %v4448
  %v4450 = vrot.slane %v4449, 1
  %v4451 = vmax.f32 %v4449, %v4450
  %v4452 = vsel %vm4303, %v4431, -inf
  %v4453 = vrot.slane %v4452, 4
  %v4454 = vmax.f32 %v4452, %v4453
  %v4455 = vrot.slane %v4454, 2
  %v4456 = vmax.f32 %v4454, %v4455
  %v4457 = vrot.slane %v4456, 1
  %v4458 = vmax.f32 %v4456, %v4457
  %v4459 = vsel %vm4303, %v4275, -inf
  %v4460 = vrot.slane %v4459, 4
  %v4461 = vmax.f32 %v4459, %v4460
  %v4462 = vrot.slane %v4461, 2
  %v4463 = vmax.f32 %v4461, %v4462
  %v4464 = vrot.slane %v4463, 1
  %v4465 = vmax.f32 %v4463, %v4464
  %v4466 = vsel %vm4303, %v4432, -inf
  %v4467 = vrot.slane %v4466, 4
  %v4468 = vmax.f32 %v4466, %v4467
  %v4469 = vrot.slane %v4468, 2
  %v4470 = vmax.f32 %v4468, %v4469
  %v4471 = vrot.slane %v4470, 1
  %v4472 = vmax.f32 %v4470, %v4471
  %v4473 = vsel %vm4303, %v4276, -inf
  %v4474 = vrot.slane %v4473, 4
  %v4475 = vmax.f32 %v4473, %v4474
  %v4476 = vrot.slane %v4475, 2
  %v4477 = vmax.f32 %v4475, %v4476
  %v4478 = vrot.slane %v4477, 1
  %v4479 = vmax.f32 %v4477, %v4478
  %v4480 = vsel %vm4303, %v4433, -inf
  %v4481 = vrot.slane %v4480, 4
  %v4482 = vmax.f32 %v4480, %v4481
  %v4483 = vrot.slane %v4482, 2
  %v4484 = vmax.f32 %v4482, %v4483
  %v4485 = vrot.slane %v4484, 1
  %v4486 = vmax.f32 %v4484, %v4485
  %v4487 = vsel %vm4303, %v4277, -inf
  %v4488 = vrot.slane %v4487, 4
  %v4489 = vmax.f32 %v4487, %v4488
  %v4490 = vrot.slane %v4489, 2
  %v4491 = vmax.f32 %v4489, %v4490
  %v4492 = vrot.slane %v4491, 1
  %v4493 = vmax.f32 %v4491, %v4492
  %v4494 = vsel %vm4303, %v4434, -inf
  %v4495 = vrot.slane %v4494, 4
  %v4496 = vmax.f32 %v4494, %v4495
  %v4497 = vrot.slane %v4496, 2
  %v4498 = vmax.f32 %v4496, %v4497
  %v4499 = vrot.slane %v4498, 1
  %v4500 = vmax.f32 %v4498, %v4499
  %v4501 = vsel %vm4303, %v4278, -inf
  %v4502 = vrot.slane %v4501, 4
  %v4503 = vmax.f32 %v4501, %v4502
  %v4504 = vrot.slane %v4503, 2
  %v4505 = vmax.f32 %v4503, %v4504
  %v4506 = vrot.slane %v4505, 1
  %v4507 = vmax.f32 %v4505, %v4506
  %v4508 = vsel %vm4303, %v4435, -inf
  %v4509 = vrot.slane %v4508, 4
  %v4510 = vmax.f32 %v4508, %v4509
  %v4511 = vrot.slane %v4510, 2
  %v4512 = vmax.f32 %v4510, %v4511
  %v4513 = vrot.slane %v4512, 1
  %v4514 = vmax.f32 %v4512, %v4513
  %v4515 = vsel %vm4303, %v4279, -inf
  %v4516 = vrot.slane %v4515, 4
  %v4517 = vmax.f32 %v4515, %v4516
  %v4518 = vrot.slane %v4517, 2
  %v4519 = vmax.f32 %v4517, %v4518
  %v4520 = vrot.slane %v4519, 1
  %v4521 = vmax.f32 %v4519, %v4520
  %v4522 = vsel %vm4303, %v4436, -inf
  %v4523 = vrot.slane %v4522, 4
  %v4524 = vmax.f32 %v4522, %v4523
  %v4525 = vrot.slane %v4524, 2
  %v4526 = vmax.f32 %v4524, %v4525
  %v4527 = vrot.slane %v4526, 1
  %v4528 = vmax.f32 %v4526, %v4527
  %v4529 = vsel %vm4303, %v4280, -inf
  %v4530 = vrot.slane %v4529, 4
  %v4531 = vmax.f32 %v4529, %v4530
  %v4532 = vrot.slane %v4531, 2
  %v4533 = vmax.f32 %v4531, %v4532
  %v4534 = vrot.slane %v4533, 1
  %v4535 = vmax.f32 %v4533, %v4534
  %v4536 = vsel %vm4303, %v4437, -inf
  %v4537 = vrot.slane %v4536, 4
  %v4538 = vmax.f32 %v4536, %v4537
  %v4539 = vrot.slane %v4538, 2
  %v4540 = vmax.f32 %v4538, %v4539
  %v4541 = vrot.slane %v4540, 1
  %v4542 = vmax.f32 %v4540, %v4541
  %v4543 = vsel %vm4303, %v4281, -inf
  %v4544 = vrot.slane %v4543, 4
  %v4545 = vmax.f32 %v4543, %v4544
  %v4546 = vrot.slane %v4545, 2
  %v4547 = vmax.f32 %v4545, %v4546
  %v4548 = vrot.slane %v4547, 1
  %v4549 = vmax.f32 %v4547, %v4548
  %v4550 = vmax.f32 %v4451, 0.0
  %v4551 = vmax.f32 %v4458, 0.0
  %v4552 = vmax.f32 %v4465, 0.0
  %v4553 = vmax.f32 %v4472, 0.0
  %v4554 = vmax.f32 %v4479, 0.0
  %v4555 = vmax.f32 %v4486, 0.0
  %v4556 = vmax.f32 %v4493, 0.0
  %v4557 = vmax.f32 %v4500, 0.0
  %v4558 = vmax.f32 %v4507, 0.0
  %v4559 = vmax.f32 %v4514, 0.0
  %v4560 = vmax.f32 %v4521, 0.0
  %v4561 = vmax.f32 %v4528, 0.0
  %v4562 = vmax.f32 %v4535, 0.0
  %v4563 = vmax.f32 %v4542, 0.0
  %v4564 = vmax.f32 %v4549, 0.0
  %v4578 = vsel %vm3330, %v4410, %v4409
  %v4579 = vsel %vm3332, %v4411, %v4578
  %v4580 = vsel %vm3334, %v4412, %v4579
  %v4581 = vsel %vm3336, %v4413, %v4580
  %v4582 = vsel %vm3338, %v4414, %v4581
  %v4583 = vsel %vm3340, %v4415, %v4582
  %v4584 = vsel %vm3342, %v4416, %v4583
  %v4585 = vsel %vm3330, %v4418, %v4417
  %v4586 = vsel %vm3332, %v4419, %v4585
  %v4587 = vsel %vm3334, %v4420, %v4586
  %v4588 = vsel %vm3336, %v4421, %v4587
  %v4592 = vsel %vm3330, %v4411, %v4410
  %v4593 = vsel %vm3332, %v4412, %v4592
  %v4594 = vsel %vm3334, %v4413, %v4593
  %v4595 = vsel %vm3336, %v4414, %v4594
  %v4596 = vsel %vm3338, %v4415, %v4595
  %v4597 = vsel %vm3340, %v4416, %v4596
  %v4598 = vsel %vm3342, %v4417, %v4597
  %v4599 = vsel %vm3330, %v4419, %v4418
  %v4600 = vsel %vm3332, %v4420, %v4599
  %v4601 = vsel %vm3334, %v4421, %v4600
  %v4602 = vsel %vm3336, %v4422, %v4601
  %4603 = vrot.lane.b32.xlu0 %v4598, 16
  %v4604 = vpop.permute.xlu0 %4603
  %4605 = vrot.lane.b32.xlu0 %v4602, 16
  %v4606 = vpop.permute.xlu0 %4605
  %v4610 = vsel %vm3330, %v4412, %v4411
  %v4611 = vsel %vm3332, %v4413, %v4610
  %v4612 = vsel %vm3334, %v4414, %v4611
  %v4613 = vsel %vm3336, %v4415, %v4612
  %v4614 = vsel %vm3338, %v4416, %v4613
  %v4615 = vsel %vm3340, %v4417, %v4614
  %v4616 = vsel %vm3342, %v4418, %v4615
  %v4617 = vsel %vm3330, %v4420, %v4419
  %v4618 = vsel %vm3332, %v4421, %v4617
  %v4619 = vsel %vm3334, %v4422, %v4618
  %v4620 = vsel %vm3336, %v4423, %v4619
  %4621 = vrot.lane.b32.xlu0 %v4616, 32
  %v4622 = vpop.permute.xlu0 %4621
  %4623 = vrot.lane.b32.xlu0 %v4620, 32
  %v4624 = vpop.permute.xlu0 %4623
  %v4627 = vsel %vm3562, %v4584, %v4604
  %v4628 = vsel %vm3562, %v4588, %v4606
  %vm4629 = vcmask 261120
  %v4630 = vsel %vm4629, %v4627, %v4622
  %v4631 = vsel %vm4629, %v4628, %v4624
  %v4632 = vlaneseq
  %v4633 = vshrl.u32 %v4632, 7
  %v4634 = vsub.s32 0, %v4633
  %v4635 = vrot.slane %v31, %v4634
  %vm4636 = vcmask 392192
  %v4638 = vsel %vm4636, %v4630, 0
  %v4641 = vsel %vm4636, %v4631, 0
  %4643 = vmatprep.subr.mxu0 0.0
  %4644 = vmatpush1.msra.mxu0 0.0
  %4645 = vmatprep.subr.mxu0 0.0
  %4646 = vmatpush1.msra.mxu0 0.0
  %4647 = vmatprep.subr.mxu0 0.0
  %4648 = vmatpush1.msra.mxu0 0.0
  %4649 = vmatprep.subr.mxu0 0.0
  %4650 = vmatpush1.msra.mxu0 0.0
  %4651 = vmatprep.subr.mxu0 0.0
  %4652 = vmatpush1.msra.mxu0 0.0
  %4653 = vmatprep.subr.mxu0 0.0
  %4654 = vmatpush1.msra.mxu0 0.0
  %4655 = vmatprep.subr.mxu0 0.0
  %4656 = vmatpush1.msra.mxu0 0.0
  %4657 = vmatprep.subr.mxu0 0.0
  %4658 = vmatpush1.msra.mxu0 0.0
  %4659 = vmatprep.subr.mxu0 0.0
  %4660 = vmatpush1.msra.mxu0 0.0
  %4661 = vmatprep.subr.mxu0 0.0
  %4662 = vmatpush1.msra.mxu0 0.0
  %4663 = vmatprep.subr.mxu0 0.0
  %4664 = vmatpush1.msra.mxu0 %v24
  %4665 = vmatprep.subr.mxu0 0.0
  %4666 = vmatpush1.msra.mxu0 %v23
  %4667 = vmatprep.subr.mxu0 0.0
  %4668 = vmatpush1.msra.mxu0 %v22
  %4669 = vmatprep.subr.mxu0 0.0
  %4670 = vmatpush1.msra.mxu0 %v21
  %4671 = vmatprep.subr.mxu0 0.0
  %4672 = vmatpush1.msra.mxu0 %v20
  %4673 = vmatprep.subr.mxu0 0.0
  %4674 = vmatpush1.msra.mxu0 %v19
  %4675 = vmatprep.subr.mxu0 0.0
  %4676 = vmatpush2.msra.mxu0 0.0
  %4677 = vmatprep.subr.mxu0 0.0
  %4678 = vmatpush2.msra.mxu0 0.0
  %4679 = vmatprep.subr.mxu0 0.0
  %4680 = vmatpush2.msra.mxu0 0.0
  %4681 = vmatprep.subr.mxu0 0.0
  %4682 = vmatpush2.msra.mxu0 0.0
  %4683 = vmatprep.subr.mxu0 0.0
  %4684 = vmatpush2.msra.mxu0 0.0
  %4685 = vmatprep.subr.mxu0 0.0
  %4686 = vmatpush2.msra.mxu0 0.0
  %4687 = vmatprep.subr.mxu0 0.0
  %4688 = vmatpush2.msra.mxu0 0.0
  %4689 = vmatprep.subr.mxu0 0.0
  %4690 = vmatpush2.msra.mxu0 0.0
  %4691 = vmatprep.subr.mxu0 0.0
  %4692 = vmatpush2.msra.mxu0 0.0
  %4693 = vmatprep.subr.mxu0 0.0
  %4694 = vmatpush2.msra.mxu0 0.0
  %4695 = vmatprep.subr.mxu0 0.0
  %4696 = vmatpush2.msra.mxu0 0.0
  %4697 = vmatprep.subr.mxu0 0.0
  %4698 = vmatpush2.msra.mxu0 0.0
  %4699 = vmatprep.subr.mxu0 0.0
  %4700 = vmatpush2.msra.mxu0 0.0
  %4701 = vmatprep.subr.mxu0 0.0
  %4702 = vmatpush2.msra.mxu0 0.0
  %4703 = vmatprep.subr.mxu0 0.0
  %4704 = vmatpush2.msra.mxu0 0.0
  %4705 = vmatprep.subr.mxu0 0.0
  %4706 = vmatpush2.msra.mxu0 0.0
  %4707 = vmatprep.mubr.f32.mxu0 0.0
  %4708 = vmatmul.mubr.f32.gmra.mxu0 %v4638
  %v4709 = vpop.f32.mrf.mxu0
  %v4710 = vadd.f32 %v4635, %v4709
  %v4711 = vpop.f32.mrf.mxu0
  %4712 = vmatprep.mubr.f32.mxu0 0.0
  %4713 = vmatmul.mubr.f32.gmra.mxu0 %v4641
  %v4714 = vpop.f32.mrf.mxu0
  %v4715 = vadd.f32 %v4635, %v4714
  %v4716 = vpop.f32.mrf.mxu0
  %4717 = vdwg.mxu0
  %v4731 = vsel %vm3330, %v4551, %v4550
  %v4732 = vsel %vm3332, %v4552, %v4731
  %v4733 = vsel %vm3334, %v4553, %v4732
  %v4734 = vsel %vm3336, %v4554, %v4733
  %v4735 = vsel %vm3338, %v4555, %v4734
  %v4736 = vsel %vm3340, %v4556, %v4735
  %v4737 = vsel %vm3342, %v4557, %v4736
  %v4738 = vsel %vm3330, %v4559, %v4558
  %v4739 = vsel %vm3332, %v4560, %v4738
  %v4740 = vsel %vm3334, %v4561, %v4739
  %v4741 = vsel %vm3336, %v4562, %v4740
  %v4745 = vsel %vm3330, %v4552, %v4551
  %v4746 = vsel %vm3332, %v4553, %v4745
  %v4747 = vsel %vm3334, %v4554, %v4746
  %v4748 = vsel %vm3336, %v4555, %v4747
  %v4749 = vsel %vm3338, %v4556, %v4748
  %v4750 = vsel %vm3340, %v4557, %v4749
  %v4751 = vsel %vm3342, %v4558, %v4750
  %v4752 = vsel %vm3330, %v4560, %v4559
  %v4753 = vsel %vm3332, %v4561, %v4752
  %v4754 = vsel %vm3334, %v4562, %v4753
  %v4755 = vsel %vm3336, %v4563, %v4754
  %4756 = vrot.lane.b32.xlu0 %v4751, 16
  %v4757 = vpop.permute.xlu0 %4756
  %4758 = vrot.lane.b32.xlu0 %v4755, 16
  %v4759 = vpop.permute.xlu0 %4758
  %v4763 = vsel %vm3330, %v4553, %v4552
  %v4764 = vsel %vm3332, %v4554, %v4763
  %v4765 = vsel %vm3334, %v4555, %v4764
  %v4766 = vsel %vm3336, %v4556, %v4765
  %v4767 = vsel %vm3338, %v4557, %v4766
  %v4768 = vsel %vm3340, %v4558, %v4767
  %v4769 = vsel %vm3342, %v4559, %v4768
  %v4770 = vsel %vm3330, %v4561, %v4560
  %v4771 = vsel %vm3332, %v4562, %v4770
  %v4772 = vsel %vm3334, %v4563, %v4771
  %v4773 = vsel %vm3336, %v4564, %v4772
  %4774 = vrot.lane.b32.xlu0 %v4769, 32
  %v4775 = vpop.permute.xlu0 %4774
  %4776 = vrot.lane.b32.xlu0 %v4773, 32
  %v4777 = vpop.permute.xlu0 %4776
  %v4780 = vsel %vm3562, %v4737, %v4757
  %v4781 = vsel %vm3562, %v4741, %v4759
  %v4782 = vsel %vm4629, %v4780, %v4775
  %v4783 = vsel %vm4629, %v4781, %v4777
  %v4785 = vsel %vm4636, %v4782, 0
  %v4788 = vsel %vm4636, %v4783, 0
  %4790 = vmatprep.subr.mxu0 0.0
  %4791 = vmatpush1.msra.mxu0 0.0
  %4792 = vmatprep.subr.mxu0 0.0
  %4793 = vmatpush1.msra.mxu0 0.0
  %4794 = vmatprep.subr.mxu0 0.0
  %4795 = vmatpush1.msra.mxu0 0.0
  %4796 = vmatprep.subr.mxu0 0.0
  %4797 = vmatpush1.msra.mxu0 0.0
  %4798 = vmatprep.subr.mxu0 0.0
  %4799 = vmatpush1.msra.mxu0 0.0
  %4800 = vmatprep.subr.mxu0 0.0
  %4801 = vmatpush1.msra.mxu0 0.0
  %4802 = vmatprep.subr.mxu0 0.0
  %4803 = vmatpush1.msra.mxu0 0.0
  %4804 = vmatprep.subr.mxu0 0.0
  %4805 = vmatpush1.msra.mxu0 0.0
  %4806 = vmatprep.subr.mxu0 0.0
  %4807 = vmatpush1.msra.mxu0 0.0
  %4808 = vmatprep.subr.mxu0 0.0
  %4809 = vmatpush1.msra.mxu0 0.0
  %4810 = vmatprep.subr.mxu0 0.0
  %4811 = vmatpush1.msra.mxu0 %v24
  %4812 = vmatprep.subr.mxu0 0.0
  %4813 = vmatpush1.msra.mxu0 %v23
  %4814 = vmatprep.subr.mxu0 0.0
  %4815 = vmatpush1.msra.mxu0 %v22
  %4816 = vmatprep.subr.mxu0 0.0
  %4817 = vmatpush1.msra.mxu0 %v21
  %4818 = vmatprep.subr.mxu0 0.0
  %4819 = vmatpush1.msra.mxu0 %v20
  %4820 = vmatprep.subr.mxu0 0.0
  %4821 = vmatpush1.msra.mxu0 %v19
  %4822 = vmatprep.subr.mxu0 0.0
  %4823 = vmatpush2.msra.mxu0 0.0
  %4824 = vmatprep.subr.mxu0 0.0
  %4825 = vmatpush2.msra.mxu0 0.0
  %4826 = vmatprep.subr.mxu0 0.0
  %4827 = vmatpush2.msra.mxu0 0.0
  %4828 = vmatprep.subr.mxu0 0.0
  %4829 = vmatpush2.msra.mxu0 0.0
  %4830 = vmatprep.subr.mxu0 0.0
  %4831 = vmatpush2.msra.mxu0 0.0
  %4832 = vmatprep.subr.mxu0 0.0
  %4833 = vmatpush2.msra.mxu0 0.0
  %4834 = vmatprep.subr.mxu0 0.0
  %4835 = vmatpush2.msra.mxu0 0.0
  %4836 = vmatprep.subr.mxu0 0.0
  %4837 = vmatpush2.msra.mxu0 0.0
  %4838 = vmatprep.subr.mxu0 0.0
  %4839 = vmatpush2.msra.mxu0 0.0
  %4840 = vmatprep.subr.mxu0 0.0
  %4841 = vmatpush2.msra.mxu0 0.0
  %4842 = vmatprep.subr.mxu0 0.0
  %4843 = vmatpush2.msra.mxu0 0.0
  %4844 = vmatprep.subr.mxu0 0.0
  %4845 = vmatpush2.msra.mxu0 0.0
  %4846 = vmatprep.subr.mxu0 0.0
  %4847 = vmatpush2.msra.mxu0 0.0
  %4848 = vmatprep.subr.mxu0 0.0
  %4849 = vmatpush2.msra.mxu0 0.0
  %4850 = vmatprep.subr.mxu0 0.0
  %4851 = vmatpush2.msra.mxu0 0.0
  %4852 = vmatprep.subr.mxu0 0.0
  %4853 = vmatpush2.msra.mxu0 0.0
  %4854 = vmatprep.mubr.f32.mxu0 0.0
  %4855 = vmatmul.mubr.f32.gmra.mxu0 %v4785
  %v4856 = vpop.f32.mrf.mxu0
  %v4857 = vadd.f32 %v4635, %v4856
  %v4858 = vpop.f32.mrf.mxu0
  %4859 = vmatprep.mubr.f32.mxu0 0.0
  %4860 = vmatmul.mubr.f32.gmra.mxu0 %v4788
  %v4861 = vpop.f32.mrf.mxu0
  %v4862 = vadd.f32 %v4635, %v4861
  %v4863 = vpop.f32.mrf.mxu0
  %4864 = vdwg.mxu0
  %v4865 = vsel %vm4629, %v4710, 0.0
  %vm4866 = vcmask 258048
  %v4867 = vsel %vm4866, %v4715, 0.0
  %v4868 = vadd.f32 %v4865, %v4867
  %v4869 = vrot.slane %v4868, 4
  %v4870 = vadd.f32 %v4868, %v4869
  %v4871 = vrot.slane %v4870, 2
  %v4872 = vadd.f32 %v4870, %v4871
  %v4873 = vrot.slane %v4872, 1
  %v4874 = vadd.f32 %v4872, %v4873
  %v4875 = vadd.f32 %v4874, 0.0
  %v4876 = vmul.f32 %v4710, %v4710
  %v4877 = vmul.f32 %v4715, %v4715
  %v4878 = vsel %vm4629, %v4876, 0.0
  %v4879 = vsel %vm4866, %v4877, 0.0
  %v4880 = vadd.f32 %v4878, %v4879
  %v4881 = vrot.slane %v4880, 4
  %v4882 = vadd.f32 %v4880, %v4881
  %v4883 = vrot.slane %v4882, 2
  %v4884 = vadd.f32 %v4882, %v4883
  %v4885 = vrot.slane %v4884, 1
  %v4886 = vadd.f32 %v4884, %v4885
  %v4887 = vadd.f32 %v4886, 0.0
  %v4888 = vsel %vm4629, %v4857, 0.0
  %v4889 = vsel %vm4866, %v4862, 0.0
  %v4890 = vadd.f32 %v4888, %v4889
  %v4891 = vrot.slane %v4890, 4
  %v4892 = vadd.f32 %v4890, %v4891
  %v4893 = vrot.slane %v4892, 2
  %v4894 = vadd.f32 %v4892, %v4893
  %v4895 = vrot.slane %v4894, 1
  %v4896 = vadd.f32 %v4894, %v4895
  %v4897 = vadd.f32 %v4875, %v4896
  %v4898 = vmul.f32 %v4857, %v4857
  %v4899 = vmul.f32 %v4862, %v4862
  %v4900 = vsel %vm4629, %v4898, 0.0
  %v4901 = vsel %vm4866, %v4899, 0.0
  %v4902 = vadd.f32 %v4900, %v4901
  %v4903 = vrot.slane %v4902, 4
  %v4904 = vadd.f32 %v4902, %v4903
  %v4905 = vrot.slane %v4904, 2
  %v4906 = vadd.f32 %v4904, %v4905
  %v4907 = vrot.slane %v4906, 1
  %v4908 = vadd.f32 %v4906, %v4907
  %v4909 = vadd.f32 %v4887, %v4908
  %v4910 = vmul.f32 %v4897, 0.03846154
  %v4911 = vmul.f32 %v4909, 0.03846154
  %v4912 = vmul.f32 %v4910, %v4910
  %v4913 = vsub.f32 %v4911, %v4912
  %v4914 = vadd.f32 %v4913, 1e-05
  %v4915 = vrsqrt.pop %v4914
  %v4916 = vmul.f32 %v32, %v4915
  %v4917 = vmul.f32 %v4910, %v4916
  %v4918 = vsub.f32 %v33, %v4917
  %v4919 = vlaneseq
  %v4920 = vshrl.u32 %v4919, 7
  %v4921 = vsub.s32 0, %v4920
  %v4922 = vrot.slane %v4916, %v4921
  %v4923 = vmul.f32 %v4710, %v4922
  %v4924 = vmul.f32 %v4715, %v4922
  %v4925 = vlaneseq
  %v4926 = vshrl.u32 %v4925, 7
  %v4927 = vsub.s32 0, %v4926
  %v4928 = vrot.slane %v4918, %v4927
  %v4929 = vadd.f32 %v4923, %v4928
  %v4930 = vadd.f32 %v4924, %v4928
  %v4931 = vmul.f32 %v4857, %v4922
  %v4932 = vmul.f32 %v4862, %v4922
  %v4933 = vadd.f32 %v4931, %v4928
  %v4934 = vadd.f32 %v4932, %v4928
  %v4936 = vcombine.high %v4929, %v4929
  %vm4938 = vcmask 257024
  %v4939 = vsel %vm4938, %v4929, -inf
  %v4940 = vrot.slane %v4939, 4
  %v4941 = vmax.f32 %v4939, %v4940
  %v4942 = vrot.slane %v4941, 2
  %v4943 = vmax.f32 %v4941, %v4942
  %v4944 = vrot.slane %v4943, 1
  %v4945 = vmax.f32 %v4943, %v4944
  %v4946 = vsel %vm4938, %v4936, -inf
  %v4947 = vrot.slane %v4946, 4
  %v4948 = vmax.f32 %v4946, %v4947
  %v4949 = vrot.slane %v4948, 2
  %v4950 = vmax.f32 %v4948, %v4949
  %v4951 = vrot.slane %v4950, 1
  %v4952 = vmax.f32 %v4950, %v4951
  %v4953 = vsel %vm4938, %v4930, -inf
  %v4954 = vrot.slane %v4953, 4
  %v4955 = vmax.f32 %v4953, %v4954
  %v4956 = vrot.slane %v4955, 2
  %v4957 = vmax.f32 %v4955, %v4956
  %v4958 = vrot.slane %v4957, 1
  %v4959 = vmax.f32 %v4957, %v4958
  %v4960 = vmax.f32 %v4945, 0.0
  %v4961 = vmax.f32 %v4952, 0.0
  %v4962 = vmax.f32 %v4959, 0.0
  %v4964 = vcombine.high %v4933, %v4933
  %v4966 = vsel %vm4938, %v4933, -inf
  %v4967 = vrot.slane %v4966, 4
  %v4968 = vmax.f32 %v4966, %v4967
  %v4969 = vrot.slane %v4968, 2
  %v4970 = vmax.f32 %v4968, %v4969
  %v4971 = vrot.slane %v4970, 1
  %v4972 = vmax.f32 %v4970, %v4971
  %v4973 = vsel %vm4938, %v4964, -inf
  %v4974 = vrot.slane %v4973, 4
  %v4975 = vmax.f32 %v4973, %v4974
  %v4976 = vrot.slane %v4975, 2
  %v4977 = vmax.f32 %v4975, %v4976
  %v4978 = vrot.slane %v4977, 1
  %v4979 = vmax.f32 %v4977, %v4978
  %v4980 = vsel %vm4938, %v4934, -inf
  %v4981 = vrot.slane %v4980, 4
  %v4982 = vmax.f32 %v4980, %v4981
  %v4983 = vrot.slane %v4982, 2
  %v4984 = vmax.f32 %v4982, %v4983
  %v4985 = vrot.slane %v4984, 1
  %v4986 = vmax.f32 %v4984, %v4985
  %v4987 = vmax.f32 %v4972, 0.0
  %v4988 = vmax.f32 %v4979, 0.0
  %v4989 = vmax.f32 %v4986, 0.0
  %v4991 = vrot.slane %v34, 1
  %v4992 = vrot.slane %v34, 2
  %v4996 = vmul.f32 %v4960, %v34
  %v4997 = vmul.f32 %v4961, %v4991
  %v4998 = vmul.f32 %v4962, %v4992
  %v5002 = vrot.slane %v4997, 7
  %v5003 = vsel %vm3330, %v5002, %v4996
  %v5004 = vrot.slane %v4998, 6
  %v5005 = vsel %vm3332, %v5004, %v5003
  %vm5007 = vcmask 256000
  %v5008 = vsel %vm5007, %v5005, 0.0
  %5009 = vadd.xlane.f32.xlu0 %v5008
  %v5010 = vpop.xlane.xlu0 %5009
  %vm5011 = vcmask 1042432
  %v5012 = vsel %vm5011, %v5010, 0.0
  %v5013 = vrot.slane %v5012, 4
  %v5014 = vadd.f32 %v5012, %v5013
  %v5015 = vrot.slane %v5014, 2
  %v5016 = vadd.f32 %v5014, %v5015
  %v5017 = vrot.slane %v5016, 1
  %v5018 = vadd.f32 %v5016, %v5017
  %v5019 = vadd.f32 %v5018, %v35
  %vm5020 = vcmask 0
  %5021 = vst.msk [vmem:[%s3] sm:$0x1] %vm5020, %v5019
  %v5022 = vmul.f32 %v4987, %v34
  %v5023 = vmul.f32 %v4988, %v4991
  %v5024 = vmul.f32 %v4989, %v4992
  %v5028 = vrot.slane %v5023, 7
  %v5029 = vsel %vm3330, %v5028, %v5022
  %v5030 = vrot.slane %v5024, 6
  %v5031 = vsel %vm3332, %v5030, %v5029
  %v5033 = vsel %vm5007, %v5031, 0.0
  %5034 = vadd.xlane.f32.xlu0 %v5033
  %v5035 = vpop.xlane.xlu0 %5034
  %v5036 = vsel %vm5011, %v5035, 0.0
  %v5037 = vrot.slane %v5036, 4
  %v5038 = vadd.f32 %v5036, %v5037
  %v5039 = vrot.slane %v5038, 2
  %v5040 = vadd.f32 %v5038, %v5039
  %v5041 = vrot.slane %v5040, 1
  %v5042 = vadd.f32 %v5040, %v5041
  %v5043 = vadd.f32 %v5042, %v35
  %5044 = vst.msk [vmem:[%s3 + $0x1] sm:$0x1] %vm5020, %v5043
  // Predicated region
  $region14: #{cnn_forward.1} parent=0 // pred_check
    _
  $region15: #{cnn_forward.1} parent=0 // pred_check_branch
    %5046 = sbr.rel (0) target = $region17
  $region16: #{cnn_forward.1} parent=0 // pred_region
    _
  $region17: #{cnn_forward.1} parent=0 // pred_fallthru
    _
  // Predicated region
  $region18: #{cnn_forward.1} parent=0 // pred_check
    _
  $region19: #{cnn_forward.1} parent=0 // pred_check_branch
    %5048 = sbr.rel (0) target = $region21
  $region20: #{cnn_forward.1} parent=0 // pred_region
    _
  $region21: #{cnn_forward.1} parent=0 // pred_fallthru
    _

</llo_original>
